<compile_context>
chip_gen: v7x
topology: tpu7x:2x2x1
jax: 0.10.0
libtpu: 0.0.40
codegen_flags: <defaults>
</compile_context>

<pallas_src>
import functools
import math

import jax
import jax.numpy as jnp
from jax.experimental import pallas as pl
from jax.experimental.pallas import tpu as pltpu

# ---- model hyper-parameters (mirroring the PyTorch __init__ defaults) ----
INPUT_SIZE = 6          # ['thetaX','thetaY','d','Fx','Fy','Fz']
OUTPUT_SIZE = 3         # ['P1','P2','P3']
HIDDEN = 64             # hidden_size / d_model
NHEAD = 4
HEAD_DIM = HIDDEN // NHEAD
NUM_LAYERS = 2
FFN = 2048              # nn.TransformerEncoderLayer default dim_feedforward
EPS = 1e-5              # LayerNorm eps

# ---- small example shapes ----
SEQ = 8                 # S : attention axis (axis 0 of x)
NBATCH = 2              # N : axis 1 of x (x[:, -1, :] selects the last element)


def _layer_norm(x, gamma, beta):
    """PyTorch LayerNorm over the last dim (biased variance, eps=1e-5)."""
    mu = jnp.mean(x, axis=-1, keepdims=True)
    var = jnp.mean((x - mu) ** 2, axis=-1, keepdims=True)
    return (x - mu) * jax.lax.rsqrt(var + EPS) * gamma + beta


def transformer_kernel(
    # ---- resident across the whole grid (constant block index) ----
    x_ref,                       # (S, INPUT_SIZE) f32   -- only the n == N-1 sequence
    fc1_w_ref, fc1_b_ref,        # (INPUT_SIZE, H) f32, (1, H) f32
    fc2_w_ref, fc2_b_ref,        # (H, OUTPUT_SIZE) f32, (1, OUTPUT_SIZE) f32
    # ---- streamed per grid step l (leading layer axis squeezed) ----
    q_w_ref, q_b_ref,            # (NHEAD, H, HD) bf16, (NHEAD, 1, HD) f32
    k_w_ref, k_b_ref,
    v_w_ref, v_b_ref,
    out_w_ref, out_b_ref,        # (NHEAD, HD, H) bf16, (1, H) f32
    ln1_w_ref, ln1_b_ref,        # (1, H) f32
    ff1_w_ref, ff1_b_ref,        # (H, FFN) bf16, (1, FFN) f32
    ff2_w_ref, ff2_b_ref,        # (FFN, H) bf16, (1, H) f32
    ln2_w_ref, ln2_b_ref,        # (1, H) f32
    # ---- output + carried state ----
    o_ref,                       # (S, OUTPUT_SIZE) f32
    h_ref,                       # VMEM scratch (S, H) f32 -- carried across layers
    *, seq,
):
    layer = pl.program_id(0)
    scale = 1.0 / math.sqrt(HEAD_DIM)

    # ---- fc1 + ReLU (first grid step only) ----
    @pl.when(layer == 0)
    def _():
        h0 = jnp.dot(x_ref[...], fc1_w_ref[...],
                     preferred_element_type=jnp.float32) + fc1_b_ref[...]
        h_ref[...] = jnp.maximum(h0, 0.0)

    h = h_ref[...]                                               # (S, H) f32

    # ---- multi-head self-attention: heads batched on the leading axis ----
    hb = jnp.broadcast_to(h.astype(jnp.bfloat16), (NHEAD, seq, HIDDEN))
    q = jnp.einsum('hse,hed->hsd', hb, q_w_ref[...],
                   preferred_element_type=jnp.float32) + q_b_ref[...]   # (NHEAD,S,HD)
    k = jnp.einsum('hse,hed->hsd', hb, k_w_ref[...],
                   preferred_element_type=jnp.float32) + k_b_ref[...]
    v = jnp.einsum('hse,hed->hsd', hb, v_w_ref[...],
                   preferred_element_type=jnp.float32) + v_b_ref[...]

    s = jnp.einsum('hqd,hkd->hqk', q, k,
                   preferred_element_type=jnp.float32) * scale          # (NHEAD,S,S)
    s = s - jnp.max(s, axis=-1, keepdims=True)
    p = jnp.exp(s)
    p = p * pl.reciprocal(jnp.sum(p, axis=-1, keepdims=True), approx=True)
    ctx = jnp.einsum('hqk,hkd->hqd', p, v,
                     preferred_element_type=jnp.float32)                # (NHEAD,S,HD)

    # output projection (sum over heads) -- no VMEM round-trip, no lane reslicing
    attn = jnp.einsum('hqd,hdo->hqo', ctx.astype(jnp.bfloat16), out_w_ref[...],
                      preferred_element_type=jnp.float32)
    attn = jnp.sum(attn, axis=0) + out_b_ref[...]                       # (S, H)

    # residual + LayerNorm1 (dropout = identity)
    h1 = _layer_norm(h + attn, ln1_w_ref[...], ln1_b_ref[...])

    # feed-forward: linear1 -> ReLU -> linear2 (bf16 weights, f32 accumulation)
    ff = jnp.dot(h1.astype(jnp.bfloat16), ff1_w_ref[...],
                 preferred_element_type=jnp.float32) + ff1_b_ref[...]
    ff = jnp.maximum(ff, 0.0)
    ff = jnp.dot(ff.astype(jnp.bfloat16), ff2_w_ref[...],
                 preferred_element_type=jnp.float32) + ff2_b_ref[...]

    # residual + LayerNorm2
    h2 = _layer_norm(h1 + ff, ln2_w_ref[...], ln2_b_ref[...])
    h_ref[...] = h2

    # ---- fc2 on the (single remaining) sequence, last grid step only ----
    @pl.when(layer == pl.num_programs(0) - 1)
    def _():
        o_ref[...] = jnp.dot(h2, fc2_w_ref[...],
                             preferred_element_type=jnp.float32) + fc2_b_ref[...]


def transformer_forward(x, params):
    """x: (S, N, INPUT_SIZE) float32  ->  (S, OUTPUT_SIZE) float32."""
    S, N, F = x.shape
    # Only the n == N-1 sequence reaches fc2 (attention mixes along axis 0 only,
    # FFN/LayerNorm are per-token) -> slice away all the dead work up front.
    x_last = x[:, -1, :]                                         # (S, F)

    args = (
        x_last,
        params["fc1_w"], params["fc1_b"],
        params["fc2_w"], params["fc2_b"],
        params["q_w"], params["q_b"],
        params["k_w"], params["k_b"],
        params["v_w"], params["v_b"],
        params["out_w"], params["out_b"],
        params["ln1_w"], params["ln1_b"],
        params["ff1_w"], params["ff1_b"],
        params["ff2_w"], params["ff2_b"],
        params["ln2_w"], params["ln2_b"],
    )

    def fixed(shape):
        # whole array, same block for every grid step (DMA'd once, stays resident)
        return pl.BlockSpec(shape, lambda l, _n=len(shape): (0,) * _n)

    def per_layer(shape):
        # leading NUM_LAYERS axis squeezed; layer l's block streamed per grid step
        return pl.BlockSpec((None,) + shape,
                            lambda l, _n=len(shape): (l,) + (0,) * _n)

    in_specs = [
        fixed((S, F)),
        fixed((F, HIDDEN)), fixed((1, HIDDEN)),
        fixed((HIDDEN, OUTPUT_SIZE)), fixed((1, OUTPUT_SIZE)),
        per_layer((NHEAD, HIDDEN, HEAD_DIM)), per_layer((NHEAD, 1, HEAD_DIM)),   # q
        per_layer((NHEAD, HIDDEN, HEAD_DIM)), per_layer((NHEAD, 1, HEAD_DIM)),   # k
        per_layer((NHEAD, HIDDEN, HEAD_DIM)), per_layer((NHEAD, 1, HEAD_DIM)),   # v
        per_layer((NHEAD, HEAD_DIM, HIDDEN)), per_layer((1, HIDDEN)),            # out proj
        per_layer((1, HIDDEN)), per_layer((1, HIDDEN)),                          # ln1
        per_layer((HIDDEN, FFN)), per_layer((1, FFN)),                           # ff1
        per_layer((FFN, HIDDEN)), per_layer((1, HIDDEN)),                        # ff2
        per_layer((1, HIDDEN)), per_layer((1, HIDDEN)),                          # ln2
    ]

    # advisory cost hint for XLA scheduling (kernel is launch/DMA bound at this size)
    flops = 2 * S * F * HIDDEN + 2 * S * HIDDEN * OUTPUT_SIZE
    flops += NUM_LAYERS * (2 * S * HIDDEN * 4 * HIDDEN          # q/k/v + out proj
                           + 2 * S * S * HIDDEN * 2             # scores + context
                           + 2 * S * HIDDEN * FFN * 2)          # ffn
    transcendentals = NUM_LAYERS * (NHEAD * S * S + 6 * S)      # exp + rsqrt + recip
    bytes_accessed = (sum(int(a.size) * a.dtype.itemsize for a in args)
                      + S * OUTPUT_SIZE * 4)

    kernel = functools.partial(transformer_kernel, seq=S)
    return pl.pallas_call(
        kernel,
        out_shape=jax.ShapeDtypeStruct((S, OUTPUT_SIZE), jnp.float32),
        grid=(NUM_LAYERS,),
        in_specs=in_specs,
        out_specs=pl.BlockSpec((S, OUTPUT_SIZE), lambda l: (0, 0)),
        scratch_shapes=[pltpu.VMEM((S, HIDDEN), jnp.float32)],
        compiler_params=pltpu.CompilerParams(
            dimension_semantics=("arbitrary",)),   # layer loop is sequential (h carry)
        cost_estimate=pl.CostEstimate(
            flops=int(flops), transcendentals=int(transcendentals),
            bytes_accessed=int(bytes_accessed)),
    )(*args)


def init_params(key):
    """Deterministic synthetic weights.
    Attention projections are stored per head:
      q_w[l, h, e, d] = W_q[l][h*HD + d, e]   (so q[h,s,d] = sum_e x[s,e] * q_w[l,h,e,d])
      out_w[l, h, d, o] = W_o[l][o, h*HD + d]
    Big matmul weights are bf16 (halves HBM traffic); biases/LayerNorm stay f32."""
    ks = jax.random.split(key, 16)
    bf = jnp.bfloat16

    def w(k, shape, scale=0.05, dtype=jnp.float32):
        return (scale * jax.random.normal(k, shape)).astype(dtype)

    return dict(
        fc1_w=w(ks[0], (INPUT_SIZE, HIDDEN)),
        fc1_b=w(ks[1], (1, HIDDEN)),
        fc2_w=w(ks[2], (HIDDEN, OUTPUT_SIZE)),
        fc2_b=w(ks[3], (1, OUTPUT_SIZE)),
        q_w=w(ks[4], (NUM_LAYERS, NHEAD, HIDDEN, HEAD_DIM), dtype=bf),
        q_b=w(ks[5], (NUM_LAYERS, NHEAD, 1, HEAD_DIM)),
        k_w=w(ks[6], (NUM_LAYERS, NHEAD, HIDDEN, HEAD_DIM), dtype=bf),
        k_b=w(ks[7], (NUM_LAYERS, NHEAD, 1, HEAD_DIM)),
        v_w=w(ks[8], (NUM_LAYERS, NHEAD, HIDDEN, HEAD_DIM), dtype=bf),
        v_b=w(ks[9], (NUM_LAYERS, NHEAD, 1, HEAD_DIM)),
        out_w=w(ks[10], (NUM_LAYERS, NHEAD, HEAD_DIM, HIDDEN), dtype=bf),
        out_b=w(ks[11], (NUM_LAYERS, 1, HIDDEN)),
        ln1_w=jnp.ones((NUM_LAYERS, 1, HIDDEN), jnp.float32),
        ln1_b=jnp.zeros((NUM_LAYERS, 1, HIDDEN), jnp.float32),
        ff1_w=w(ks[12], (NUM_LAYERS, HIDDEN, FFN), dtype=bf),
        ff1_b=w(ks[13], (NUM_LAYERS, 1, FFN)),
        ff2_w=w(ks[14], (NUM_LAYERS, FFN, HIDDEN), dtype=bf),
        ff2_b=w(ks[15], (NUM_LAYERS, 1, HIDDEN)),
        ln2_w=jnp.ones((NUM_LAYERS, 1, HIDDEN), jnp.float32),
        ln2_b=jnp.zeros((NUM_LAYERS, 1, HIDDEN), jnp.float32),
    )


def reference_forward(x, params):
    """Pure-JAX reference matching the PyTorch module (eval mode) on the FULL input,
    to validate that processing only the n == N-1 sequence is semantically identical."""
    S, N, F = x.shape
    hp = jax.lax.Precision.HIGHEST
    f32 = lambda a: a.astype(jnp.float32)

    def encoder_layer(hb, l):
        q = jnp.einsum('se,hed->hsd', hb, f32(params['q_w'][l]), precision=hp) + params['q_b'][l]
        k = jnp.einsum('se,hed->hsd', hb, f32(params['k_w'][l]), precision=hp) + params['k_b'][l]
        v = jnp.einsum('se,hed->hsd', hb, f32(params['v_w'][l]), precision=hp) + params['v_b'][l]
        s = jnp.einsum('hqd,hkd->hqk', q, k, precision=hp) / math.sqrt(HEAD_DIM)
        p = jax.nn.softmax(s, axis=-1)
        ctx = jnp.einsum('hqk,hkd->hqd', p, v, precision=hp)
        attn = jnp.einsum('hqd,hdo->qo', ctx, f32(params['out_w'][l]),
                          precision=hp) + params['out_b'][l]
        h1 = _layer_norm(hb + attn, params['ln1_w'][l], params['ln1_b'][l])
        ff = jnp.maximum(jnp.dot(h1, f32(params['ff1_w'][l]), precision=hp)
                         + params['ff1_b'][l], 0.0)
        ff = jnp.dot(ff, f32(params['ff2_w'][l]), precision=hp) + params['ff2_b'][l]
        return _layer_norm(h1 + ff, params['ln2_w'][l], params['ln2_b'][l])

    h = jnp.maximum(jnp.einsum('snf,fh->snh', x, params['fc1_w'], precision=hp)
                    + params['fc1_b'], 0.0)                       # (S, N, H)
    outs = []
    for n in range(N):                                            # attention per batch elem
        hb = h[:, n, :]
        for l in range(NUM_LAYERS):
            hb = encoder_layer(hb, l)
        outs.append(hb)
    h = jnp.stack(outs, axis=1)                                   # (S, N, H)
    last = h[:, -1, :]                                            # x[:, -1, :]
    return jnp.dot(last, params['fc2_w'], precision=hp) + params['fc2_b']


if __name__ == "__main__":
    key = jax.random.PRNGKey(0)
    pkey, xkey = jax.random.split(key)
    params = init_params(pkey)

    # x: (S, N, input_size) — PyTorch batch_first=False layout; output is (S, output_size).
    x = jax.random.normal(xkey, (SEQ, NBATCH, INPUT_SIZE), dtype=jnp.float32)

    out = transformer_forward(x, params)
    out = jax.block_until_ready(out)
    assert out.shape == (SEQ, OUTPUT_SIZE), out.shape

    ref = reference_forward(x, params)
    max_err = float(jnp.max(jnp.abs(out - ref)))
    assert jnp.allclose(out, ref, rtol=2e-2, atol=2e-2), max_err

    print("KERNEL_OK")
</pallas_src>

<mosaic_0001>
module attributes {stable_mosaic.version = 11 : i64} {
  func.func @transformer_kernel(%arg0: i32, %arg1: memref<8x6xf32, #tpu.memory_space<vmem>>, %arg2: memref<6x64xf32, #tpu.memory_space<vmem>>, %arg3: memref<1x64xf32, #tpu.memory_space<vmem>>, %arg4: memref<64x3xf32, #tpu.memory_space<vmem>>, %arg5: memref<1x3xf32, #tpu.memory_space<vmem>>, %arg6: memref<1x4x64x16xbf16, #tpu.memory_space<vmem>>, %arg7: memref<1x4x1x16xf32, #tpu.memory_space<vmem>>, %arg8: memref<1x4x64x16xbf16, #tpu.memory_space<vmem>>, %arg9: memref<1x4x1x16xf32, #tpu.memory_space<vmem>>, %arg10: memref<1x4x64x16xbf16, #tpu.memory_space<vmem>>, %arg11: memref<1x4x1x16xf32, #tpu.memory_space<vmem>>, %arg12: memref<1x4x16x64xbf16, #tpu.memory_space<vmem>>, %arg13: memref<1x1x64xf32, #tpu.memory_space<vmem>>, %arg14: memref<1x1x64xf32, #tpu.memory_space<vmem>>, %arg15: memref<1x1x64xf32, #tpu.memory_space<vmem>>, %arg16: memref<1x64x2048xbf16, #tpu.memory_space<vmem>>, %arg17: memref<1x1x2048xf32, #tpu.memory_space<vmem>>, %arg18: memref<1x2048x64xbf16, #tpu.memory_space<vmem>>, %arg19: memref<1x1x64xf32, #tpu.memory_space<vmem>>, %arg20: memref<1x1x64xf32, #tpu.memory_space<vmem>>, %arg21: memref<1x1x64xf32, #tpu.memory_space<vmem>>, %arg22: memref<8x3xf32, #tpu.memory_space<vmem>>, %arg23: memref<8x64xf32, #tpu.memory_space<vmem>>) attributes {dimension_semantics = [#tpu.dimension_semantics<arbitrary>], iteration_bounds = array<i64: 2>, scalar_prefetch = 0 : i64, scratch_operands = 1 : i64, tpu.core_type = #tpu.core_type<tc>, window_params = [{pipeline_mode = #tpu.pipeline_mode<synchronous>, transform_indices = @transform_0, window_bounds = array<i64: 8, 6>}, {pipeline_mode = #tpu.pipeline_mode<synchronous>, transform_indices = @transform_1, window_bounds = array<i64: 6, 64>}, {pipeline_mode = #tpu.pipeline_mode<synchronous>, transform_indices = @transform_2, window_bounds = array<i64: 1, 64>}, {pipeline_mode = #tpu.pipeline_mode<synchronous>, transform_indices = @transform_3, window_bounds = array<i64: 64, 3>}, {pipeline_mode = #tpu.pipeline_mode<synchronous>, transform_indices = @transform_4, window_bounds = array<i64: 1, 3>}, {transform_indices = @transform_5, window_bounds = array<i64: 1, 4, 64, 16>}, {transform_indices = @transform_6, window_bounds = array<i64: 1, 4, 1, 16>}, {transform_indices = @transform_7, window_bounds = array<i64: 1, 4, 64, 16>}, {transform_indices = @transform_8, window_bounds = array<i64: 1, 4, 1, 16>}, {transform_indices = @transform_9, window_bounds = array<i64: 1, 4, 64, 16>}, {transform_indices = @transform_10, window_bounds = array<i64: 1, 4, 1, 16>}, {transform_indices = @transform_11, window_bounds = array<i64: 1, 4, 16, 64>}, {transform_indices = @transform_12, window_bounds = array<i64: 1, 1, 64>}, {transform_indices = @transform_13, window_bounds = array<i64: 1, 1, 64>}, {transform_indices = @transform_14, window_bounds = array<i64: 1, 1, 64>}, {transform_indices = @transform_15, window_bounds = array<i64: 1, 64, 2048>}, {transform_indices = @transform_16, window_bounds = array<i64: 1, 1, 2048>}, {transform_indices = @transform_17, window_bounds = array<i64: 1, 2048, 64>}, {transform_indices = @transform_18, window_bounds = array<i64: 1, 1, 64>}, {transform_indices = @transform_19, window_bounds = array<i64: 1, 1, 64>}, {transform_indices = @transform_20, window_bounds = array<i64: 1, 1, 64>}, {pipeline_mode = #tpu.pipeline_mode<synchronous>, transform_indices = @transform_21, window_bounds = array<i64: 8, 3>}]} {
    %c0_i32 = arith.constant 0 : i32
    %0 = arith.cmpi eq, %arg0, %c0_i32 : i32
    %1 = arith.extui %0 : i1 to i32
    %c0_i32_0 = arith.constant 0 : i32
    %2 = arith.cmpi ne, %1, %c0_i32_0 : i32
    scf.if %2 {
      %c0_82 = arith.constant 0 : index
      %c0_83 = arith.constant 0 : index
      %127 = vector.load %arg1[%c0_82, %c0_83] : memref<8x6xf32, #tpu.memory_space<vmem>>, vector<8x6xf32>
      %c0_84 = arith.constant 0 : index
      %c0_85 = arith.constant 0 : index
      %128 = vector.load %arg2[%c0_84, %c0_85] : memref<6x64xf32, #tpu.memory_space<vmem>>, vector<6x64xf32>
      %cst_86 = arith.constant dense<0.000000e+00> : vector<8x64xf32>
      %129 = tpu.matmul %127, %128, %cst_86 {dimension_numbers = #tpu.dot_dimension_numbers<[1], [0], [0], [1], [0, 0, 1, 1], [], []>} : vector<8x6xf32>, vector<6x64xf32>, vector<8x64xf32> -> vector<8x64xf32>
      %c0_87 = arith.constant 0 : index
      %c0_88 = arith.constant 0 : index
      %130 = vector.load %arg3[%c0_87, %c0_88] : memref<1x64xf32, #tpu.memory_space<vmem>>, vector<1x64xf32>
      %131 = vector.broadcast %130 : vector<1x64xf32> to vector<8x64xf32>
      %132 = arith.addf %129, %131 : vector<8x64xf32>
      %cst_89 = arith.constant 0.000000e+00 : f32
      %133 = vector.broadcast %cst_89 : f32 to vector<8x64xf32>
      %134 = arith.maximumf %132, %133 : vector<8x64xf32>
      %c0_90 = arith.constant 0 : index
      %c0_91 = arith.constant 0 : index
      %135 = vector.load %arg23[%c0_90, %c0_91] : memref<8x64xf32, #tpu.memory_space<vmem>>, vector<8x64xf32>
      tpu.vector_store %arg23[%c0_90, %c0_91], %134 {strides = array<i32>} : memref<8x64xf32, #tpu.memory_space<vmem>>, vector<8x64xf32>,
    } else {
    }
    %c0 = arith.constant 0 : index
    %c0_1 = arith.constant 0 : index
    %3 = vector.load %arg23[%c0, %c0_1] : memref<8x64xf32, #tpu.memory_space<vmem>>, vector<8x64xf32>
    %4 = arith.truncf %3 : vector<8x64xf32> to vector<8x64xbf16>
    %5 = vector.shape_cast %4 : vector<8x64xbf16> to vector<1x8x64xbf16>
    %6 = vector.broadcast %5 : vector<1x8x64xbf16> to vector<4x8x64xbf16>
    %c0_2 = arith.constant 0 : index
    %c0_3 = arith.constant 0 : index
    %c0_4 = arith.constant 0 : index
    %c0_5 = arith.constant 0 : index
    %7 = vector.load %arg6[%c0_2, %c0_3, %c0_4, %c0_5] : memref<1x4x64x16xbf16, #tpu.memory_space<vmem>>, vector<1x4x64x16xbf16>
    %8 = vector.shape_cast %7 : vector<1x4x64x16xbf16> to vector<4x64x16xbf16>
    "tpu.trace_start"() <{level = 10 : i32, message = "hse,hed->hsd"}> : () -> ()
    %cst = arith.constant dense<0.000000e+00> : vector<4x8x16xf32>
    %9 = tpu.matmul %6, %8, %cst {dimension_numbers = #tpu.dot_dimension_numbers<[2], [1], [1], [2], [0, 0, 0, 1, 1, 2], [0], [0]>} : vector<4x8x64xbf16>, vector<4x64x16xbf16>, vector<4x8x16xf32> -> vector<4x8x16xf32>
    "tpu.trace_stop"() : () -> ()
    %c0_6 = arith.constant 0 : index
    %c0_7 = arith.constant 0 : index
    %c0_8 = arith.constant 0 : index
    %c0_9 = arith.constant 0 : index
    %10 = vector.load %arg7[%c0_6, %c0_7, %c0_8, %c0_9] : memref<1x4x1x16xf32, #tpu.memory_space<vmem>>, vector<1x4x1x16xf32>
    %11 = vector.shape_cast %10 : vector<1x4x1x16xf32> to vector<4x1x16xf32>
    %12 = vector.broadcast %11 : vector<4x1x16xf32> to vector<4x8x16xf32>
    %13 = arith.addf %9, %12 : vector<4x8x16xf32>
    %c0_10 = arith.constant 0 : index
    %c0_11 = arith.constant 0 : index
    %c0_12 = arith.constant 0 : index
    %c0_13 = arith.constant 0 : index
    %14 = vector.load %arg8[%c0_10, %c0_11, %c0_12, %c0_13] : memref<1x4x64x16xbf16, #tpu.memory_space<vmem>>, vector<1x4x64x16xbf16>
    %15 = vector.shape_cast %14 : vector<1x4x64x16xbf16> to vector<4x64x16xbf16>
    "tpu.trace_start"() <{level = 10 : i32, message = "hse,hed->hsd"}> : () -> ()
    %cst_14 = arith.constant dense<0.000000e+00> : vector<4x8x16xf32>
    %16 = tpu.matmul %6, %15, %cst_14 {dimension_numbers = #tpu.dot_dimension_numbers<[2], [1], [1], [2], [0, 0, 0, 1, 1, 2], [0], [0]>} : vector<4x8x64xbf16>, vector<4x64x16xbf16>, vector<4x8x16xf32> -> vector<4x8x16xf32>
    "tpu.trace_stop"() : () -> ()
    %c0_15 = arith.constant 0 : index
    %c0_16 = arith.constant 0 : index
    %c0_17 = arith.constant 0 : index
    %c0_18 = arith.constant 0 : index
    %17 = vector.load %arg9[%c0_15, %c0_16, %c0_17, %c0_18] : memref<1x4x1x16xf32, #tpu.memory_space<vmem>>, vector<1x4x1x16xf32>
    %18 = vector.shape_cast %17 : vector<1x4x1x16xf32> to vector<4x1x16xf32>
    %19 = vector.broadcast %18 : vector<4x1x16xf32> to vector<4x8x16xf32>
    %20 = arith.addf %16, %19 : vector<4x8x16xf32>
    %c0_19 = arith.constant 0 : index
    %c0_20 = arith.constant 0 : index
    %c0_21 = arith.constant 0 : index
    %c0_22 = arith.constant 0 : index
    %21 = vector.load %arg10[%c0_19, %c0_20, %c0_21, %c0_22] : memref<1x4x64x16xbf16, #tpu.memory_space<vmem>>, vector<1x4x64x16xbf16>
    %22 = vector.shape_cast %21 : vector<1x4x64x16xbf16> to vector<4x64x16xbf16>
    "tpu.trace_start"() <{level = 10 : i32, message = "hse,hed->hsd"}> : () -> ()
    %cst_23 = arith.constant dense<0.000000e+00> : vector<4x8x16xf32>
    %23 = tpu.matmul %6, %22, %cst_23 {dimension_numbers = #tpu.dot_dimension_numbers<[2], [1], [1], [2], [0, 0, 0, 1, 1, 2], [0], [0]>} : vector<4x8x64xbf16>, vector<4x64x16xbf16>, vector<4x8x16xf32> -> vector<4x8x16xf32>
    "tpu.trace_stop"() : () -> ()
    %c0_24 = arith.constant 0 : index
    %c0_25 = arith.constant 0 : index
    %c0_26 = arith.constant 0 : index
    %c0_27 = arith.constant 0 : index
    %24 = vector.load %arg11[%c0_24, %c0_25, %c0_26, %c0_27] : memref<1x4x1x16xf32, #tpu.memory_space<vmem>>, vector<1x4x1x16xf32>
    %25 = vector.shape_cast %24 : vector<1x4x1x16xf32> to vector<4x1x16xf32>
    %26 = vector.broadcast %25 : vector<4x1x16xf32> to vector<4x8x16xf32>
    %27 = arith.addf %23, %26 : vector<4x8x16xf32>
    "tpu.trace_start"() <{level = 10 : i32, message = "hqd,hkd->hqk"}> : () -> ()
    %cst_28 = arith.constant dense<0.000000e+00> : vector<4x8x8xf32>
    %28 = tpu.matmul %13, %20, %cst_28 {dimension_numbers = #tpu.dot_dimension_numbers<[2], [2], [1], [1], [0, 0, 0, 1, 1, 1], [0], [0]>} : vector<4x8x16xf32>, vector<4x8x16xf32>, vector<4x8x8xf32> -> vector<4x8x8xf32>
    "tpu.trace_stop"() : () -> ()
    %cst_29 = arith.constant 2.500000e-01 : f32
    %29 = vector.broadcast %cst_29 : f32 to vector<4x8x8xf32>
    %30 = arith.mulf %28, %29 : vector<4x8x8xf32>
    %cst_30 = arith.constant dense<0xFF800000> : vector<4x8xf32>
    %31 = vector.multi_reduction <maximumf>, %30, %cst_30 [2] : vector<4x8x8xf32> to vector<4x8xf32>
    %32 = vector.shape_cast %31 : vector<4x8xf32> to vector<4x8x1xf32>
    %33 = vector.broadcast %32 : vector<4x8x1xf32> to vector<4x8x8xf32>
    %34 = arith.subf %30, %33 : vector<4x8x8xf32>
    %35 = math.exp %34 : vector<4x8x8xf32>
    %cst_31 = arith.constant dense<0.000000e+00> : vector<4x8xf32>
    %36 = vector.multi_reduction <add>, %35, %cst_31 [2] : vector<4x8x8xf32> to vector<4x8xf32>
    %37 = vector.shape_cast %36 : vector<4x8xf32> to vector<4x8x1xf32>
    %38 = tpu.reciprocal %37 {approx = true} : vector<4x8x1xf32> -> vector<4x8x1xf32>
    %39 = vector.broadcast %38 : vector<4x8x1xf32> to vector<4x8x8xf32>
    %40 = arith.mulf %35, %39 : vector<4x8x8xf32>
    "tpu.trace_start"() <{level = 10 : i32, message = "hqk,hkd->hqd"}> : () -> ()
    %cst_32 = arith.constant dense<0.000000e+00> : vector<4x8x16xf32>
    %41 = tpu.matmul %40, %27, %cst_32 {dimension_numbers = #tpu.dot_dimension_numbers<[2], [1], [1], [2], [0, 0, 0, 1, 1, 2], [0], [0]>} : vector<4x8x8xf32>, vector<4x8x16xf32>, vector<4x8x16xf32> -> vector<4x8x16xf32>
    "tpu.trace_stop"() : () -> ()
    %42 = arith.truncf %41 : vector<4x8x16xf32> to vector<4x8x16xbf16>
    %c0_33 = arith.constant 0 : index
    %c0_34 = arith.constant 0 : index
    %c0_35 = arith.constant 0 : index
    %c0_36 = arith.constant 0 : index
    %43 = vector.load %arg12[%c0_33, %c0_34, %c0_35, %c0_36] : memref<1x4x16x64xbf16, #tpu.memory_space<vmem>>, vector<1x4x16x64xbf16>
    %44 = vector.shape_cast %43 : vector<1x4x16x64xbf16> to vector<4x16x64xbf16>
    "tpu.trace_start"() <{level = 10 : i32, message = "hqd,hdo->hqo"}> : () -> ()
    %cst_37 = arith.constant dense<0.000000e+00> : vector<4x8x64xf32>
    %45 = tpu.matmul %42, %44, %cst_37 {dimension_numbers = #tpu.dot_dimension_numbers<[2], [1], [1], [2], [0, 0, 0, 1, 1, 2], [0], [0]>} : vector<4x8x16xbf16>, vector<4x16x64xbf16>, vector<4x8x64xf32> -> vector<4x8x64xf32>
    "tpu.trace_stop"() : () -> ()
    %cst_38 = arith.constant dense<0.000000e+00> : vector<8x64xf32>
    %46 = vector.multi_reduction <add>, %45, %cst_38 [0] : vector<4x8x64xf32> to vector<8x64xf32>
    %c0_39 = arith.constant 0 : index
    %c0_40 = arith.constant 0 : index
    %c0_41 = arith.constant 0 : index
    %47 = vector.load %arg13[%c0_39, %c0_40, %c0_41] : memref<1x1x64xf32, #tpu.memory_space<vmem>>, vector<1x1x64xf32>
    %48 = vector.shape_cast %47 : vector<1x1x64xf32> to vector<1x64xf32>
    %49 = vector.broadcast %48 : vector<1x64xf32> to vector<8x64xf32>
    %50 = arith.addf %46, %49 : vector<8x64xf32>
    %51 = arith.addf %3, %50 : vector<8x64xf32>
    %c0_42 = arith.constant 0 : index
    %c0_43 = arith.constant 0 : index
    %c0_44 = arith.constant 0 : index
    %52 = vector.load %arg14[%c0_42, %c0_43, %c0_44] : memref<1x1x64xf32, #tpu.memory_space<vmem>>, vector<1x1x64xf32>
    %53 = vector.shape_cast %52 : vector<1x1x64xf32> to vector<1x64xf32>
    %c0_45 = arith.constant 0 : index
    %c0_46 = arith.constant 0 : index
    %c0_47 = arith.constant 0 : index
    %54 = vector.load %arg15[%c0_45, %c0_46, %c0_47] : memref<1x1x64xf32, #tpu.memory_space<vmem>>, vector<1x1x64xf32>
    %55 = vector.shape_cast %54 : vector<1x1x64xf32> to vector<1x64xf32>
    %cst_48 = arith.constant dense<0.000000e+00> : vector<8xf32>
    %56 = vector.multi_reduction <add>, %51, %cst_48 [1] : vector<8x64xf32> to vector<8xf32>
    %57 = vector.shape_cast %56 : vector<8xf32> to vector<8x1xf32>
    %cst_49 = arith.constant 6.400000e+01 : f32
    %58 = vector.broadcast %cst_49 : f32 to vector<8x1xf32>
    %59 = arith.divf %57, %58 : vector<8x1xf32>
    %60 = vector.broadcast %59 : vector<8x1xf32> to vector<8x64xf32>
    %61 = arith.subf %51, %60 : vector<8x64xf32>
    %62 = arith.mulf %61, %61 : vector<8x64xf32>
    %cst_50 = arith.constant dense<0.000000e+00> : vector<8xf32>
    %63 = vector.multi_reduction <add>, %62, %cst_50 [1] : vector<8x64xf32> to vector<8xf32>
    %64 = vector.shape_cast %63 : vector<8xf32> to vector<8x1xf32>
    %cst_51 = arith.constant 6.400000e+01 : f32
    %65 = vector.broadcast %cst_51 : f32 to vector<8x1xf32>
    %66 = arith.divf %64, %65 : vector<8x1xf32>
    %67 = vector.broadcast %59 : vector<8x1xf32> to vector<8x64xf32>
    %68 = arith.subf %51, %67 : vector<8x64xf32>
    %cst_52 = arith.constant 9.99999974E-6 : f32
    %69 = vector.broadcast %cst_52 : f32 to vector<8x1xf32>
    %70 = arith.addf %66, %69 : vector<8x1xf32>
    %71 = math.rsqrt %70 : vector<8x1xf32>
    %72 = vector.broadcast %71 : vector<8x1xf32> to vector<8x64xf32>
    %73 = arith.mulf %68, %72 : vector<8x64xf32>
    %74 = vector.broadcast %53 : vector<1x64xf32> to vector<8x64xf32>
    %75 = arith.mulf %73, %74 : vector<8x64xf32>
    %76 = vector.broadcast %55 : vector<1x64xf32> to vector<8x64xf32>
    %77 = arith.addf %75, %76 : vector<8x64xf32>
    %78 = arith.truncf %77 : vector<8x64xf32> to vector<8x64xbf16>
    %c0_53 = arith.constant 0 : index
    %c0_54 = arith.constant 0 : index
    %c0_55 = arith.constant 0 : index
    %79 = vector.load %arg16[%c0_53, %c0_54, %c0_55] : memref<1x64x2048xbf16, #tpu.memory_space<vmem>>, vector<1x64x2048xbf16>
    %80 = vector.shape_cast %79 : vector<1x64x2048xbf16> to vector<64x2048xbf16>
    %cst_56 = arith.constant dense<0.000000e+00> : vector<8x2048xf32>
    %81 = tpu.matmul %78, %80, %cst_56 {dimension_numbers = #tpu.dot_dimension_numbers<[1], [0], [0], [1], [0, 0, 1, 1], [], []>} : vector<8x64xbf16>, vector<64x2048xbf16>, vector<8x2048xf32> -> vector<8x2048xf32>
    %c0_57 = arith.constant 0 : index
    %c0_58 = arith.constant 0 : index
    %c0_59 = arith.constant 0 : index
    %82 = vector.load %arg17[%c0_57, %c0_58, %c0_59] : memref<1x1x2048xf32, #tpu.memory_space<vmem>>, vector<1x1x2048xf32>
    %83 = vector.shape_cast %82 : vector<1x1x2048xf32> to vector<1x2048xf32>
    %84 = vector.broadcast %83 : vector<1x2048xf32> to vector<8x2048xf32>
    %85 = arith.addf %81, %84 : vector<8x2048xf32>
    %cst_60 = arith.constant 0.000000e+00 : f32
    %86 = vector.broadcast %cst_60 : f32 to vector<8x2048xf32>
    %87 = arith.maximumf %85, %86 : vector<8x2048xf32>
    %88 = arith.truncf %87 : vector<8x2048xf32> to vector<8x2048xbf16>
    %c0_61 = arith.constant 0 : index
    %c0_62 = arith.constant 0 : index
    %c0_63 = arith.constant 0 : index
    %89 = vector.load %arg18[%c0_61, %c0_62, %c0_63] : memref<1x2048x64xbf16, #tpu.memory_space<vmem>>, vector<1x2048x64xbf16>
    %90 = vector.shape_cast %89 : vector<1x2048x64xbf16> to vector<2048x64xbf16>
    %cst_64 = arith.constant dense<0.000000e+00> : vector<8x64xf32>
    %91 = tpu.matmul %88, %90, %cst_64 {dimension_numbers = #tpu.dot_dimension_numbers<[1], [0], [0], [1], [0, 0, 1, 1], [], []>} : vector<8x2048xbf16>, vector<2048x64xbf16>, vector<8x64xf32> -> vector<8x64xf32>
    %c0_65 = arith.constant 0 : index
    %c0_66 = arith.constant 0 : index
    %c0_67 = arith.constant 0 : index
    %92 = vector.load %arg19[%c0_65, %c0_66, %c0_67] : memref<1x1x64xf32, #tpu.memory_space<vmem>>, vector<1x1x64xf32>
    %93 = vector.shape_cast %92 : vector<1x1x64xf32> to vector<1x64xf32>
    %94 = vector.broadcast %93 : vector<1x64xf32> to vector<8x64xf32>
    %95 = arith.addf %91, %94 : vector<8x64xf32>
    %96 = arith.addf %77, %95 : vector<8x64xf32>
    %c0_68 = arith.constant 0 : index
    %c0_69 = arith.constant 0 : index
    %c0_70 = arith.constant 0 : index
    %97 = vector.load %arg20[%c0_68, %c0_69, %c0_70] : memref<1x1x64xf32, #tpu.memory_space<vmem>>, vector<1x1x64xf32>
    %98 = vector.shape_cast %97 : vector<1x1x64xf32> to vector<1x64xf32>
    %c0_71 = arith.constant 0 : index
    %c0_72 = arith.constant 0 : index
    %c0_73 = arith.constant 0 : index
    %99 = vector.load %arg21[%c0_71, %c0_72, %c0_73] : memref<1x1x64xf32, #tpu.memory_space<vmem>>, vector<1x1x64xf32>
    %100 = vector.shape_cast %99 : vector<1x1x64xf32> to vector<1x64xf32>
    %cst_74 = arith.constant dense<0.000000e+00> : vector<8xf32>
    %101 = vector.multi_reduction <add>, %96, %cst_74 [1] : vector<8x64xf32> to vector<8xf32>
    %102 = vector.shape_cast %101 : vector<8xf32> to vector<8x1xf32>
    %cst_75 = arith.constant 6.400000e+01 : f32
    %103 = vector.broadcast %cst_75 : f32 to vector<8x1xf32>
    %104 = arith.divf %102, %103 : vector<8x1xf32>
    %105 = vector.broadcast %104 : vector<8x1xf32> to vector<8x64xf32>
    %106 = arith.subf %96, %105 : vector<8x64xf32>
    %107 = arith.mulf %106, %106 : vector<8x64xf32>
    %cst_76 = arith.constant dense<0.000000e+00> : vector<8xf32>
    %108 = vector.multi_reduction <add>, %107, %cst_76 [1] : vector<8x64xf32> to vector<8xf32>
    %109 = vector.shape_cast %108 : vector<8xf32> to vector<8x1xf32>
    %cst_77 = arith.constant 6.400000e+01 : f32
    %110 = vector.broadcast %cst_77 : f32 to vector<8x1xf32>
    %111 = arith.divf %109, %110 : vector<8x1xf32>
    %112 = vector.broadcast %104 : vector<8x1xf32> to vector<8x64xf32>
    %113 = arith.subf %96, %112 : vector<8x64xf32>
    %cst_78 = arith.constant 9.99999974E-6 : f32
    %114 = vector.broadcast %cst_78 : f32 to vector<8x1xf32>
    %115 = arith.addf %111, %114 : vector<8x1xf32>
    %116 = math.rsqrt %115 : vector<8x1xf32>
    %117 = vector.broadcast %116 : vector<8x1xf32> to vector<8x64xf32>
    %118 = arith.mulf %113, %117 : vector<8x64xf32>
    %119 = vector.broadcast %98 : vector<1x64xf32> to vector<8x64xf32>
    %120 = arith.mulf %118, %119 : vector<8x64xf32>
    %121 = vector.broadcast %100 : vector<1x64xf32> to vector<8x64xf32>
    %122 = arith.addf %120, %121 : vector<8x64xf32>
    %c0_79 = arith.constant 0 : index
    %c0_80 = arith.constant 0 : index
    %123 = vector.load %arg23[%c0_79, %c0_80] : memref<8x64xf32, #tpu.memory_space<vmem>>, vector<8x64xf32>
    tpu.vector_store %arg23[%c0_79, %c0_80], %122 {strides = array<i32>} : memref<8x64xf32, #tpu.memory_space<vmem>>, vector<8x64xf32>,
    %c1_i32 = arith.constant 1 : i32
    %124 = arith.cmpi eq, %arg0, %c1_i32 : i32
    %125 = arith.extui %124 : i1 to i32
    %c0_i32_81 = arith.constant 0 : i32
    %126 = arith.cmpi ne, %125, %c0_i32_81 : i32
    scf.if %126 {
      %c0_82 = arith.constant 0 : index
      %c0_83 = arith.constant 0 : index
      %127 = vector.load %arg4[%c0_82, %c0_83] : memref<64x3xf32, #tpu.memory_space<vmem>>, vector<64x3xf32>
      %cst_84 = arith.constant dense<0.000000e+00> : vector<8x3xf32>
      %128 = tpu.matmul %122, %127, %cst_84 {dimension_numbers = #tpu.dot_dimension_numbers<[1], [0], [0], [1], [0, 0, 1, 1], [], []>} : vector<8x64xf32>, vector<64x3xf32>, vector<8x3xf32> -> vector<8x3xf32>
      %c0_85 = arith.constant 0 : index
      %c0_86 = arith.constant 0 : index
      %129 = vector.load %arg5[%c0_85, %c0_86] : memref<1x3xf32, #tpu.memory_space<vmem>>, vector<1x3xf32>
      %130 = vector.broadcast %129 : vector<1x3xf32> to vector<8x3xf32>
      %131 = arith.addf %128, %130 : vector<8x3xf32>
      %c0_87 = arith.constant 0 : index
      %c0_88 = arith.constant 0 : index
      %132 = vector.load %arg22[%c0_87, %c0_88] : memref<8x3xf32, #tpu.memory_space<vmem>>, vector<8x3xf32>
      tpu.vector_store %arg22[%c0_87, %c0_88], %131 {strides = array<i32>} : memref<8x3xf32, #tpu.memory_space<vmem>>, vector<8x3xf32>,
    } else {
    }
    return
  }
  func.func @transform_0(%arg0: i32) -> (i32, i32) {
    %c0_i32 = arith.constant 0 : i32
    %c0_i32_0 = arith.constant 0 : i32
    %c0_i32_1 = arith.constant 0 : i32
    return %c0_i32, %c0_i32_0 : i32, i32
  }
  func.func @transform_1(%arg0: i32) -> (i32, i32) {
    %c0_i32 = arith.constant 0 : i32
    %c0_i32_0 = arith.constant 0 : i32
    %c0_i32_1 = arith.constant 0 : i32
    return %c0_i32, %c0_i32_0 : i32, i32
  }
  func.func @transform_2(%arg0: i32) -> (i32, i32) {
    %c0_i32 = arith.constant 0 : i32
    %c0_i32_0 = arith.constant 0 : i32
    %c0_i32_1 = arith.constant 0 : i32
    return %c0_i32, %c0_i32_0 : i32, i32
  }
  func.func @transform_3(%arg0: i32) -> (i32, i32) {
    %c0_i32 = arith.constant 0 : i32
    %c0_i32_0 = arith.constant 0 : i32
    %c0_i32_1 = arith.constant 0 : i32
    return %c0_i32, %c0_i32_0 : i32, i32
  }
  func.func @transform_4(%arg0: i32) -> (i32, i32) {
    %c0_i32 = arith.constant 0 : i32
    %c0_i32_0 = arith.constant 0 : i32
    %c0_i32_1 = arith.constant 0 : i32
    return %c0_i32, %c0_i32_0 : i32, i32
  }
  func.func @transform_5(%arg0: i32) -> (i32, i32, i32, i32) {
    %c0_i32 = arith.constant 0 : i32
    %c0_i32_0 = arith.constant 0 : i32
    %c0_i32_1 = arith.constant 0 : i32
    %c0_i32_2 = arith.constant 0 : i32
    return %arg0, %c0_i32, %c0_i32_0, %c0_i32_1 : i32, i32, i32, i32
  }
  func.func @transform_6(%arg0: i32) -> (i32, i32, i32, i32) {
    %c0_i32 = arith.constant 0 : i32
    %c0_i32_0 = arith.constant 0 : i32
    %c0_i32_1 = arith.constant 0 : i32
    %c0_i32_2 = arith.constant 0 : i32
    return %arg0, %c0_i32, %c0_i32_0, %c0_i32_1 : i32, i32, i32, i32
  }
  func.func @transform_7(%arg0: i32) -> (i32, i32, i32, i32) {
    %c0_i32 = arith.constant 0 : i32
    %c0_i32_0 = arith.constant 0 : i32
    %c0_i32_1 = arith.constant 0 : i32
    %c0_i32_2 = arith.constant 0 : i32
    return %arg0, %c0_i32, %c0_i32_0, %c0_i32_1 : i32, i32, i32, i32
  }
  func.func @transform_8(%arg0: i32) -> (i32, i32, i32, i32) {
    %c0_i32 = arith.constant 0 : i32
    %c0_i32_0 = arith.constant 0 : i32
    %c0_i32_1 = arith.constant 0 : i32
    %c0_i32_2 = arith.constant 0 : i32
    return %arg0, %c0_i32, %c0_i32_0, %c0_i32_1 : i32, i32, i32, i32
  }
  func.func @transform_9(%arg0: i32) -> (i32, i32, i32, i32) {
    %c0_i32 = arith.constant 0 : i32
    %c0_i32_0 = arith.constant 0 : i32
    %c0_i32_1 = arith.constant 0 : i32
    %c0_i32_2 = arith.constant 0 : i32
    return %arg0, %c0_i32, %c0_i32_0, %c0_i32_1 : i32, i32, i32, i32
  }
  func.func @transform_10(%arg0: i32) -> (i32, i32, i32, i32) {
    %c0_i32 = arith.constant 0 : i32
    %c0_i32_0 = arith.constant 0 : i32
    %c0_i32_1 = arith.constant 0 : i32
    %c0_i32_2 = arith.constant 0 : i32
    return %arg0, %c0_i32, %c0_i32_0, %c0_i32_1 : i32, i32, i32, i32
  }
  func.func @transform_11(%arg0: i32) -> (i32, i32, i32, i32) {
    %c0_i32 = arith.constant 0 : i32
    %c0_i32_0 = arith.constant 0 : i32
    %c0_i32_1 = arith.constant 0 : i32
    %c0_i32_2 = arith.constant 0 : i32
    return %arg0, %c0_i32, %c0_i32_0, %c0_i32_1 : i32, i32, i32, i32
  }
  func.func @transform_12(%arg0: i32) -> (i32, i32, i32) {
    %c0_i32 = arith.constant 0 : i32
    %c0_i32_0 = arith.constant 0 : i32
    %c0_i32_1 = arith.constant 0 : i32
    return %arg0, %c0_i32, %c0_i32_0 : i32, i32, i32
  }
  func.func @transform_13(%arg0: i32) -> (i32, i32, i32) {
    %c0_i32 = arith.constant 0 : i32
    %c0_i32_0 = arith.constant 0 : i32
    %c0_i32_1 = arith.constant 0 : i32
    return %arg0, %c0_i32, %c0_i32_0 : i32, i32, i32
  }
  func.func @transform_14(%arg0: i32) -> (i32, i32, i32) {
    %c0_i32 = arith.constant 0 : i32
    %c0_i32_0 = arith.constant 0 : i32
    %c0_i32_1 = arith.constant 0 : i32
    return %arg0, %c0_i32, %c0_i32_0 : i32, i32, i32
  }
  func.func @transform_15(%arg0: i32) -> (i32, i32, i32) {
    %c0_i32 = arith.constant 0 : i32
    %c0_i32_0 = arith.constant 0 : i32
    %c0_i32_1 = arith.constant 0 : i32
    return %arg0, %c0_i32, %c0_i32_0 : i32, i32, i32
  }
  func.func @transform_16(%arg0: i32) -> (i32, i32, i32) {
    %c0_i32 = arith.constant 0 : i32
    %c0_i32_0 = arith.constant 0 : i32
    %c0_i32_1 = arith.constant 0 : i32
    return %arg0, %c0_i32, %c0_i32_0 : i32, i32, i32
  }
  func.func @transform_17(%arg0: i32) -> (i32, i32, i32) {
    %c0_i32 = arith.constant 0 : i32
    %c0_i32_0 = arith.constant 0 : i32
    %c0_i32_1 = arith.constant 0 : i32
    return %arg0, %c0_i32, %c0_i32_0 : i32, i32, i32
  }
  func.func @transform_18(%arg0: i32) -> (i32, i32, i32) {
    %c0_i32 = arith.constant 0 : i32
    %c0_i32_0 = arith.constant 0 : i32
    %c0_i32_1 = arith.constant 0 : i32
    return %arg0, %c0_i32, %c0_i32_0 : i32, i32, i32
  }
  func.func @transform_19(%arg0: i32) -> (i32, i32, i32) {
    %c0_i32 = arith.constant 0 : i32
    %c0_i32_0 = arith.constant 0 : i32
    %c0_i32_1 = arith.constant 0 : i32
    return %arg0, %c0_i32, %c0_i32_0 : i32, i32, i32
  }
  func.func @transform_20(%arg0: i32) -> (i32, i32, i32) {
    %c0_i32 = arith.constant 0 : i32
    %c0_i32_0 = arith.constant 0 : i32
    %c0_i32_1 = arith.constant 0 : i32
    return %arg0, %c0_i32, %c0_i32_0 : i32, i32, i32
  }
  func.func @transform_21(%arg0: i32) -> (i32, i32) {
    %c0_i32 = arith.constant 0 : i32
    %c0_i32_0 = arith.constant 0 : i32
    %c0_i32_1 = arith.constant 0 : i32
    return %c0_i32, %c0_i32_0 : i32, i32
  }
}

</mosaic_0001>

<llo_original>
// kernel: tpu_custom_call.1
$region0: #{tpu_custom_call.1}
  #allocation0 [shape = 'u32[]', space=smem, size = 0x4, offset = 0x4, fixed_abs, tag = 'smem constant byte address 0x4 - core index']
  #allocation1 [shape = 'u32[144,128]{1,0:T(1,128)}', space=vmem, size = 0x12000, scoped, tag = 'internal scratch']
  #allocation2 [shape = 'f32[8,64]{1,0:T(8,128)}', space=vmem, size = 0x1000, scoped, tag = 'scratch operand']
  %s0 = inlined_call_operand.vmem [shape: f32[8,6], index: 0, kind: input, shape index: {}]
  %s1 = inlined_call_operand.vmem [shape: f32[6,64], index: 1, kind: input, shape index: {}]
  %s2 = inlined_call_operand.vmem [shape: f32[1,64], index: 2, kind: input, shape index: {}]
  %s3 = inlined_call_operand.vmem [shape: f32[64,3], index: 3, kind: input, shape index: {}]
  %s4 = inlined_call_operand.vmem [shape: f32[1,3], index: 4, kind: input, shape index: {}]
  %s5 = inlined_call_operand.vmem [shape: bf16[2,4,64,16], index: 5, kind: input, shape index: {}]
  %s6 = inlined_call_operand.vmem [shape: f32[2,4,1,16], index: 6, kind: input, shape index: {}]
  %s7 = inlined_call_operand.vmem [shape: bf16[2,4,64,16], index: 7, kind: input, shape index: {}]
  %s8 = inlined_call_operand.vmem [shape: f32[2,4,1,16], index: 8, kind: input, shape index: {}]
  %s9 = inlined_call_operand.vmem [shape: bf16[2,4,64,16], index: 9, kind: input, shape index: {}]
  %s10 = inlined_call_operand.vmem [shape: f32[2,4,1,16], index: 10, kind: input, shape index: {}]
  %s11 = inlined_call_operand.vmem [shape: bf16[2,4,16,64], index: 11, kind: input, shape index: {}]
  %s12 = inlined_call_operand.vmem [shape: f32[2,1,64], index: 12, kind: input, shape index: {}]
  %s13 = inlined_call_operand.vmem [shape: f32[2,1,64], index: 13, kind: input, shape index: {}]
  %s14 = inlined_call_operand.vmem [shape: f32[2,1,64], index: 14, kind: input, shape index: {}]
  %s15 = inlined_call_operand.vmem [shape: bf16[2,64,2048], index: 15, kind: input, shape index: {}]
  %s16 = inlined_call_operand.vmem [shape: f32[2,1,2048], index: 16, kind: input, shape index: {}]
  %s17 = inlined_call_operand.vmem [shape: bf16[2,2048,64], index: 17, kind: input, shape index: {}]
  %s18 = inlined_call_operand.vmem [shape: f32[2,1,64], index: 18, kind: input, shape index: {}]
  %s19 = inlined_call_operand.vmem [shape: f32[2,1,64], index: 19, kind: input, shape index: {}]
  %s20 = inlined_call_operand.vmem [shape: f32[2,1,64], index: 20, kind: input, shape index: {}]
  %s21 = inlined_call_operand.vmem [shape: f32[8,3], index: 21, kind: output, shape index: {}]
  %s22 = sld [smem:[#allocation0]]
  $region125: #{tpu_custom_call.1} parent=0
    _
  %s24 = ssub.s32 1, %s22
  %s25 = scalar_select 0, %s24, %s22
  loop: start=0, step=1, limit=4
  $region2: #{tpu_custom_call.1} parent=0 // loop_pre_header
    _
  $region3: #{tpu_custom_call.1} parent=0 // loop_header
    %s27 = sphi 0, %s31
    %p28 = scmp.ge.s32.totalorder %s27, 4
    %s35 = sphi 0, %s35
    %s37 = sphi 0, %s35
    %s38 = sphi 0, %s37
    %s52 = sphi 0, %s38
    %s56 = sphi 0, %s56
    %s58 = sphi 0, %s56
    %s59 = sphi 0, %s58
    %s73 = sphi 0, %s59
    %s77 = sphi 0, %s77
    %s79 = sphi 0, %s77
    %s80 = sphi 0, %s79
    %s94 = sphi 0, %s80
    %s98 = sphi 0, %s98
    %s100 = sphi 0, %s98
    %s101 = sphi 0, %s100
    %s115 = sphi 0, %s101
    %s119 = sphi 0, %s119
    %s121 = sphi 0, %s119
    %s122 = sphi 0, %s121
    %s136 = sphi 0, %s122
    %s142 = sphi 0, %s144
    %s145 = sphi 0, %s142
    %s146 = sphi 0, %s145
    %s162 = sphi 0, %s146
    %s168 = sphi 0, %s170
    %s171 = sphi 0, %s168
    %s172 = sphi 0, %s171
    %s188 = sphi 0, %s172
    %s194 = sphi 0, %s196
    %s197 = sphi 0, %s194
    %s198 = sphi 0, %s197
    %s214 = sphi 0, %s198
    %s220 = sphi 0, %s222
    %s223 = sphi 0, %s220
    %s224 = sphi 0, %s223
    %s240 = sphi 0, %s224
    %s246 = sphi 0, %s248
    %s249 = sphi 0, %s246
    %s250 = sphi 0, %s249
    %s266 = sphi 0, %s250
    %s272 = sphi 0, %s274
    %s275 = sphi 0, %s272
    %s276 = sphi 0, %s275
    %s292 = sphi 0, %s276
    %s298 = sphi 0, %s300
    %s301 = sphi 0, %s298
    %s302 = sphi 0, %s301
    %s318 = sphi 0, %s302
    %s324 = sphi 0, %s326
    %s327 = sphi 0, %s324
    %s328 = sphi 0, %s327
    %s344 = sphi 0, %s328
    %s350 = sphi 0, %s352
    %s353 = sphi 0, %s350
    %s354 = sphi 0, %s353
    %s370 = sphi 0, %s354
    %s376 = sphi 0, %s378
    %s379 = sphi 0, %s376
    %s380 = sphi 0, %s379
    %s396 = sphi 0, %s380
    %s402 = sphi 0, %s404
    %s405 = sphi 0, %s402
    %s406 = sphi 0, %s405
    %s422 = sphi 0, %s406
    %s428 = sphi 0, %s430
    %s431 = sphi 0, %s428
    %s432 = sphi 0, %s431
    %s448 = sphi 0, %s432
    %s454 = sphi 0, %s456
    %s457 = sphi 0, %s454
    %s458 = sphi 0, %s457
    %s474 = sphi 0, %s458
    %s480 = sphi 0, %s482
    %s483 = sphi 0, %s480
    %s484 = sphi 0, %s483
    %s500 = sphi 0, %s484
    %s506 = sphi 0, %s508
    %s509 = sphi 0, %s506
    %s510 = sphi 0, %s509
    %s526 = sphi 0, %s510
    %s532 = sphi 0, %s534
    %s535 = sphi 0, %s532
    %s536 = sphi 0, %s535
    %s552 = sphi 0, %s536
    %s556 = sphi 0, %s556
    %s558 = sphi 0, %s556
    %s559 = sphi 0, %s558
    %s573 = sphi 0, %s559
  $region4: #{tpu_custom_call.1} parent=0 // loop_header_branch
    %30 = sbr.rel (%p28) target = $region8
  $region5: #{tpu_custom_call.1} parent=0 // loop_body
    %s32 = ssub.s32 %s27, 1
    %s33 = ssub.s32 %s27, 2
    %s34 = sadd.s32 %s27, 1
    %s36 = sadd.s32 %s35, 1
    %p39 = scmp.eq.s32.totalorder %s27, 1
    %p40 = scmp.ne.s32.totalorder %s35, %s37
    %p41 = scmp.eq.s32.totalorder %s27, 0
    %p42 = por %p40, %p41
    %p43 = scmp.ne.s32.totalorder %s35, %s37
    %p44 = scmp.eq.s32.totalorder %s32, 1
    %p45 = por %p43, %p44
    %p46 = scmp.ne.s32.totalorder %s37, %s38
    %p47 = scmp.eq.s32.totalorder %s32, 0
    %p48 = por %p46, %p47
    %p49 = scmp.ne.s32.totalorder %s37, %s38
    %p50 = scmp.eq.s32.totalorder %s33, 1
    %p51 = por %p49, %p50
    %p53 = scmp.ne.s32.totalorder %s38, %s52
    %p54 = scmp.eq.s32.totalorder %s33, 0
    %p55 = por %p53, %p54
    %s57 = sadd.s32 %s56, 1
    %p60 = scmp.eq.s32.totalorder %s27, 1
    %p61 = scmp.ne.s32.totalorder %s56, %s58
    %p62 = scmp.eq.s32.totalorder %s27, 0
    %p63 = por %p61, %p62
    %p64 = scmp.ne.s32.totalorder %s56, %s58
    %p65 = scmp.eq.s32.totalorder %s32, 1
    %p66 = por %p64, %p65
    %p67 = scmp.ne.s32.totalorder %s58, %s59
    %p68 = scmp.eq.s32.totalorder %s32, 0
    %p69 = por %p67, %p68
    %p70 = scmp.ne.s32.totalorder %s58, %s59
    %p71 = scmp.eq.s32.totalorder %s33, 1
    %p72 = por %p70, %p71
    %p74 = scmp.ne.s32.totalorder %s59, %s73
    %p75 = scmp.eq.s32.totalorder %s33, 0
    %p76 = por %p74, %p75
    %s78 = sadd.s32 %s77, 1
    %p81 = scmp.eq.s32.totalorder %s27, 1
    %p82 = scmp.ne.s32.totalorder %s77, %s79
    %p83 = scmp.eq.s32.totalorder %s27, 0
    %p84 = por %p82, %p83
    %p85 = scmp.ne.s32.totalorder %s77, %s79
    %p86 = scmp.eq.s32.totalorder %s32, 1
    %p87 = por %p85, %p86
    %p88 = scmp.ne.s32.totalorder %s79, %s80
    %p89 = scmp.eq.s32.totalorder %s32, 0
    %p90 = por %p88, %p89
    %p91 = scmp.ne.s32.totalorder %s79, %s80
    %p92 = scmp.eq.s32.totalorder %s33, 1
    %p93 = por %p91, %p92
    %p95 = scmp.ne.s32.totalorder %s80, %s94
    %p96 = scmp.eq.s32.totalorder %s33, 0
    %p97 = por %p95, %p96
    %s99 = sadd.s32 %s98, 1
    %p102 = scmp.eq.s32.totalorder %s27, 1
    %p103 = scmp.ne.s32.totalorder %s98, %s100
    %p104 = scmp.eq.s32.totalorder %s27, 0
    %p105 = por %p103, %p104
    %p106 = scmp.ne.s32.totalorder %s98, %s100
    %p107 = scmp.eq.s32.totalorder %s32, 1
    %p108 = por %p106, %p107
    %p109 = scmp.ne.s32.totalorder %s100, %s101
    %p110 = scmp.eq.s32.totalorder %s32, 0
    %p111 = por %p109, %p110
    %p112 = scmp.ne.s32.totalorder %s100, %s101
    %p113 = scmp.eq.s32.totalorder %s33, 1
    %p114 = por %p112, %p113
    %p116 = scmp.ne.s32.totalorder %s101, %s115
    %p117 = scmp.eq.s32.totalorder %s33, 0
    %p118 = por %p116, %p117
    %s120 = sadd.s32 %s119, 1
    %p123 = scmp.eq.s32.totalorder %s27, 1
    %p124 = scmp.ne.s32.totalorder %s119, %s121
    %p125 = scmp.eq.s32.totalorder %s27, 0
    %p126 = por %p124, %p125
    %p127 = scmp.ne.s32.totalorder %s119, %s121
    %p128 = scmp.eq.s32.totalorder %s32, 1
    %p129 = por %p127, %p128
    %p130 = scmp.ne.s32.totalorder %s121, %s122
    %p131 = scmp.eq.s32.totalorder %s32, 0
    %p132 = por %p130, %p131
    %p133 = scmp.ne.s32.totalorder %s121, %s122
    %p134 = scmp.eq.s32.totalorder %s33, 1
    %p135 = por %p133, %p134
    %p137 = scmp.ne.s32.totalorder %s122, %s136
    %p138 = scmp.eq.s32.totalorder %s33, 0
    %p139 = por %p137, %p138
    %s140 = ssub.s32 %s27, %s34
    %p141 = scmp.eq.s32.totalorder %s140, 0
    %s143 = sadd.s32 %s142, 1
    %s144 = scalar_select %p141, %s142, %s143
    %p147 = pneg %p141
    %p148 = scmp.eq.s32.totalorder %s27, 1
    %p149 = por %p147, %p148
    %p150 = scmp.ne.s32.totalorder %s142, %s145
    %p151 = scmp.eq.s32.totalorder %s27, 0
    %p152 = por %p150, %p151
    %p153 = scmp.ne.s32.totalorder %s142, %s145
    %p154 = scmp.eq.s32.totalorder %s32, 1
    %p155 = por %p153, %p154
    %p156 = scmp.ne.s32.totalorder %s145, %s146
    %p157 = scmp.eq.s32.totalorder %s32, 0
    %p158 = por %p156, %p157
    %p159 = scmp.ne.s32.totalorder %s145, %s146
    %p160 = scmp.eq.s32.totalorder %s33, 1
    %p161 = por %p159, %p160
    %p163 = scmp.ne.s32.totalorder %s146, %s162
    %p164 = scmp.eq.s32.totalorder %s33, 0
    %p165 = por %p163, %p164
    %s166 = ssub.s32 %s27, %s34
    %p167 = scmp.eq.s32.totalorder %s166, 0
    %s169 = sadd.s32 %s168, 1
    %s170 = scalar_select %p167, %s168, %s169
    %p173 = pneg %p167
    %p174 = scmp.eq.s32.totalorder %s27, 1
    %p175 = por %p173, %p174
    %p176 = scmp.ne.s32.totalorder %s168, %s171
    %p177 = scmp.eq.s32.totalorder %s27, 0
    %p178 = por %p176, %p177
    %p179 = scmp.ne.s32.totalorder %s168, %s171
    %p180 = scmp.eq.s32.totalorder %s32, 1
    %p181 = por %p179, %p180
    %p182 = scmp.ne.s32.totalorder %s171, %s172
    %p183 = scmp.eq.s32.totalorder %s32, 0
    %p184 = por %p182, %p183
    %p185 = scmp.ne.s32.totalorder %s171, %s172
    %p186 = scmp.eq.s32.totalorder %s33, 1
    %p187 = por %p185, %p186
    %p189 = scmp.ne.s32.totalorder %s172, %s188
    %p190 = scmp.eq.s32.totalorder %s33, 0
    %p191 = por %p189, %p190
    %s192 = ssub.s32 %s27, %s34
    %p193 = scmp.eq.s32.totalorder %s192, 0
    %s195 = sadd.s32 %s194, 1
    %s196 = scalar_select %p193, %s194, %s195
    %p199 = pneg %p193
    %p200 = scmp.eq.s32.totalorder %s27, 1
    %p201 = por %p199, %p200
    %p202 = scmp.ne.s32.totalorder %s194, %s197
    %p203 = scmp.eq.s32.totalorder %s27, 0
    %p204 = por %p202, %p203
    %p205 = scmp.ne.s32.totalorder %s194, %s197
    %p206 = scmp.eq.s32.totalorder %s32, 1
    %p207 = por %p205, %p206
    %p208 = scmp.ne.s32.totalorder %s197, %s198
    %p209 = scmp.eq.s32.totalorder %s32, 0
    %p210 = por %p208, %p209
    %p211 = scmp.ne.s32.totalorder %s197, %s198
    %p212 = scmp.eq.s32.totalorder %s33, 1
    %p213 = por %p211, %p212
    %p215 = scmp.ne.s32.totalorder %s198, %s214
    %p216 = scmp.eq.s32.totalorder %s33, 0
    %p217 = por %p215, %p216
    %s218 = ssub.s32 %s27, %s34
    %p219 = scmp.eq.s32.totalorder %s218, 0
    %s221 = sadd.s32 %s220, 1
    %s222 = scalar_select %p219, %s220, %s221
    %p225 = pneg %p219
    %p226 = scmp.eq.s32.totalorder %s27, 1
    %p227 = por %p225, %p226
    %p228 = scmp.ne.s32.totalorder %s220, %s223
    %p229 = scmp.eq.s32.totalorder %s27, 0
    %p230 = por %p228, %p229
    %p231 = scmp.ne.s32.totalorder %s220, %s223
    %p232 = scmp.eq.s32.totalorder %s32, 1
    %p233 = por %p231, %p232
    %p234 = scmp.ne.s32.totalorder %s223, %s224
    %p235 = scmp.eq.s32.totalorder %s32, 0
    %p236 = por %p234, %p235
    %p237 = scmp.ne.s32.totalorder %s223, %s224
    %p238 = scmp.eq.s32.totalorder %s33, 1
    %p239 = por %p237, %p238
    %p241 = scmp.ne.s32.totalorder %s224, %s240
    %p242 = scmp.eq.s32.totalorder %s33, 0
    %p243 = por %p241, %p242
    %s244 = ssub.s32 %s27, %s34
    %p245 = scmp.eq.s32.totalorder %s244, 0
    %s247 = sadd.s32 %s246, 1
    %s248 = scalar_select %p245, %s246, %s247
    %p251 = pneg %p245
    %p252 = scmp.eq.s32.totalorder %s27, 1
    %p253 = por %p251, %p252
    %p254 = scmp.ne.s32.totalorder %s246, %s249
    %p255 = scmp.eq.s32.totalorder %s27, 0
    %p256 = por %p254, %p255
    %p257 = scmp.ne.s32.totalorder %s246, %s249
    %p258 = scmp.eq.s32.totalorder %s32, 1
    %p259 = por %p257, %p258
    %p260 = scmp.ne.s32.totalorder %s249, %s250
    %p261 = scmp.eq.s32.totalorder %s32, 0
    %p262 = por %p260, %p261
    %p263 = scmp.ne.s32.totalorder %s249, %s250
    %p264 = scmp.eq.s32.totalorder %s33, 1
    %p265 = por %p263, %p264
    %p267 = scmp.ne.s32.totalorder %s250, %s266
    %p268 = scmp.eq.s32.totalorder %s33, 0
    %p269 = por %p267, %p268
    %s270 = ssub.s32 %s27, %s34
    %p271 = scmp.eq.s32.totalorder %s270, 0
    %s273 = sadd.s32 %s272, 1
    %s274 = scalar_select %p271, %s272, %s273
    %p277 = pneg %p271
    %p278 = scmp.eq.s32.totalorder %s27, 1
    %p279 = por %p277, %p278
    %p280 = scmp.ne.s32.totalorder %s272, %s275
    %p281 = scmp.eq.s32.totalorder %s27, 0
    %p282 = por %p280, %p281
    %p283 = scmp.ne.s32.totalorder %s272, %s275
    %p284 = scmp.eq.s32.totalorder %s32, 1
    %p285 = por %p283, %p284
    %p286 = scmp.ne.s32.totalorder %s275, %s276
    %p287 = scmp.eq.s32.totalorder %s32, 0
    %p288 = por %p286, %p287
    %p289 = scmp.ne.s32.totalorder %s275, %s276
    %p290 = scmp.eq.s32.totalorder %s33, 1
    %p291 = por %p289, %p290
    %p293 = scmp.ne.s32.totalorder %s276, %s292
    %p294 = scmp.eq.s32.totalorder %s33, 0
    %p295 = por %p293, %p294
    %s296 = ssub.s32 %s27, %s34
    %p297 = scmp.eq.s32.totalorder %s296, 0
    %s299 = sadd.s32 %s298, 1
    %s300 = scalar_select %p297, %s298, %s299
    %p303 = pneg %p297
    %p304 = scmp.eq.s32.totalorder %s27, 1
    %p305 = por %p303, %p304
    %p306 = scmp.ne.s32.totalorder %s298, %s301
    %p307 = scmp.eq.s32.totalorder %s27, 0
    %p308 = por %p306, %p307
    %p309 = scmp.ne.s32.totalorder %s298, %s301
    %p310 = scmp.eq.s32.totalorder %s32, 1
    %p311 = por %p309, %p310
    %p312 = scmp.ne.s32.totalorder %s301, %s302
    %p313 = scmp.eq.s32.totalorder %s32, 0
    %p314 = por %p312, %p313
    %p315 = scmp.ne.s32.totalorder %s301, %s302
    %p316 = scmp.eq.s32.totalorder %s33, 1
    %p317 = por %p315, %p316
    %p319 = scmp.ne.s32.totalorder %s302, %s318
    %p320 = scmp.eq.s32.totalorder %s33, 0
    %p321 = por %p319, %p320
    %s322 = ssub.s32 %s27, %s34
    %p323 = scmp.eq.s32.totalorder %s322, 0
    %s325 = sadd.s32 %s324, 1
    %s326 = scalar_select %p323, %s324, %s325
    %p329 = pneg %p323
    %p330 = scmp.eq.s32.totalorder %s27, 1
    %p331 = por %p329, %p330
    %p332 = scmp.ne.s32.totalorder %s324, %s327
    %p333 = scmp.eq.s32.totalorder %s27, 0
    %p334 = por %p332, %p333
    %p335 = scmp.ne.s32.totalorder %s324, %s327
    %p336 = scmp.eq.s32.totalorder %s32, 1
    %p337 = por %p335, %p336
    %p338 = scmp.ne.s32.totalorder %s327, %s328
    %p339 = scmp.eq.s32.totalorder %s32, 0
    %p340 = por %p338, %p339
    %p341 = scmp.ne.s32.totalorder %s327, %s328
    %p342 = scmp.eq.s32.totalorder %s33, 1
    %p343 = por %p341, %p342
    %p345 = scmp.ne.s32.totalorder %s328, %s344
    %p346 = scmp.eq.s32.totalorder %s33, 0
    %p347 = por %p345, %p346
    %s348 = ssub.s32 %s27, %s34
    %p349 = scmp.eq.s32.totalorder %s348, 0
    %s351 = sadd.s32 %s350, 1
    %s352 = scalar_select %p349, %s350, %s351
    %p355 = pneg %p349
    %p356 = scmp.eq.s32.totalorder %s27, 1
    %p357 = por %p355, %p356
    %p358 = scmp.ne.s32.totalorder %s350, %s353
    %p359 = scmp.eq.s32.totalorder %s27, 0
    %p360 = por %p358, %p359
    %p361 = scmp.ne.s32.totalorder %s350, %s353
    %p362 = scmp.eq.s32.totalorder %s32, 1
    %p363 = por %p361, %p362
    %p364 = scmp.ne.s32.totalorder %s353, %s354
    %p365 = scmp.eq.s32.totalorder %s32, 0
    %p366 = por %p364, %p365
    %p367 = scmp.ne.s32.totalorder %s353, %s354
    %p368 = scmp.eq.s32.totalorder %s33, 1
    %p369 = por %p367, %p368
    %p371 = scmp.ne.s32.totalorder %s354, %s370
    %p372 = scmp.eq.s32.totalorder %s33, 0
    %p373 = por %p371, %p372
    %s374 = ssub.s32 %s27, %s34
    %p375 = scmp.eq.s32.totalorder %s374, 0
    %s377 = sadd.s32 %s376, 1
    %s378 = scalar_select %p375, %s376, %s377
    %p381 = pneg %p375
    %p382 = scmp.eq.s32.totalorder %s27, 1
    %p383 = por %p381, %p382
    %p384 = scmp.ne.s32.totalorder %s376, %s379
    %p385 = scmp.eq.s32.totalorder %s27, 0
    %p386 = por %p384, %p385
    %p387 = scmp.ne.s32.totalorder %s376, %s379
    %p388 = scmp.eq.s32.totalorder %s32, 1
    %p389 = por %p387, %p388
    %p390 = scmp.ne.s32.totalorder %s379, %s380
    %p391 = scmp.eq.s32.totalorder %s32, 0
    %p392 = por %p390, %p391
    %p393 = scmp.ne.s32.totalorder %s379, %s380
    %p394 = scmp.eq.s32.totalorder %s33, 1
    %p395 = por %p393, %p394
    %p397 = scmp.ne.s32.totalorder %s380, %s396
    %p398 = scmp.eq.s32.totalorder %s33, 0
    %p399 = por %p397, %p398
    %s400 = ssub.s32 %s27, %s34
    %p401 = scmp.eq.s32.totalorder %s400, 0
    %s403 = sadd.s32 %s402, 1
    %s404 = scalar_select %p401, %s402, %s403
    %p407 = pneg %p401
    %p408 = scmp.eq.s32.totalorder %s27, 1
    %p409 = por %p407, %p408
    %p410 = scmp.ne.s32.totalorder %s402, %s405
    %p411 = scmp.eq.s32.totalorder %s27, 0
    %p412 = por %p410, %p411
    %p413 = scmp.ne.s32.totalorder %s402, %s405
    %p414 = scmp.eq.s32.totalorder %s32, 1
    %p415 = por %p413, %p414
    %p416 = scmp.ne.s32.totalorder %s405, %s406
    %p417 = scmp.eq.s32.totalorder %s32, 0
    %p418 = por %p416, %p417
    %p419 = scmp.ne.s32.totalorder %s405, %s406
    %p420 = scmp.eq.s32.totalorder %s33, 1
    %p421 = por %p419, %p420
    %p423 = scmp.ne.s32.totalorder %s406, %s422
    %p424 = scmp.eq.s32.totalorder %s33, 0
    %p425 = por %p423, %p424
    %s426 = ssub.s32 %s27, %s34
    %p427 = scmp.eq.s32.totalorder %s426, 0
    %s429 = sadd.s32 %s428, 1
    %s430 = scalar_select %p427, %s428, %s429
    %p433 = pneg %p427
    %p434 = scmp.eq.s32.totalorder %s27, 1
    %p435 = por %p433, %p434
    %p436 = scmp.ne.s32.totalorder %s428, %s431
    %p437 = scmp.eq.s32.totalorder %s27, 0
    %p438 = por %p436, %p437
    %p439 = scmp.ne.s32.totalorder %s428, %s431
    %p440 = scmp.eq.s32.totalorder %s32, 1
    %p441 = por %p439, %p440
    %p442 = scmp.ne.s32.totalorder %s431, %s432
    %p443 = scmp.eq.s32.totalorder %s32, 0
    %p444 = por %p442, %p443
    %p445 = scmp.ne.s32.totalorder %s431, %s432
    %p446 = scmp.eq.s32.totalorder %s33, 1
    %p447 = por %p445, %p446
    %p449 = scmp.ne.s32.totalorder %s432, %s448
    %p450 = scmp.eq.s32.totalorder %s33, 0
    %p451 = por %p449, %p450
    %s452 = ssub.s32 %s27, %s34
    %p453 = scmp.eq.s32.totalorder %s452, 0
    %s455 = sadd.s32 %s454, 1
    %s456 = scalar_select %p453, %s454, %s455
    %p459 = pneg %p453
    %p460 = scmp.eq.s32.totalorder %s27, 1
    %p461 = por %p459, %p460
    %p462 = scmp.ne.s32.totalorder %s454, %s457
    %p463 = scmp.eq.s32.totalorder %s27, 0
    %p464 = por %p462, %p463
    %p465 = scmp.ne.s32.totalorder %s454, %s457
    %p466 = scmp.eq.s32.totalorder %s32, 1
    %p467 = por %p465, %p466
    %p468 = scmp.ne.s32.totalorder %s457, %s458
    %p469 = scmp.eq.s32.totalorder %s32, 0
    %p470 = por %p468, %p469
    %p471 = scmp.ne.s32.totalorder %s457, %s458
    %p472 = scmp.eq.s32.totalorder %s33, 1
    %p473 = por %p471, %p472
    %p475 = scmp.ne.s32.totalorder %s458, %s474
    %p476 = scmp.eq.s32.totalorder %s33, 0
    %p477 = por %p475, %p476
    %s478 = ssub.s32 %s27, %s34
    %p479 = scmp.eq.s32.totalorder %s478, 0
    %s481 = sadd.s32 %s480, 1
    %s482 = scalar_select %p479, %s480, %s481
    %p485 = pneg %p479
    %p486 = scmp.eq.s32.totalorder %s27, 1
    %p487 = por %p485, %p486
    %p488 = scmp.ne.s32.totalorder %s480, %s483
    %p489 = scmp.eq.s32.totalorder %s27, 0
    %p490 = por %p488, %p489
    %p491 = scmp.ne.s32.totalorder %s480, %s483
    %p492 = scmp.eq.s32.totalorder %s32, 1
    %p493 = por %p491, %p492
    %p494 = scmp.ne.s32.totalorder %s483, %s484
    %p495 = scmp.eq.s32.totalorder %s32, 0
    %p496 = por %p494, %p495
    %p497 = scmp.ne.s32.totalorder %s483, %s484
    %p498 = scmp.eq.s32.totalorder %s33, 1
    %p499 = por %p497, %p498
    %p501 = scmp.ne.s32.totalorder %s484, %s500
    %p502 = scmp.eq.s32.totalorder %s33, 0
    %p503 = por %p501, %p502
    %s504 = ssub.s32 %s27, %s34
    %p505 = scmp.eq.s32.totalorder %s504, 0
    %s507 = sadd.s32 %s506, 1
    %s508 = scalar_select %p505, %s506, %s507
    %p511 = pneg %p505
    %p512 = scmp.eq.s32.totalorder %s27, 1
    %p513 = por %p511, %p512
    %p514 = scmp.ne.s32.totalorder %s506, %s509
    %p515 = scmp.eq.s32.totalorder %s27, 0
    %p516 = por %p514, %p515
    %p517 = scmp.ne.s32.totalorder %s506, %s509
    %p518 = scmp.eq.s32.totalorder %s32, 1
    %p519 = por %p517, %p518
    %p520 = scmp.ne.s32.totalorder %s509, %s510
    %p521 = scmp.eq.s32.totalorder %s32, 0
    %p522 = por %p520, %p521
    %p523 = scmp.ne.s32.totalorder %s509, %s510
    %p524 = scmp.eq.s32.totalorder %s33, 1
    %p525 = por %p523, %p524
    %p527 = scmp.ne.s32.totalorder %s510, %s526
    %p528 = scmp.eq.s32.totalorder %s33, 0
    %p529 = por %p527, %p528
    %s530 = ssub.s32 %s27, %s34
    %p531 = scmp.eq.s32.totalorder %s530, 0
    %s533 = sadd.s32 %s532, 1
    %s534 = scalar_select %p531, %s532, %s533
    %p537 = pneg %p531
    %p538 = scmp.eq.s32.totalorder %s27, 1
    %p539 = por %p537, %p538
    %p540 = scmp.ne.s32.totalorder %s532, %s535
    %p541 = scmp.eq.s32.totalorder %s27, 0
    %p542 = por %p540, %p541
    %p543 = scmp.ne.s32.totalorder %s532, %s535
    %p544 = scmp.eq.s32.totalorder %s32, 1
    %p545 = por %p543, %p544
    %p546 = scmp.ne.s32.totalorder %s535, %s536
    %p547 = scmp.eq.s32.totalorder %s32, 0
    %p548 = por %p546, %p547
    %p549 = scmp.ne.s32.totalorder %s535, %s536
    %p550 = scmp.eq.s32.totalorder %s33, 1
    %p551 = por %p549, %p550
    %p553 = scmp.ne.s32.totalorder %s536, %s552
    %p554 = scmp.eq.s32.totalorder %s33, 0
    %p555 = por %p553, %p554
    %s557 = sadd.s32 %s556, 1
    %p560 = scmp.eq.s32.totalorder %s27, 1
    %p561 = scmp.ne.s32.totalorder %s556, %s558
    %p562 = scmp.eq.s32.totalorder %s27, 0
    %p563 = por %p561, %p562
    %p564 = scmp.ne.s32.totalorder %s556, %s558
    %p565 = scmp.eq.s32.totalorder %s32, 1
    %p566 = por %p564, %p565
    %p567 = scmp.ne.s32.totalorder %s558, %s559
    %p568 = scmp.eq.s32.totalorder %s32, 0
    %p569 = por %p567, %p568
    %p570 = scmp.ne.s32.totalorder %s558, %s559
    %p571 = scmp.eq.s32.totalorder %s33, 1
    %p572 = por %p570, %p571
    %p574 = scmp.ne.s32.totalorder %s559, %s573
    %p575 = scmp.eq.s32.totalorder %s33, 0
    %p576 = por %p574, %p575
    %p577 = scmp.le.s32.totalorder 1, %s27
    %p578 = scmp.lt.s32.totalorder %s27, 3
    %p579 = pnand %p577, %p578
    %p580 = pneg %p579
    // Predicated region
    $region9: #{tpu_custom_call.1} parent=5 // pred_check
      _
    $region10: #{tpu_custom_call.1} parent=5 // pred_check_branch
      %582 = sbr.rel (%p579) target = $region12
    $region11: #{tpu_custom_call.1} parent=5 // pred_region
      %s583 = ssub.s32 %s27, 1
      // Predicated region
      $region13: #{tpu_custom_call.1} parent=11 // pred_check
        %p584 = pneg %p48
      $region14: #{tpu_custom_call.1} parent=11 // pred_check_branch
        %586 = sbr.rel (%p584) target = $region16
      $region15: #{tpu_custom_call.1} parent=11 // pred_region
        _
      $region16: #{tpu_custom_call.1} parent=11 // pred_fallthru
        _
      // Predicated region
      $region17: #{tpu_custom_call.1} parent=11 // pred_check
        %p587 = pneg %p69
      $region18: #{tpu_custom_call.1} parent=11 // pred_check_branch
        %589 = sbr.rel (%p587) target = $region20
      $region19: #{tpu_custom_call.1} parent=11 // pred_region
        _
      $region20: #{tpu_custom_call.1} parent=11 // pred_fallthru
        _
      // Predicated region
      $region21: #{tpu_custom_call.1} parent=11 // pred_check
        %p590 = pneg %p90
      $region22: #{tpu_custom_call.1} parent=11 // pred_check_branch
        %592 = sbr.rel (%p590) target = $region24
      $region23: #{tpu_custom_call.1} parent=11 // pred_region
        _
      $region24: #{tpu_custom_call.1} parent=11 // pred_fallthru
        _
      // Predicated region
      $region25: #{tpu_custom_call.1} parent=11 // pred_check
        %p593 = pneg %p111
      $region26: #{tpu_custom_call.1} parent=11 // pred_check_branch
        %595 = sbr.rel (%p593) target = $region28
      $region27: #{tpu_custom_call.1} parent=11 // pred_region
        _
      $region28: #{tpu_custom_call.1} parent=11 // pred_fallthru
        _
      // Predicated region
      $region29: #{tpu_custom_call.1} parent=11 // pred_check
        %p596 = pneg %p132
      $region30: #{tpu_custom_call.1} parent=11 // pred_check_branch
        %598 = sbr.rel (%p596) target = $region32
      $region31: #{tpu_custom_call.1} parent=11 // pred_region
        _
      $region32: #{tpu_custom_call.1} parent=11 // pred_fallthru
        _
    $region12: #{tpu_custom_call.1} parent=5 // pred_fallthru
      _
    %p599 = scmp.lt.s32.totalorder %s27, 2
    // Predicated region
    $region33: #{tpu_custom_call.1} parent=5 // pred_check
      %p600 = pneg %p599
    $region34: #{tpu_custom_call.1} parent=5 // pred_check_branch
      %602 = sbr.rel (%p600) target = $region36
    $region35: #{tpu_custom_call.1} parent=5 // pred_region
      // Predicated region
      $region37: #{tpu_custom_call.1} parent=35 // pred_check
        %p603 = pneg %p152
      $region38: #{tpu_custom_call.1} parent=35 // pred_check_branch
        %605 = sbr.rel (%p603) target = $region40
      $region39: #{tpu_custom_call.1} parent=35 // pred_region
        %p606 = scmp.lt.s32.totalorder %s27, 1
        %s607 = scalar_select %p606, %s27, 1
        %s608 = smul.addr %s607, 32
        %s609 = smul.addr %s608, 4
        %s610 = scalar_lea.vmem %s5, %s609
      $region40: #{tpu_custom_call.1} parent=35 // pred_fallthru
        _
      // Predicated region
      $region41: #{tpu_custom_call.1} parent=35 // pred_check
        %p611 = pneg %p178
      $region42: #{tpu_custom_call.1} parent=35 // pred_check_branch
        %613 = sbr.rel (%p611) target = $region44
      $region43: #{tpu_custom_call.1} parent=35 // pred_region
        %p614 = scmp.lt.s32.totalorder %s27, 1
        %s615 = scalar_select %p614, %s27, 1
        %s616 = smul.addr %s615, 4
        %s617 = scalar_lea.vmem %s6, %s616
      $region44: #{tpu_custom_call.1} parent=35 // pred_fallthru
        _
      // Predicated region
      $region45: #{tpu_custom_call.1} parent=35 // pred_check
        %p618 = pneg %p204
      $region46: #{tpu_custom_call.1} parent=35 // pred_check_branch
        %620 = sbr.rel (%p618) target = $region48
      $region47: #{tpu_custom_call.1} parent=35 // pred_region
        %p621 = scmp.lt.s32.totalorder %s27, 1
        %s622 = scalar_select %p621, %s27, 1
        %s623 = smul.addr %s622, 32
        %s624 = smul.addr %s623, 4
        %s625 = scalar_lea.vmem %s7, %s624
      $region48: #{tpu_custom_call.1} parent=35 // pred_fallthru
        _
      // Predicated region
      $region49: #{tpu_custom_call.1} parent=35 // pred_check
        %p626 = pneg %p230
      $region50: #{tpu_custom_call.1} parent=35 // pred_check_branch
        %628 = sbr.rel (%p626) target = $region52
      $region51: #{tpu_custom_call.1} parent=35 // pred_region
        %p629 = scmp.lt.s32.totalorder %s27, 1
        %s630 = scalar_select %p629, %s27, 1
        %s631 = smul.addr %s630, 4
        %s632 = scalar_lea.vmem %s8, %s631
      $region52: #{tpu_custom_call.1} parent=35 // pred_fallthru
        _
      // Predicated region
      $region53: #{tpu_custom_call.1} parent=35 // pred_check
        %p633 = pneg %p256
      $region54: #{tpu_custom_call.1} parent=35 // pred_check_branch
        %635 = sbr.rel (%p633) target = $region56
      $region55: #{tpu_custom_call.1} parent=35 // pred_region
        %p636 = scmp.lt.s32.totalorder %s27, 1
        %s637 = scalar_select %p636, %s27, 1
        %s638 = smul.addr %s637, 32
        %s639 = smul.addr %s638, 4
        %s640 = scalar_lea.vmem %s9, %s639
      $region56: #{tpu_custom_call.1} parent=35 // pred_fallthru
        _
      // Predicated region
      $region57: #{tpu_custom_call.1} parent=35 // pred_check
        %p641 = pneg %p282
      $region58: #{tpu_custom_call.1} parent=35 // pred_check_branch
        %643 = sbr.rel (%p641) target = $region60
      $region59: #{tpu_custom_call.1} parent=35 // pred_region
        %p644 = scmp.lt.s32.totalorder %s27, 1
        %s645 = scalar_select %p644, %s27, 1
        %s646 = smul.addr %s645, 4
        %s647 = scalar_lea.vmem %s10, %s646
      $region60: #{tpu_custom_call.1} parent=35 // pred_fallthru
        _
      // Predicated region
      $region61: #{tpu_custom_call.1} parent=35 // pred_check
        %p648 = pneg %p308
      $region62: #{tpu_custom_call.1} parent=35 // pred_check_branch
        %650 = sbr.rel (%p648) target = $region64
      $region63: #{tpu_custom_call.1} parent=35 // pred_region
        %p651 = scmp.lt.s32.totalorder %s27, 1
        %s652 = scalar_select %p651, %s27, 1
        %s653 = smul.addr %s652, 8
        %s654 = smul.addr %s653, 4
        %s655 = scalar_lea.vmem %s11, %s654
      $region64: #{tpu_custom_call.1} parent=35 // pred_fallthru
        _
      // Predicated region
      $region65: #{tpu_custom_call.1} parent=35 // pred_check
        %p656 = pneg %p334
      $region66: #{tpu_custom_call.1} parent=35 // pred_check_branch
        %658 = sbr.rel (%p656) target = $region68
      $region67: #{tpu_custom_call.1} parent=35 // pred_region
        %p659 = scmp.lt.s32.totalorder %s27, 1
        %s660 = scalar_select %p659, %s27, 1
        %s661 = scalar_lea.vmem %s12, %s660
      $region68: #{tpu_custom_call.1} parent=35 // pred_fallthru
        _
      // Predicated region
      $region69: #{tpu_custom_call.1} parent=35 // pred_check
        %p662 = pneg %p360
      $region70: #{tpu_custom_call.1} parent=35 // pred_check_branch
        %664 = sbr.rel (%p662) target = $region72
      $region71: #{tpu_custom_call.1} parent=35 // pred_region
        %p665 = scmp.lt.s32.totalorder %s27, 1
        %s666 = scalar_select %p665, %s27, 1
        %s667 = scalar_lea.vmem %s13, %s666
      $region72: #{tpu_custom_call.1} parent=35 // pred_fallthru
        _
      // Predicated region
      $region73: #{tpu_custom_call.1} parent=35 // pred_check
        %p668 = pneg %p386
      $region74: #{tpu_custom_call.1} parent=35 // pred_check_branch
        %670 = sbr.rel (%p668) target = $region76
      $region75: #{tpu_custom_call.1} parent=35 // pred_region
        %p671 = scmp.lt.s32.totalorder %s27, 1
        %s672 = scalar_select %p671, %s27, 1
        %s673 = scalar_lea.vmem %s14, %s672
      $region76: #{tpu_custom_call.1} parent=35 // pred_fallthru
        _
      // Predicated region
      $region77: #{tpu_custom_call.1} parent=35 // pred_check
        %p674 = pneg %p412
      $region78: #{tpu_custom_call.1} parent=35 // pred_check_branch
        %676 = sbr.rel (%p674) target = $region80
      $region79: #{tpu_custom_call.1} parent=35 // pred_region
        %p677 = scmp.lt.s32.totalorder %s27, 1
        %s678 = scalar_select %p677, %s27, 1
        %s679 = smul.addr %s678, 128
        %s680 = smul.addr %s679, 4
        %s681 = scalar_lea.vmem %s15, %s680
      $region80: #{tpu_custom_call.1} parent=35 // pred_fallthru
        _
      // Predicated region
      $region81: #{tpu_custom_call.1} parent=35 // pred_check
        %p682 = pneg %p438
      $region82: #{tpu_custom_call.1} parent=35 // pred_check_branch
        %684 = sbr.rel (%p682) target = $region84
      $region83: #{tpu_custom_call.1} parent=35 // pred_region
        %p685 = scmp.lt.s32.totalorder %s27, 1
        %s686 = scalar_select %p685, %s27, 1
        %s687 = smul.addr %s686, 16
        %s688 = scalar_lea.vmem %s16, %s687
      $region84: #{tpu_custom_call.1} parent=35 // pred_fallthru
        _
      // Predicated region
      $region85: #{tpu_custom_call.1} parent=35 // pred_check
        %p689 = pneg %p464
      $region86: #{tpu_custom_call.1} parent=35 // pred_check_branch
        %691 = sbr.rel (%p689) target = $region88
      $region87: #{tpu_custom_call.1} parent=35 // pred_region
        %p692 = scmp.lt.s32.totalorder %s27, 1
        %s693 = scalar_select %p692, %s27, 1
        %s694 = smul.addr %s693, 256
        %s695 = smul.addr %s694, 4
        %s696 = scalar_lea.vmem %s17, %s695
      $region88: #{tpu_custom_call.1} parent=35 // pred_fallthru
        _
      // Predicated region
      $region89: #{tpu_custom_call.1} parent=35 // pred_check
        %p697 = pneg %p490
      $region90: #{tpu_custom_call.1} parent=35 // pred_check_branch
        %699 = sbr.rel (%p697) target = $region92
      $region91: #{tpu_custom_call.1} parent=35 // pred_region
        %p700 = scmp.lt.s32.totalorder %s27, 1
        %s701 = scalar_select %p700, %s27, 1
        %s702 = scalar_lea.vmem %s18, %s701
      $region92: #{tpu_custom_call.1} parent=35 // pred_fallthru
        _
      // Predicated region
      $region93: #{tpu_custom_call.1} parent=35 // pred_check
        %p703 = pneg %p516
      $region94: #{tpu_custom_call.1} parent=35 // pred_check_branch
        %705 = sbr.rel (%p703) target = $region96
      $region95: #{tpu_custom_call.1} parent=35 // pred_region
        %p706 = scmp.lt.s32.totalorder %s27, 1
        %s707 = scalar_select %p706, %s27, 1
        %s708 = scalar_lea.vmem %s19, %s707
      $region96: #{tpu_custom_call.1} parent=35 // pred_fallthru
        _
      // Predicated region
      $region97: #{tpu_custom_call.1} parent=35 // pred_check
        %p709 = pneg %p542
      $region98: #{tpu_custom_call.1} parent=35 // pred_check_branch
        %711 = sbr.rel (%p709) target = $region100
      $region99: #{tpu_custom_call.1} parent=35 // pred_region
        %p712 = scmp.lt.s32.totalorder %s27, 1
        %s713 = scalar_select %p712, %s27, 1
        %s714 = scalar_lea.vmem %s20, %s713
      $region100: #{tpu_custom_call.1} parent=35 // pred_fallthru
        _
    $region36: #{tpu_custom_call.1} parent=5 // pred_fallthru
      _
    %p715 = scmp.le.s32.totalorder 1, %s27
    %p716 = scmp.lt.s32.totalorder %s27, 3
    %p717 = pnand %p715, %p716
    %p718 = pneg %p717
    // Predicated region
    $region101: #{tpu_custom_call.1} parent=5 // pred_check
      _
    $region102: #{tpu_custom_call.1} parent=5 // pred_check_branch
      %720 = sbr.rel (%p717) target = $region104
    $region103: #{tpu_custom_call.1} parent=5 // pred_region
      %s721 = ssub.s32 %s27, 1
      %p722 = pneg %p48
      %p723 = pneg %p45
      %p724 = pneg %p69
      %p725 = pneg %p66
      %p726 = pneg %p90
      %p727 = pneg %p87
      %p728 = pneg %p111
      %p729 = pneg %p108
      %p730 = pneg %p132
      %p731 = pneg %p129
      %p732 = scmp.lt.s32.totalorder %s32, 1
      %s733 = scalar_select %p732, %s32, 1
      %s734 = smul.addr %s733, 32
      %s735 = smul.addr %s734, 4
      %s736 = scalar_lea.vmem %s5, %s735
      %p737 = pneg %p158
      %p738 = pneg %p155
      %p739 = scmp.lt.s32.totalorder %s32, 1
      %s740 = scalar_select %p739, %s32, 1
      %s741 = smul.addr %s740, 4
      %s742 = scalar_lea.vmem %s6, %s741
      %p743 = pneg %p184
      %p744 = pneg %p181
      %p745 = scmp.lt.s32.totalorder %s32, 1
      %s746 = scalar_select %p745, %s32, 1
      %s747 = smul.addr %s746, 32
      %s748 = smul.addr %s747, 4
      %s749 = scalar_lea.vmem %s7, %s748
      %p750 = pneg %p210
      %p751 = pneg %p207
      %p752 = scmp.lt.s32.totalorder %s32, 1
      %s753 = scalar_select %p752, %s32, 1
      %s754 = smul.addr %s753, 4
      %s755 = scalar_lea.vmem %s8, %s754
      %p756 = pneg %p236
      %p757 = pneg %p233
      %p758 = scmp.lt.s32.totalorder %s32, 1
      %s759 = scalar_select %p758, %s32, 1
      %s760 = smul.addr %s759, 32
      %s761 = smul.addr %s760, 4
      %s762 = scalar_lea.vmem %s9, %s761
      %p763 = pneg %p262
      %p764 = pneg %p259
      %p765 = scmp.lt.s32.totalorder %s32, 1
      %s766 = scalar_select %p765, %s32, 1
      %s767 = smul.addr %s766, 4
      %s768 = scalar_lea.vmem %s10, %s767
      %p769 = pneg %p288
      %p770 = pneg %p285
      %p771 = scmp.lt.s32.totalorder %s32, 1
      %s772 = scalar_select %p771, %s32, 1
      %s773 = smul.addr %s772, 8
      %s774 = smul.addr %s773, 4
      %s775 = scalar_lea.vmem %s11, %s774
      %p776 = pneg %p314
      %p777 = pneg %p311
      %p778 = scmp.lt.s32.totalorder %s32, 1
      %s779 = scalar_select %p778, %s32, 1
      %s780 = scalar_lea.vmem %s12, %s779
      %p781 = pneg %p340
      %p782 = pneg %p337
      %p783 = scmp.lt.s32.totalorder %s32, 1
      %s784 = scalar_select %p783, %s32, 1
      %s785 = scalar_lea.vmem %s13, %s784
      %p786 = pneg %p366
      %p787 = pneg %p363
      %p788 = scmp.lt.s32.totalorder %s32, 1
      %s789 = scalar_select %p788, %s32, 1
      %s790 = scalar_lea.vmem %s14, %s789
      %p791 = pneg %p392
      %p792 = pneg %p389
      %p793 = scmp.lt.s32.totalorder %s32, 1
      %s794 = scalar_select %p793, %s32, 1
      %s795 = smul.addr %s794, 128
      %s796 = smul.addr %s795, 4
      %s797 = scalar_lea.vmem %s15, %s796
      %p798 = pneg %p418
      %p799 = pneg %p415
      %p800 = scmp.lt.s32.totalorder %s32, 1
      %s801 = scalar_select %p800, %s32, 1
      %s802 = smul.addr %s801, 16
      %s803 = scalar_lea.vmem %s16, %s802
      %p804 = pneg %p444
      %p805 = pneg %p441
      %p806 = scmp.lt.s32.totalorder %s32, 1
      %s807 = scalar_select %p806, %s32, 1
      %s808 = smul.addr %s807, 256
      %s809 = smul.addr %s808, 4
      %s810 = scalar_lea.vmem %s17, %s809
      %p811 = pneg %p470
      %p812 = pneg %p467
      %p813 = scmp.lt.s32.totalorder %s32, 1
      %s814 = scalar_select %p813, %s32, 1
      %s815 = scalar_lea.vmem %s18, %s814
      %p816 = pneg %p496
      %p817 = pneg %p493
      %p818 = scmp.lt.s32.totalorder %s32, 1
      %s819 = scalar_select %p818, %s32, 1
      %s820 = scalar_lea.vmem %s19, %s819
      %p821 = pneg %p522
      %p822 = pneg %p519
      %p823 = scmp.lt.s32.totalorder %s32, 1
      %s824 = scalar_select %p823, %s32, 1
      %s825 = scalar_lea.vmem %s20, %s824
      %p826 = pneg %p548
      %p827 = pneg %p545
      %p828 = pneg %p569
      %p829 = pneg %p566
      %p830 = scmp.lt.s32.totalorder %s32, 1
      %s831 = scalar_select %p830, %s32, 1
      %s832 = smul.addr %s831, 32
      %s833 = smul.addr %s832, 4
      %s834 = scalar_lea.vmem %s5, %s833
      %p835 = scmp.lt.s32.totalorder %s32, 1
      %s836 = scalar_select %p835, %s32, 1
      %s837 = smul.addr %s836, 4
      %s838 = scalar_lea.vmem %s6, %s837
      %p839 = scmp.lt.s32.totalorder %s32, 1
      %s840 = scalar_select %p839, %s32, 1
      %s841 = smul.addr %s840, 32
      %s842 = smul.addr %s841, 4
      %s843 = scalar_lea.vmem %s7, %s842
      %p844 = scmp.lt.s32.totalorder %s32, 1
      %s845 = scalar_select %p844, %s32, 1
      %s846 = smul.addr %s845, 4
      %s847 = scalar_lea.vmem %s8, %s846
      %p848 = scmp.lt.s32.totalorder %s32, 1
      %s849 = scalar_select %p848, %s32, 1
      %s850 = smul.addr %s849, 32
      %s851 = smul.addr %s850, 4
      %s852 = scalar_lea.vmem %s9, %s851
      %p853 = scmp.lt.s32.totalorder %s32, 1
      %s854 = scalar_select %p853, %s32, 1
      %s855 = smul.addr %s854, 4
      %s856 = scalar_lea.vmem %s10, %s855
      %p857 = scmp.lt.s32.totalorder %s32, 1
      %s858 = scalar_select %p857, %s32, 1
      %s859 = smul.addr %s858, 8
      %s860 = smul.addr %s859, 4
      %s861 = scalar_lea.vmem %s11, %s860
      %p862 = scmp.lt.s32.totalorder %s32, 1
      %s863 = scalar_select %p862, %s32, 1
      %s864 = scalar_lea.vmem %s12, %s863
      %p865 = scmp.lt.s32.totalorder %s32, 1
      %s866 = scalar_select %p865, %s32, 1
      %s867 = scalar_lea.vmem %s13, %s866
      %p868 = scmp.lt.s32.totalorder %s32, 1
      %s869 = scalar_select %p868, %s32, 1
      %s870 = scalar_lea.vmem %s14, %s869
      %p871 = scmp.lt.s32.totalorder %s32, 1
      %s872 = scalar_select %p871, %s32, 1
      %s873 = smul.addr %s872, 128
      %s874 = smul.addr %s873, 4
      %s875 = scalar_lea.vmem %s15, %s874
      %p876 = scmp.lt.s32.totalorder %s32, 1
      %s877 = scalar_select %p876, %s32, 1
      %s878 = smul.addr %s877, 16
      %s879 = scalar_lea.vmem %s16, %s878
      %p880 = scmp.lt.s32.totalorder %s32, 1
      %s881 = scalar_select %p880, %s32, 1
      %s882 = smul.addr %s881, 256
      %s883 = smul.addr %s882, 4
      %s884 = scalar_lea.vmem %s17, %s883
      %p885 = scmp.lt.s32.totalorder %s32, 1
      %s886 = scalar_select %p885, %s32, 1
      %s887 = scalar_lea.vmem %s18, %s886
      %p888 = scmp.lt.s32.totalorder %s32, 1
      %s889 = scalar_select %p888, %s32, 1
      %s890 = scalar_lea.vmem %s19, %s889
      %p891 = scmp.lt.s32.totalorder %s32, 1
      %s892 = scalar_select %p891, %s32, 1
      %s893 = scalar_lea.vmem %s20, %s892
      %p895 = scmp.eq.s32.totalorder %s32, 0
      // Predicated region
      $region105: #{tpu_custom_call.1} parent=103 // pred_check
        %p896 = pneg %p895
      $region106: #{tpu_custom_call.1} parent=103 // pred_check_branch
        %898 = sbr.rel (%p896) target = $region108
      $region107: #{tpu_custom_call.1} parent=103 // pred_region
        %v899 = vld [vmem:[%s0] sm:$0xff]
        %v900 = vld [vmem:[%s1] sm:$0x3f]
        %v901 = vld [vmem:[%s2] sm:$0x1]
        %v903 = vlaneseq
        %v904 = vshrl.u32 %v903, 7
        %v905 = vsub.s32 0, %v904
        %v906 = vrot.slane %v901, %v905
        %vm908 = vcmask 48128
        %v910 = vsel %vm908, %v899, 0
        %vm912 = vcmask 1045504
        %v914 = vsel %vm912, %v900, 0
        %916 = vmatprep.subr.mxu0 0.0
        %917 = vmatpush1.msra.mxu0 %v914
        %918 = vmatprep.subr.mxu0 0.0
        %919 = vmatpush1.msra.mxu0 0.0
        %920 = vmatprep.subr.mxu0 0.0
        %921 = vmatpush1.msra.mxu0 0.0
        %922 = vmatprep.subr.mxu0 0.0
        %923 = vmatpush1.msra.mxu0 0.0
        %924 = vmatprep.subr.mxu0 0.0
        %925 = vmatpush1.msra.mxu0 0.0
        %926 = vmatprep.subr.mxu0 0.0
        %927 = vmatpush1.msra.mxu0 0.0
        %928 = vmatprep.subr.mxu0 0.0
        %929 = vmatpush1.msra.mxu0 0.0
        %930 = vmatprep.subr.mxu0 0.0
        %931 = vmatpush1.msra.mxu0 0.0
        %932 = vmatprep.subr.mxu0 0.0
        %933 = vmatpush1.msra.mxu0 0.0
        %934 = vmatprep.subr.mxu0 0.0
        %935 = vmatpush1.msra.mxu0 0.0
        %936 = vmatprep.subr.mxu0 0.0
        %937 = vmatpush1.msra.mxu0 0.0
        %938 = vmatprep.subr.mxu0 0.0
        %939 = vmatpush1.msra.mxu0 0.0
        %940 = vmatprep.subr.mxu0 0.0
        %941 = vmatpush1.msra.mxu0 0.0
        %942 = vmatprep.subr.mxu0 0.0
        %943 = vmatpush1.msra.mxu0 0.0
        %944 = vmatprep.subr.mxu0 0.0
        %945 = vmatpush1.msra.mxu0 0.0
        %946 = vmatprep.subr.mxu0 0.0
        %947 = vmatpush1.msra.mxu0 0.0
        %948 = vmatprep.subr.mxu0 0.0
        %949 = vmatpush1.msra.mxu0 0.0
        %950 = vmatprep.subr.mxu0 0.0
        %951 = vmatpush1.msra.mxu0 0.0
        %952 = vmatprep.subr.mxu0 0.0
        %953 = vmatpush1.msra.mxu0 0.0
        %954 = vmatprep.subr.mxu0 0.0
        %955 = vmatpush1.msra.mxu0 0.0
        %956 = vmatprep.subr.mxu0 0.0
        %957 = vmatpush1.msra.mxu0 0.0
        %958 = vmatprep.subr.mxu0 0.0
        %959 = vmatpush1.msra.mxu0 0.0
        %960 = vmatprep.subr.mxu0 0.0
        %961 = vmatpush1.msra.mxu0 0.0
        %962 = vmatprep.subr.mxu0 0.0
        %963 = vmatpush1.msra.mxu0 0.0
        %964 = vmatprep.subr.mxu0 0.0
        %965 = vmatpush1.msra.mxu0 0.0
        %966 = vmatprep.subr.mxu0 0.0
        %967 = vmatpush1.msra.mxu0 0.0
        %968 = vmatprep.subr.mxu0 0.0
        %969 = vmatpush1.msra.mxu0 0.0
        %970 = vmatprep.subr.mxu0 0.0
        %971 = vmatpush1.msra.mxu0 0.0
        %972 = vmatprep.subr.mxu0 0.0
        %973 = vmatpush1.msra.mxu0 0.0
        %974 = vmatprep.subr.mxu0 0.0
        %975 = vmatpush1.msra.mxu0 0.0
        %976 = vmatprep.subr.mxu0 0.0
        %977 = vmatpush1.msra.mxu0 0.0
        %978 = vmatprep.subr.mxu0 0.0
        %979 = vmatpush1.msra.mxu0 0.0
        %980 = vmatprep.mubr.f32.mxu0 0.0
        %981 = vmatmul.mubr.f32.gmra.mrb[0].mxu0 %v910
        %v982 = vpop.f32.mrb[0].mxu0
        %v983 = vadd.f32 %v906, %v982
        %v984 = vpop.f32.mrb[0].mxu0
        %985 = vdwg.mxu0
        %v986 = vmax.f32 %v983, 0.0
        %vm987 = vcmask 523264
        %988 = vst.msk [vmem:[#allocation2] sm:$0xff] %vm987, %v986
      $region108: #{tpu_custom_call.1} parent=103 // pred_fallthru
        _
      %v989 = vld [vmem:[#allocation2] sm:$0xff]
      %v990 = vpack.c.bf16 %v989, %v989
      %v991 = vld [vmem:[%s834] sm:$0xf]
      %v992 = vld [vmem:[%s834 + $0x4] sm:$0xf]
      %v993 = vld [vmem:[%s834 + $0x8] sm:$0xf]
      %v994 = vld [vmem:[%s834 + $0xc] sm:$0xf]
      %v995 = vld [vmem:[%s834 + $0x10] sm:$0xf]
      %v996 = vld [vmem:[%s834 + $0x14] sm:$0xf]
      %v997 = vld [vmem:[%s834 + $0x18] sm:$0xf]
      %v998 = vld [vmem:[%s834 + $0x1c] sm:$0xf]
      %v999 = vld [vmem:[%s834 + $0x20] sm:$0xf]
      %v1000 = vld [vmem:[%s834 + $0x24] sm:$0xf]
      %v1001 = vld [vmem:[%s834 + $0x28] sm:$0xf]
      %v1002 = vld [vmem:[%s834 + $0x2c] sm:$0xf]
      %v1003 = vld [vmem:[%s834 + $0x30] sm:$0xf]
      %v1004 = vld [vmem:[%s834 + $0x34] sm:$0xf]
      %v1005 = vld [vmem:[%s834 + $0x38] sm:$0xf]
      %v1006 = vld [vmem:[%s834 + $0x3c] sm:$0xf]
      %v1007 = vld [vmem:[%s834 + $0x40] sm:$0xf]
      %v1008 = vld [vmem:[%s834 + $0x44] sm:$0xf]
      %v1009 = vld [vmem:[%s834 + $0x48] sm:$0xf]
      %v1010 = vld [vmem:[%s834 + $0x4c] sm:$0xf]
      %v1011 = vld [vmem:[%s834 + $0x50] sm:$0xf]
      %v1012 = vld [vmem:[%s834 + $0x54] sm:$0xf]
      %v1013 = vld [vmem:[%s834 + $0x58] sm:$0xf]
      %v1014 = vld [vmem:[%s834 + $0x5c] sm:$0xf]
      %v1015 = vld [vmem:[%s834 + $0x60] sm:$0xf]
      %v1016 = vld [vmem:[%s834 + $0x64] sm:$0xf]
      %v1017 = vld [vmem:[%s834 + $0x68] sm:$0xf]
      %v1018 = vld [vmem:[%s834 + $0x6c] sm:$0xf]
      %v1019 = vld [vmem:[%s834 + $0x70] sm:$0xf]
      %v1020 = vld [vmem:[%s834 + $0x74] sm:$0xf]
      %v1021 = vld [vmem:[%s834 + $0x78] sm:$0xf]
      %v1022 = vld [vmem:[%s834 + $0x7c] sm:$0xf]
      %v1023 = vld [vmem:[%s838] sm:$0x1]
      %v1024 = vld [vmem:[%s838 + $0x1] sm:$0x1]
      %v1025 = vld [vmem:[%s838 + $0x2] sm:$0x1]
      %v1026 = vld [vmem:[%s838 + $0x3] sm:$0x1]
      %v1031 = vlaneseq
      %v1032 = vshrl.u32 %v1031, 7
      %v1033 = vsub.s32 0, %v1032
      %v1034 = vrot.slane %v1023, %v1033
      %v1035 = vlaneseq
      %v1036 = vshrl.u32 %v1035, 7
      %v1037 = vsub.s32 0, %v1036
      %v1038 = vrot.slane %v1024, %v1037
      %v1039 = vlaneseq
      %v1040 = vshrl.u32 %v1039, 7
      %v1041 = vsub.s32 0, %v1040
      %v1042 = vrot.slane %v1025, %v1041
      %v1043 = vlaneseq
      %v1044 = vshrl.u32 %v1043, 7
      %v1045 = vsub.s32 0, %v1044
      %v1046 = vrot.slane %v1026, %v1045
      %v1059 = vunpack.c.l.b16 %v991
      %v1060 = vunpack.c.l.b16 %v992
      %v1061 = vunpack.c.l.b16 %v993
      %v1062 = vunpack.c.l.b16 %v994
      %v1063 = vunpack.c.l.b16 %v995
      %v1064 = vunpack.c.l.b16 %v996
      %v1065 = vunpack.c.l.b16 %v997
      %v1066 = vunpack.c.l.b16 %v998
      %v1067 = vpack.c.b16 %v1060, %v1059
      %v1068 = vpack.c.b16 %v1062, %v1061
      %v1069 = vpack.c.b16 %v1064, %v1063
      %v1070 = vpack.c.b16 %v1066, %v1065
      %vm1075 = vcmask 523264
      %v1077 = vsel %vm1075, %v990, 0
      %1079 = vmatprep.subr.bf16.mxu0 0
      %1080 = vmatpush1.bf16.msra.mxu0 %v1067
      %1081 = vmatprep.subr.bf16.mxu0 0
      %1082 = vmatpush1.bf16.msra.mxu0 %v1068
      %1083 = vmatprep.subr.bf16.mxu0 0
      %1084 = vmatpush1.bf16.msra.mxu0 %v1069
      %1085 = vmatprep.subr.bf16.mxu0 0
      %1086 = vmatpush1.bf16.msra.mxu0 %v1070
      %1087 = vmatprep.subr.bf16.mxu0 0
      %1088 = vmatpush1.bf16.msra.mxu0 0
      %1089 = vmatprep.subr.bf16.mxu0 0
      %1090 = vmatpush1.bf16.msra.mxu0 0
      %1091 = vmatprep.subr.bf16.mxu0 0
      %1092 = vmatpush1.bf16.msra.mxu0 0
      %1093 = vmatprep.subr.bf16.mxu0 0
      %1094 = vmatpush1.bf16.msra.mxu0 0
      %1095 = vmatprep.subr.bf16.mxu0 0
      %1096 = vmatpush1.bf16.msra.mxu0 0
      %1097 = vmatprep.subr.bf16.mxu0 0
      %1098 = vmatpush1.bf16.msra.mxu0 0
      %1099 = vmatprep.subr.bf16.mxu0 0
      %1100 = vmatpush1.bf16.msra.mxu0 0
      %1101 = vmatprep.subr.bf16.mxu0 0
      %1102 = vmatpush1.bf16.msra.mxu0 0
      %1103 = vmatprep.subr.bf16.mxu0 0
      %1104 = vmatpush1.bf16.msra.mxu0 0
      %1105 = vmatprep.subr.bf16.mxu0 0
      %1106 = vmatpush1.bf16.msra.mxu0 0
      %1107 = vmatprep.subr.bf16.mxu0 0
      %1108 = vmatpush1.bf16.msra.mxu0 0
      %1109 = vmatprep.subr.bf16.mxu0 0
      %1110 = vmatpush1.bf16.msra.mxu0 0
      %1111 = vmatprep.mubr.bf16.mxu0 0
      %1112 = vmatmul.mubr.bf16.gmra.mrb[0].mxu0 %v1077
      %v1113 = vpop.f32.mrb[0].mxu0
      %v1114 = vadd.f32 %v1034, %v1113
      %v1115 = vpop.f32.mrb[0].mxu0
      %v1116 = vpop.f32.mrb[0].mxu0
      %v1117 = vpop.f32.mrb[0].mxu0
      %1118 = vdwg.mxu0
      %v1127 = vunpack.c.l.b16 %v999
      %v1128 = vunpack.c.l.b16 %v1000
      %v1129 = vunpack.c.l.b16 %v1001
      %v1130 = vunpack.c.l.b16 %v1002
      %v1131 = vunpack.c.l.b16 %v1003
      %v1132 = vunpack.c.l.b16 %v1004
      %v1133 = vunpack.c.l.b16 %v1005
      %v1134 = vunpack.c.l.b16 %v1006
      %v1135 = vpack.c.b16 %v1128, %v1127
      %v1136 = vpack.c.b16 %v1130, %v1129
      %v1137 = vpack.c.b16 %v1132, %v1131
      %v1138 = vpack.c.b16 %v1134, %v1133
      %1143 = vmatprep.subr.bf16.mxu0 0
      %1144 = vmatpush1.bf16.msra.mxu0 %v1135
      %1145 = vmatprep.subr.bf16.mxu0 0
      %1146 = vmatpush1.bf16.msra.mxu0 %v1136
      %1147 = vmatprep.subr.bf16.mxu0 0
      %1148 = vmatpush1.bf16.msra.mxu0 %v1137
      %1149 = vmatprep.subr.bf16.mxu0 0
      %1150 = vmatpush1.bf16.msra.mxu0 %v1138
      %1151 = vmatprep.subr.bf16.mxu0 0
      %1152 = vmatpush1.bf16.msra.mxu0 0
      %1153 = vmatprep.subr.bf16.mxu0 0
      %1154 = vmatpush1.bf16.msra.mxu0 0
      %1155 = vmatprep.subr.bf16.mxu0 0
      %1156 = vmatpush1.bf16.msra.mxu0 0
      %1157 = vmatprep.subr.bf16.mxu0 0
      %1158 = vmatpush1.bf16.msra.mxu0 0
      %1159 = vmatprep.subr.bf16.mxu0 0
      %1160 = vmatpush1.bf16.msra.mxu0 0
      %1161 = vmatprep.subr.bf16.mxu0 0
      %1162 = vmatpush1.bf16.msra.mxu0 0
      %1163 = vmatprep.subr.bf16.mxu0 0
      %1164 = vmatpush1.bf16.msra.mxu0 0
      %1165 = vmatprep.subr.bf16.mxu0 0
      %1166 = vmatpush1.bf16.msra.mxu0 0
      %1167 = vmatprep.subr.bf16.mxu0 0
      %1168 = vmatpush1.bf16.msra.mxu0 0
      %1169 = vmatprep.subr.bf16.mxu0 0
      %1170 = vmatpush1.bf16.msra.mxu0 0
      %1171 = vmatprep.subr.bf16.mxu0 0
      %1172 = vmatpush1.bf16.msra.mxu0 0
      %1173 = vmatprep.subr.bf16.mxu0 0
      %1174 = vmatpush1.bf16.msra.mxu0 0
      %1175 = vmatprep.mubr.bf16.mxu0 0
      %1176 = vmatmul.mubr.bf16.gmra.mrb[0].mxu0 %v1077
      %v1177 = vpop.f32.mrb[0].mxu0
      %v1178 = vadd.f32 %v1038, %v1177
      %v1179 = vpop.f32.mrb[0].mxu0
      %v1180 = vpop.f32.mrb[0].mxu0
      %v1181 = vpop.f32.mrb[0].mxu0
      %1182 = vdwg.mxu0
      %v1191 = vunpack.c.l.b16 %v1007
      %v1192 = vunpack.c.l.b16 %v1008
      %v1193 = vunpack.c.l.b16 %v1009
      %v1194 = vunpack.c.l.b16 %v1010
      %v1195 = vunpack.c.l.b16 %v1011
      %v1196 = vunpack.c.l.b16 %v1012
      %v1197 = vunpack.c.l.b16 %v1013
      %v1198 = vunpack.c.l.b16 %v1014
      %v1199 = vpack.c.b16 %v1192, %v1191
      %v1200 = vpack.c.b16 %v1194, %v1193
      %v1201 = vpack.c.b16 %v1196, %v1195
      %v1202 = vpack.c.b16 %v1198, %v1197
      %1207 = vmatprep.subr.bf16.mxu0 0
      %1208 = vmatpush1.bf16.msra.mxu0 %v1199
      %1209 = vmatprep.subr.bf16.mxu0 0
      %1210 = vmatpush1.bf16.msra.mxu0 %v1200
      %1211 = vmatprep.subr.bf16.mxu0 0
      %1212 = vmatpush1.bf16.msra.mxu0 %v1201
      %1213 = vmatprep.subr.bf16.mxu0 0
      %1214 = vmatpush1.bf16.msra.mxu0 %v1202
      %1215 = vmatprep.subr.bf16.mxu0 0
      %1216 = vmatpush1.bf16.msra.mxu0 0
      %1217 = vmatprep.subr.bf16.mxu0 0
      %1218 = vmatpush1.bf16.msra.mxu0 0
      %1219 = vmatprep.subr.bf16.mxu0 0
      %1220 = vmatpush1.bf16.msra.mxu0 0
      %1221 = vmatprep.subr.bf16.mxu0 0
      %1222 = vmatpush1.bf16.msra.mxu0 0
      %1223 = vmatprep.subr.bf16.mxu0 0
      %1224 = vmatpush1.bf16.msra.mxu0 0
      %1225 = vmatprep.subr.bf16.mxu0 0
      %1226 = vmatpush1.bf16.msra.mxu0 0
      %1227 = vmatprep.subr.bf16.mxu0 0
      %1228 = vmatpush1.bf16.msra.mxu0 0
      %1229 = vmatprep.subr.bf16.mxu0 0
      %1230 = vmatpush1.bf16.msra.mxu0 0
      %1231 = vmatprep.subr.bf16.mxu0 0
      %1232 = vmatpush1.bf16.msra.mxu0 0
      %1233 = vmatprep.subr.bf16.mxu0 0
      %1234 = vmatpush1.bf16.msra.mxu0 0
      %1235 = vmatprep.subr.bf16.mxu0 0
      %1236 = vmatpush1.bf16.msra.mxu0 0
      %1237 = vmatprep.subr.bf16.mxu0 0
      %1238 = vmatpush1.bf16.msra.mxu0 0
      %1239 = vmatprep.mubr.bf16.mxu0 0
      %1240 = vmatmul.mubr.bf16.gmra.mrb[0].mxu0 %v1077
      %v1241 = vpop.f32.mrb[0].mxu0
      %v1242 = vadd.f32 %v1042, %v1241
      %v1243 = vpop.f32.mrb[0].mxu0
      %v1244 = vpop.f32.mrb[0].mxu0
      %v1245 = vpop.f32.mrb[0].mxu0
      %1246 = vdwg.mxu0
      %v1255 = vunpack.c.l.b16 %v1015
      %v1256 = vunpack.c.l.b16 %v1016
      %v1257 = vunpack.c.l.b16 %v1017
      %v1258 = vunpack.c.l.b16 %v1018
      %v1259 = vunpack.c.l.b16 %v1019
      %v1260 = vunpack.c.l.b16 %v1020
      %v1261 = vunpack.c.l.b16 %v1021
      %v1262 = vunpack.c.l.b16 %v1022
      %v1263 = vpack.c.b16 %v1256, %v1255
      %v1264 = vpack.c.b16 %v1258, %v1257
      %v1265 = vpack.c.b16 %v1260, %v1259
      %v1266 = vpack.c.b16 %v1262, %v1261
      %1271 = vmatprep.subr.bf16.mxu0 0
      %1272 = vmatpush1.bf16.msra.mxu0 %v1263
      %1273 = vmatprep.subr.bf16.mxu0 0
      %1274 = vmatpush1.bf16.msra.mxu0 %v1264
      %1275 = vmatprep.subr.bf16.mxu0 0
      %1276 = vmatpush1.bf16.msra.mxu0 %v1265
      %1277 = vmatprep.subr.bf16.mxu0 0
      %1278 = vmatpush1.bf16.msra.mxu0 %v1266
      %1279 = vmatprep.subr.bf16.mxu0 0
      %1280 = vmatpush1.bf16.msra.mxu0 0
      %1281 = vmatprep.subr.bf16.mxu0 0
      %1282 = vmatpush1.bf16.msra.mxu0 0
      %1283 = vmatprep.subr.bf16.mxu0 0
      %1284 = vmatpush1.bf16.msra.mxu0 0
      %1285 = vmatprep.subr.bf16.mxu0 0
      %1286 = vmatpush1.bf16.msra.mxu0 0
      %1287 = vmatprep.subr.bf16.mxu0 0
      %1288 = vmatpush1.bf16.msra.mxu0 0
      %1289 = vmatprep.subr.bf16.mxu0 0
      %1290 = vmatpush1.bf16.msra.mxu0 0
      %1291 = vmatprep.subr.bf16.mxu0 0
      %1292 = vmatpush1.bf16.msra.mxu0 0
      %1293 = vmatprep.subr.bf16.mxu0 0
      %1294 = vmatpush1.bf16.msra.mxu0 0
      %1295 = vmatprep.subr.bf16.mxu0 0
      %1296 = vmatpush1.bf16.msra.mxu0 0
      %1297 = vmatprep.subr.bf16.mxu0 0
      %1298 = vmatpush1.bf16.msra.mxu0 0
      %1299 = vmatprep.subr.bf16.mxu0 0
      %1300 = vmatpush1.bf16.msra.mxu0 0
      %1301 = vmatprep.subr.bf16.mxu0 0
      %1302 = vmatpush1.bf16.msra.mxu0 0
      %1303 = vmatprep.mubr.bf16.mxu0 0
      %1304 = vmatmul.mubr.bf16.gmra.mrb[0].mxu0 %v1077
      %v1305 = vpop.f32.mrb[0].mxu0
      %v1306 = vadd.f32 %v1046, %v1305
      %v1307 = vpop.f32.mrb[0].mxu0
      %v1308 = vpop.f32.mrb[0].mxu0
      %v1309 = vpop.f32.mrb[0].mxu0
      %1310 = vdwg.mxu0
      %v1311 = vld [vmem:[%s843] sm:$0xf]
      %v1312 = vld [vmem:[%s843 + $0x4] sm:$0xf]
      %v1313 = vld [vmem:[%s843 + $0x8] sm:$0xf]
      %v1314 = vld [vmem:[%s843 + $0xc] sm:$0xf]
      %v1315 = vld [vmem:[%s843 + $0x10] sm:$0xf]
      %v1316 = vld [vmem:[%s843 + $0x14] sm:$0xf]
      %v1317 = vld [vmem:[%s843 + $0x18] sm:$0xf]
      %v1318 = vld [vmem:[%s843 + $0x1c] sm:$0xf]
      %v1319 = vld [vmem:[%s843 + $0x20] sm:$0xf]
      %v1320 = vld [vmem:[%s843 + $0x24] sm:$0xf]
      %v1321 = vld [vmem:[%s843 + $0x28] sm:$0xf]
      %v1322 = vld [vmem:[%s843 + $0x2c] sm:$0xf]
      %v1323 = vld [vmem:[%s843 + $0x30] sm:$0xf]
      %v1324 = vld [vmem:[%s843 + $0x34] sm:$0xf]
      %v1325 = vld [vmem:[%s843 + $0x38] sm:$0xf]
      %v1326 = vld [vmem:[%s843 + $0x3c] sm:$0xf]
      %v1327 = vld [vmem:[%s843 + $0x40] sm:$0xf]
      %v1328 = vld [vmem:[%s843 + $0x44] sm:$0xf]
      %v1329 = vld [vmem:[%s843 + $0x48] sm:$0xf]
      %v1330 = vld [vmem:[%s843 + $0x4c] sm:$0xf]
      %v1331 = vld [vmem:[%s843 + $0x50] sm:$0xf]
      %v1332 = vld [vmem:[%s843 + $0x54] sm:$0xf]
      %v1333 = vld [vmem:[%s843 + $0x58] sm:$0xf]
      %v1334 = vld [vmem:[%s843 + $0x5c] sm:$0xf]
      %v1335 = vld [vmem:[%s843 + $0x60] sm:$0xf]
      %v1336 = vld [vmem:[%s843 + $0x64] sm:$0xf]
      %v1337 = vld [vmem:[%s843 + $0x68] sm:$0xf]
      %v1338 = vld [vmem:[%s843 + $0x6c] sm:$0xf]
      %v1339 = vld [vmem:[%s843 + $0x70] sm:$0xf]
      %v1340 = vld [vmem:[%s843 + $0x74] sm:$0xf]
      %v1341 = vld [vmem:[%s843 + $0x78] sm:$0xf]
      %v1342 = vld [vmem:[%s843 + $0x7c] sm:$0xf]
      %v1343 = vld [vmem:[%s847] sm:$0x1]
      %v1344 = vld [vmem:[%s847 + $0x1] sm:$0x1]
      %v1345 = vld [vmem:[%s847 + $0x2] sm:$0x1]
      %v1346 = vld [vmem:[%s847 + $0x3] sm:$0x1]
      %v1351 = vlaneseq
      %v1352 = vshrl.u32 %v1351, 7
      %v1353 = vsub.s32 0, %v1352
      %v1354 = vrot.slane %v1343, %v1353
      %v1355 = vlaneseq
      %v1356 = vshrl.u32 %v1355, 7
      %v1357 = vsub.s32 0, %v1356
      %v1358 = vrot.slane %v1344, %v1357
      %v1359 = vlaneseq
      %v1360 = vshrl.u32 %v1359, 7
      %v1361 = vsub.s32 0, %v1360
      %v1362 = vrot.slane %v1345, %v1361
      %v1363 = vlaneseq
      %v1364 = vshrl.u32 %v1363, 7
      %v1365 = vsub.s32 0, %v1364
      %v1366 = vrot.slane %v1346, %v1365
      %v1379 = vunpack.c.l.b16 %v1311
      %v1380 = vunpack.c.l.b16 %v1312
      %v1381 = vunpack.c.l.b16 %v1313
      %v1382 = vunpack.c.l.b16 %v1314
      %v1383 = vunpack.c.l.b16 %v1315
      %v1384 = vunpack.c.l.b16 %v1316
      %v1385 = vunpack.c.l.b16 %v1317
      %v1386 = vunpack.c.l.b16 %v1318
      %v1387 = vpack.c.b16 %v1380, %v1379
      %v1388 = vpack.c.b16 %v1382, %v1381
      %v1389 = vpack.c.b16 %v1384, %v1383
      %v1390 = vpack.c.b16 %v1386, %v1385
      %1395 = vmatprep.subr.bf16.mxu0 0
      %1396 = vmatpush1.bf16.msra.mxu0 %v1387
      %1397 = vmatprep.subr.bf16.mxu0 0
      %1398 = vmatpush1.bf16.msra.mxu0 %v1388
      %1399 = vmatprep.subr.bf16.mxu0 0
      %1400 = vmatpush1.bf16.msra.mxu0 %v1389
      %1401 = vmatprep.subr.bf16.mxu0 0
      %1402 = vmatpush1.bf16.msra.mxu0 %v1390
      %1403 = vmatprep.subr.bf16.mxu0 0
      %1404 = vmatpush1.bf16.msra.mxu0 0
      %1405 = vmatprep.subr.bf16.mxu0 0
      %1406 = vmatpush1.bf16.msra.mxu0 0
      %1407 = vmatprep.subr.bf16.mxu0 0
      %1408 = vmatpush1.bf16.msra.mxu0 0
      %1409 = vmatprep.subr.bf16.mxu0 0
      %1410 = vmatpush1.bf16.msra.mxu0 0
      %1411 = vmatprep.subr.bf16.mxu0 0
      %1412 = vmatpush1.bf16.msra.mxu0 0
      %1413 = vmatprep.subr.bf16.mxu0 0
      %1414 = vmatpush1.bf16.msra.mxu0 0
      %1415 = vmatprep.subr.bf16.mxu0 0
      %1416 = vmatpush1.bf16.msra.mxu0 0
      %1417 = vmatprep.subr.bf16.mxu0 0
      %1418 = vmatpush1.bf16.msra.mxu0 0
      %1419 = vmatprep.subr.bf16.mxu0 0
      %1420 = vmatpush1.bf16.msra.mxu0 0
      %1421 = vmatprep.subr.bf16.mxu0 0
      %1422 = vmatpush1.bf16.msra.mxu0 0
      %1423 = vmatprep.subr.bf16.mxu0 0
      %1424 = vmatpush1.bf16.msra.mxu0 0
      %1425 = vmatprep.subr.bf16.mxu0 0
      %1426 = vmatpush1.bf16.msra.mxu0 0
      %1427 = vmatprep.mubr.bf16.mxu0 0
      %1428 = vmatmul.mubr.bf16.gmra.mrb[0].mxu0 %v1077
      %v1429 = vpop.f32.mrb[0].mxu0
      %v1430 = vadd.f32 %v1354, %v1429
      %v1431 = vpop.f32.mrb[0].mxu0
      %v1432 = vpop.f32.mrb[0].mxu0
      %v1433 = vpop.f32.mrb[0].mxu0
      %1434 = vdwg.mxu0
      %v1443 = vunpack.c.l.b16 %v1319
      %v1444 = vunpack.c.l.b16 %v1320
      %v1445 = vunpack.c.l.b16 %v1321
      %v1446 = vunpack.c.l.b16 %v1322
      %v1447 = vunpack.c.l.b16 %v1323
      %v1448 = vunpack.c.l.b16 %v1324
      %v1449 = vunpack.c.l.b16 %v1325
      %v1450 = vunpack.c.l.b16 %v1326
      %v1451 = vpack.c.b16 %v1444, %v1443
      %v1452 = vpack.c.b16 %v1446, %v1445
      %v1453 = vpack.c.b16 %v1448, %v1447
      %v1454 = vpack.c.b16 %v1450, %v1449
      %1459 = vmatprep.subr.bf16.mxu0 0
      %1460 = vmatpush1.bf16.msra.mxu0 %v1451
      %1461 = vmatprep.subr.bf16.mxu0 0
      %1462 = vmatpush1.bf16.msra.mxu0 %v1452
      %1463 = vmatprep.subr.bf16.mxu0 0
      %1464 = vmatpush1.bf16.msra.mxu0 %v1453
      %1465 = vmatprep.subr.bf16.mxu0 0
      %1466 = vmatpush1.bf16.msra.mxu0 %v1454
      %1467 = vmatprep.subr.bf16.mxu0 0
      %1468 = vmatpush1.bf16.msra.mxu0 0
      %1469 = vmatprep.subr.bf16.mxu0 0
      %1470 = vmatpush1.bf16.msra.mxu0 0
      %1471 = vmatprep.subr.bf16.mxu0 0
      %1472 = vmatpush1.bf16.msra.mxu0 0
      %1473 = vmatprep.subr.bf16.mxu0 0
      %1474 = vmatpush1.bf16.msra.mxu0 0
      %1475 = vmatprep.subr.bf16.mxu0 0
      %1476 = vmatpush1.bf16.msra.mxu0 0
      %1477 = vmatprep.subr.bf16.mxu0 0
      %1478 = vmatpush1.bf16.msra.mxu0 0
      %1479 = vmatprep.subr.bf16.mxu0 0
      %1480 = vmatpush1.bf16.msra.mxu0 0
      %1481 = vmatprep.subr.bf16.mxu0 0
      %1482 = vmatpush1.bf16.msra.mxu0 0
      %1483 = vmatprep.subr.bf16.mxu0 0
      %1484 = vmatpush1.bf16.msra.mxu0 0
      %1485 = vmatprep.subr.bf16.mxu0 0
      %1486 = vmatpush1.bf16.msra.mxu0 0
      %1487 = vmatprep.subr.bf16.mxu0 0
      %1488 = vmatpush1.bf16.msra.mxu0 0
      %1489 = vmatprep.subr.bf16.mxu0 0
      %1490 = vmatpush1.bf16.msra.mxu0 0
      %1491 = vmatprep.mubr.bf16.mxu0 0
      %1492 = vmatmul.mubr.bf16.gmra.mrb[0].mxu0 %v1077
      %v1493 = vpop.f32.mrb[0].mxu0
      %v1494 = vadd.f32 %v1358, %v1493
      %v1495 = vpop.f32.mrb[0].mxu0
      %v1496 = vpop.f32.mrb[0].mxu0
      %v1497 = vpop.f32.mrb[0].mxu0
      %1498 = vdwg.mxu0
      %v1507 = vunpack.c.l.b16 %v1327
      %v1508 = vunpack.c.l.b16 %v1328
      %v1509 = vunpack.c.l.b16 %v1329
      %v1510 = vunpack.c.l.b16 %v1330
      %v1511 = vunpack.c.l.b16 %v1331
      %v1512 = vunpack.c.l.b16 %v1332
      %v1513 = vunpack.c.l.b16 %v1333
      %v1514 = vunpack.c.l.b16 %v1334
      %v1515 = vpack.c.b16 %v1508, %v1507
      %v1516 = vpack.c.b16 %v1510, %v1509
      %v1517 = vpack.c.b16 %v1512, %v1511
      %v1518 = vpack.c.b16 %v1514, %v1513
      %1523 = vmatprep.subr.bf16.mxu0 0
      %1524 = vmatpush1.bf16.msra.mxu0 %v1515
      %1525 = vmatprep.subr.bf16.mxu0 0
      %1526 = vmatpush1.bf16.msra.mxu0 %v1516
      %1527 = vmatprep.subr.bf16.mxu0 0
      %1528 = vmatpush1.bf16.msra.mxu0 %v1517
      %1529 = vmatprep.subr.bf16.mxu0 0
      %1530 = vmatpush1.bf16.msra.mxu0 %v1518
      %1531 = vmatprep.subr.bf16.mxu0 0
      %1532 = vmatpush1.bf16.msra.mxu0 0
      %1533 = vmatprep.subr.bf16.mxu0 0
      %1534 = vmatpush1.bf16.msra.mxu0 0
      %1535 = vmatprep.subr.bf16.mxu0 0
      %1536 = vmatpush1.bf16.msra.mxu0 0
      %1537 = vmatprep.subr.bf16.mxu0 0
      %1538 = vmatpush1.bf16.msra.mxu0 0
      %1539 = vmatprep.subr.bf16.mxu0 0
      %1540 = vmatpush1.bf16.msra.mxu0 0
      %1541 = vmatprep.subr.bf16.mxu0 0
      %1542 = vmatpush1.bf16.msra.mxu0 0
      %1543 = vmatprep.subr.bf16.mxu0 0
      %1544 = vmatpush1.bf16.msra.mxu0 0
      %1545 = vmatprep.subr.bf16.mxu0 0
      %1546 = vmatpush1.bf16.msra.mxu0 0
      %1547 = vmatprep.subr.bf16.mxu0 0
      %1548 = vmatpush1.bf16.msra.mxu0 0
      %1549 = vmatprep.subr.bf16.mxu0 0
      %1550 = vmatpush1.bf16.msra.mxu0 0
      %1551 = vmatprep.subr.bf16.mxu0 0
      %1552 = vmatpush1.bf16.msra.mxu0 0
      %1553 = vmatprep.subr.bf16.mxu0 0
      %1554 = vmatpush1.bf16.msra.mxu0 0
      %1555 = vmatprep.mubr.bf16.mxu0 0
      %1556 = vmatmul.mubr.bf16.gmra.mrb[0].mxu0 %v1077
      %v1557 = vpop.f32.mrb[0].mxu0
      %v1558 = vadd.f32 %v1362, %v1557
      %v1559 = vpop.f32.mrb[0].mxu0
      %v1560 = vpop.f32.mrb[0].mxu0
      %v1561 = vpop.f32.mrb[0].mxu0
      %1562 = vdwg.mxu0
      %v1571 = vunpack.c.l.b16 %v1335
      %v1572 = vunpack.c.l.b16 %v1336
      %v1573 = vunpack.c.l.b16 %v1337
      %v1574 = vunpack.c.l.b16 %v1338
      %v1575 = vunpack.c.l.b16 %v1339
      %v1576 = vunpack.c.l.b16 %v1340
      %v1577 = vunpack.c.l.b16 %v1341
      %v1578 = vunpack.c.l.b16 %v1342
      %v1579 = vpack.c.b16 %v1572, %v1571
      %v1580 = vpack.c.b16 %v1574, %v1573
      %v1581 = vpack.c.b16 %v1576, %v1575
      %v1582 = vpack.c.b16 %v1578, %v1577
      %1587 = vmatprep.subr.bf16.mxu0 0
      %1588 = vmatpush1.bf16.msra.mxu0 %v1579
      %1589 = vmatprep.subr.bf16.mxu0 0
      %1590 = vmatpush1.bf16.msra.mxu0 %v1580
      %1591 = vmatprep.subr.bf16.mxu0 0
      %1592 = vmatpush1.bf16.msra.mxu0 %v1581
      %1593 = vmatprep.subr.bf16.mxu0 0
      %1594 = vmatpush1.bf16.msra.mxu0 %v1582
      %1595 = vmatprep.subr.bf16.mxu0 0
      %1596 = vmatpush1.bf16.msra.mxu0 0
      %1597 = vmatprep.subr.bf16.mxu0 0
      %1598 = vmatpush1.bf16.msra.mxu0 0
      %1599 = vmatprep.subr.bf16.mxu0 0
      %1600 = vmatpush1.bf16.msra.mxu0 0
      %1601 = vmatprep.subr.bf16.mxu0 0
      %1602 = vmatpush1.bf16.msra.mxu0 0
      %1603 = vmatprep.subr.bf16.mxu0 0
      %1604 = vmatpush1.bf16.msra.mxu0 0
      %1605 = vmatprep.subr.bf16.mxu0 0
      %1606 = vmatpush1.bf16.msra.mxu0 0
      %1607 = vmatprep.subr.bf16.mxu0 0
      %1608 = vmatpush1.bf16.msra.mxu0 0
      %1609 = vmatprep.subr.bf16.mxu0 0
      %1610 = vmatpush1.bf16.msra.mxu0 0
      %1611 = vmatprep.subr.bf16.mxu0 0
      %1612 = vmatpush1.bf16.msra.mxu0 0
      %1613 = vmatprep.subr.bf16.mxu0 0
      %1614 = vmatpush1.bf16.msra.mxu0 0
      %1615 = vmatprep.subr.bf16.mxu0 0
      %1616 = vmatpush1.bf16.msra.mxu0 0
      %1617 = vmatprep.subr.bf16.mxu0 0
      %1618 = vmatpush1.bf16.msra.mxu0 0
      %1619 = vmatprep.mubr.bf16.mxu0 0
      %1620 = vmatmul.mubr.bf16.gmra.mrb[0].mxu0 %v1077
      %v1621 = vpop.f32.mrb[0].mxu0
      %v1622 = vadd.f32 %v1366, %v1621
      %v1623 = vpop.f32.mrb[0].mxu0
      %v1624 = vpop.f32.mrb[0].mxu0
      %v1625 = vpop.f32.mrb[0].mxu0
      %1626 = vdwg.mxu0
      %v1627 = vld [vmem:[%s852] sm:$0xf]
      %v1628 = vld [vmem:[%s852 + $0x4] sm:$0xf]
      %v1629 = vld [vmem:[%s852 + $0x8] sm:$0xf]
      %v1630 = vld [vmem:[%s852 + $0xc] sm:$0xf]
      %v1631 = vld [vmem:[%s852 + $0x10] sm:$0xf]
      %v1632 = vld [vmem:[%s852 + $0x14] sm:$0xf]
      %v1633 = vld [vmem:[%s852 + $0x18] sm:$0xf]
      %v1634 = vld [vmem:[%s852 + $0x1c] sm:$0xf]
      %v1635 = vld [vmem:[%s852 + $0x20] sm:$0xf]
      %v1636 = vld [vmem:[%s852 + $0x24] sm:$0xf]
      %v1637 = vld [vmem:[%s852 + $0x28] sm:$0xf]
      %v1638 = vld [vmem:[%s852 + $0x2c] sm:$0xf]
      %v1639 = vld [vmem:[%s852 + $0x30] sm:$0xf]
      %v1640 = vld [vmem:[%s852 + $0x34] sm:$0xf]
      %v1641 = vld [vmem:[%s852 + $0x38] sm:$0xf]
      %v1642 = vld [vmem:[%s852 + $0x3c] sm:$0xf]
      %v1643 = vld [vmem:[%s852 + $0x40] sm:$0xf]
      %v1644 = vld [vmem:[%s852 + $0x44] sm:$0xf]
      %v1645 = vld [vmem:[%s852 + $0x48] sm:$0xf]
      %v1646 = vld [vmem:[%s852 + $0x4c] sm:$0xf]
      %v1647 = vld [vmem:[%s852 + $0x50] sm:$0xf]
      %v1648 = vld [vmem:[%s852 + $0x54] sm:$0xf]
      %v1649 = vld [vmem:[%s852 + $0x58] sm:$0xf]
      %v1650 = vld [vmem:[%s852 + $0x5c] sm:$0xf]
      %v1651 = vld [vmem:[%s852 + $0x60] sm:$0xf]
      %v1652 = vld [vmem:[%s852 + $0x64] sm:$0xf]
      %v1653 = vld [vmem:[%s852 + $0x68] sm:$0xf]
      %v1654 = vld [vmem:[%s852 + $0x6c] sm:$0xf]
      %v1655 = vld [vmem:[%s852 + $0x70] sm:$0xf]
      %v1656 = vld [vmem:[%s852 + $0x74] sm:$0xf]
      %v1657 = vld [vmem:[%s852 + $0x78] sm:$0xf]
      %v1658 = vld [vmem:[%s852 + $0x7c] sm:$0xf]
      %v1659 = vld [vmem:[%s856] sm:$0x1]
      %v1660 = vld [vmem:[%s856 + $0x1] sm:$0x1]
      %v1661 = vld [vmem:[%s856 + $0x2] sm:$0x1]
      %v1662 = vld [vmem:[%s856 + $0x3] sm:$0x1]
      %v1667 = vlaneseq
      %v1668 = vshrl.u32 %v1667, 7
      %v1669 = vsub.s32 0, %v1668
      %v1670 = vrot.slane %v1659, %v1669
      %v1671 = vlaneseq
      %v1672 = vshrl.u32 %v1671, 7
      %v1673 = vsub.s32 0, %v1672
      %v1674 = vrot.slane %v1660, %v1673
      %v1675 = vlaneseq
      %v1676 = vshrl.u32 %v1675, 7
      %v1677 = vsub.s32 0, %v1676
      %v1678 = vrot.slane %v1661, %v1677
      %v1679 = vlaneseq
      %v1680 = vshrl.u32 %v1679, 7
      %v1681 = vsub.s32 0, %v1680
      %v1682 = vrot.slane %v1662, %v1681
      %v1695 = vunpack.c.l.b16 %v1627
      %v1696 = vunpack.c.l.b16 %v1628
      %v1697 = vunpack.c.l.b16 %v1629
      %v1698 = vunpack.c.l.b16 %v1630
      %v1699 = vunpack.c.l.b16 %v1631
      %v1700 = vunpack.c.l.b16 %v1632
      %v1701 = vunpack.c.l.b16 %v1633
      %v1702 = vunpack.c.l.b16 %v1634
      %v1703 = vpack.c.b16 %v1696, %v1695
      %v1704 = vpack.c.b16 %v1698, %v1697
      %v1705 = vpack.c.b16 %v1700, %v1699
      %v1706 = vpack.c.b16 %v1702, %v1701
      %1711 = vmatprep.subr.bf16.mxu0 0
      %1712 = vmatpush1.bf16.msra.mxu0 %v1703
      %1713 = vmatprep.subr.bf16.mxu0 0
      %1714 = vmatpush1.bf16.msra.mxu0 %v1704
      %1715 = vmatprep.subr.bf16.mxu0 0
      %1716 = vmatpush1.bf16.msra.mxu0 %v1705
      %1717 = vmatprep.subr.bf16.mxu0 0
      %1718 = vmatpush1.bf16.msra.mxu0 %v1706
      %1719 = vmatprep.subr.bf16.mxu0 0
      %1720 = vmatpush1.bf16.msra.mxu0 0
      %1721 = vmatprep.subr.bf16.mxu0 0
      %1722 = vmatpush1.bf16.msra.mxu0 0
      %1723 = vmatprep.subr.bf16.mxu0 0
      %1724 = vmatpush1.bf16.msra.mxu0 0
      %1725 = vmatprep.subr.bf16.mxu0 0
      %1726 = vmatpush1.bf16.msra.mxu0 0
      %1727 = vmatprep.subr.bf16.mxu0 0
      %1728 = vmatpush1.bf16.msra.mxu0 0
      %1729 = vmatprep.subr.bf16.mxu0 0
      %1730 = vmatpush1.bf16.msra.mxu0 0
      %1731 = vmatprep.subr.bf16.mxu0 0
      %1732 = vmatpush1.bf16.msra.mxu0 0
      %1733 = vmatprep.subr.bf16.mxu0 0
      %1734 = vmatpush1.bf16.msra.mxu0 0
      %1735 = vmatprep.subr.bf16.mxu0 0
      %1736 = vmatpush1.bf16.msra.mxu0 0
      %1737 = vmatprep.subr.bf16.mxu0 0
      %1738 = vmatpush1.bf16.msra.mxu0 0
      %1739 = vmatprep.subr.bf16.mxu0 0
      %1740 = vmatpush1.bf16.msra.mxu0 0
      %1741 = vmatprep.subr.bf16.mxu0 0
      %1742 = vmatpush1.bf16.msra.mxu0 0
      %1743 = vmatprep.mubr.bf16.mxu0 0
      %1744 = vmatmul.mubr.bf16.gmra.mrb[0].mxu0 %v1077
      %v1745 = vpop.f32.mrb[0].mxu0
      %v1746 = vadd.f32 %v1670, %v1745
      %v1747 = vpop.f32.mrb[0].mxu0
      %v1748 = vpop.f32.mrb[0].mxu0
      %v1749 = vpop.f32.mrb[0].mxu0
      %1750 = vdwg.mxu0
      %v1759 = vunpack.c.l.b16 %v1635
      %v1760 = vunpack.c.l.b16 %v1636
      %v1761 = vunpack.c.l.b16 %v1637
      %v1762 = vunpack.c.l.b16 %v1638
      %v1763 = vunpack.c.l.b16 %v1639
      %v1764 = vunpack.c.l.b16 %v1640
      %v1765 = vunpack.c.l.b16 %v1641
      %v1766 = vunpack.c.l.b16 %v1642
      %v1767 = vpack.c.b16 %v1760, %v1759
      %v1768 = vpack.c.b16 %v1762, %v1761
      %v1769 = vpack.c.b16 %v1764, %v1763
      %v1770 = vpack.c.b16 %v1766, %v1765
      %1775 = vmatprep.subr.bf16.mxu0 0
      %1776 = vmatpush1.bf16.msra.mxu0 %v1767
      %1777 = vmatprep.subr.bf16.mxu0 0
      %1778 = vmatpush1.bf16.msra.mxu0 %v1768
      %1779 = vmatprep.subr.bf16.mxu0 0
      %1780 = vmatpush1.bf16.msra.mxu0 %v1769
      %1781 = vmatprep.subr.bf16.mxu0 0
      %1782 = vmatpush1.bf16.msra.mxu0 %v1770
      %1783 = vmatprep.subr.bf16.mxu0 0
      %1784 = vmatpush1.bf16.msra.mxu0 0
      %1785 = vmatprep.subr.bf16.mxu0 0
      %1786 = vmatpush1.bf16.msra.mxu0 0
      %1787 = vmatprep.subr.bf16.mxu0 0
      %1788 = vmatpush1.bf16.msra.mxu0 0
      %1789 = vmatprep.subr.bf16.mxu0 0
      %1790 = vmatpush1.bf16.msra.mxu0 0
      %1791 = vmatprep.subr.bf16.mxu0 0
      %1792 = vmatpush1.bf16.msra.mxu0 0
      %1793 = vmatprep.subr.bf16.mxu0 0
      %1794 = vmatpush1.bf16.msra.mxu0 0
      %1795 = vmatprep.subr.bf16.mxu0 0
      %1796 = vmatpush1.bf16.msra.mxu0 0
      %1797 = vmatprep.subr.bf16.mxu0 0
      %1798 = vmatpush1.bf16.msra.mxu0 0
      %1799 = vmatprep.subr.bf16.mxu0 0
      %1800 = vmatpush1.bf16.msra.mxu0 0
      %1801 = vmatprep.subr.bf16.mxu0 0
      %1802 = vmatpush1.bf16.msra.mxu0 0
      %1803 = vmatprep.subr.bf16.mxu0 0
      %1804 = vmatpush1.bf16.msra.mxu0 0
      %1805 = vmatprep.subr.bf16.mxu0 0
      %1806 = vmatpush1.bf16.msra.mxu0 0
      %1807 = vmatprep.mubr.bf16.mxu0 0
      %1808 = vmatmul.mubr.bf16.gmra.mrb[0].mxu0 %v1077
      %v1809 = vpop.f32.mrb[0].mxu0
      %v1810 = vadd.f32 %v1674, %v1809
      %v1811 = vpop.f32.mrb[0].mxu0
      %v1812 = vpop.f32.mrb[0].mxu0
      %v1813 = vpop.f32.mrb[0].mxu0
      %1814 = vdwg.mxu0
      %v1823 = vunpack.c.l.b16 %v1643
      %v1824 = vunpack.c.l.b16 %v1644
      %v1825 = vunpack.c.l.b16 %v1645
      %v1826 = vunpack.c.l.b16 %v1646
      %v1827 = vunpack.c.l.b16 %v1647
      %v1828 = vunpack.c.l.b16 %v1648
      %v1829 = vunpack.c.l.b16 %v1649
      %v1830 = vunpack.c.l.b16 %v1650
      %v1831 = vpack.c.b16 %v1824, %v1823
      %v1832 = vpack.c.b16 %v1826, %v1825
      %v1833 = vpack.c.b16 %v1828, %v1827
      %v1834 = vpack.c.b16 %v1830, %v1829
      %1839 = vmatprep.subr.bf16.mxu0 0
      %1840 = vmatpush1.bf16.msra.mxu0 %v1831
      %1841 = vmatprep.subr.bf16.mxu0 0
      %1842 = vmatpush1.bf16.msra.mxu0 %v1832
      %1843 = vmatprep.subr.bf16.mxu0 0
      %1844 = vmatpush1.bf16.msra.mxu0 %v1833
      %1845 = vmatprep.subr.bf16.mxu0 0
      %1846 = vmatpush1.bf16.msra.mxu0 %v1834
      %1847 = vmatprep.subr.bf16.mxu0 0
      %1848 = vmatpush1.bf16.msra.mxu0 0
      %1849 = vmatprep.subr.bf16.mxu0 0
      %1850 = vmatpush1.bf16.msra.mxu0 0
      %1851 = vmatprep.subr.bf16.mxu0 0
      %1852 = vmatpush1.bf16.msra.mxu0 0
      %1853 = vmatprep.subr.bf16.mxu0 0
      %1854 = vmatpush1.bf16.msra.mxu0 0
      %1855 = vmatprep.subr.bf16.mxu0 0
      %1856 = vmatpush1.bf16.msra.mxu0 0
      %1857 = vmatprep.subr.bf16.mxu0 0
      %1858 = vmatpush1.bf16.msra.mxu0 0
      %1859 = vmatprep.subr.bf16.mxu0 0
      %1860 = vmatpush1.bf16.msra.mxu0 0
      %1861 = vmatprep.subr.bf16.mxu0 0
      %1862 = vmatpush1.bf16.msra.mxu0 0
      %1863 = vmatprep.subr.bf16.mxu0 0
      %1864 = vmatpush1.bf16.msra.mxu0 0
      %1865 = vmatprep.subr.bf16.mxu0 0
      %1866 = vmatpush1.bf16.msra.mxu0 0
      %1867 = vmatprep.subr.bf16.mxu0 0
      %1868 = vmatpush1.bf16.msra.mxu0 0
      %1869 = vmatprep.subr.bf16.mxu0 0
      %1870 = vmatpush1.bf16.msra.mxu0 0
      %1871 = vmatprep.mubr.bf16.mxu0 0
      %1872 = vmatmul.mubr.bf16.gmra.mrb[0].mxu0 %v1077
      %v1873 = vpop.f32.mrb[0].mxu0
      %v1874 = vadd.f32 %v1678, %v1873
      %v1875 = vpop.f32.mrb[0].mxu0
      %v1876 = vpop.f32.mrb[0].mxu0
      %v1877 = vpop.f32.mrb[0].mxu0
      %1878 = vdwg.mxu0
      %v1887 = vunpack.c.l.b16 %v1651
      %v1888 = vunpack.c.l.b16 %v1652
      %v1889 = vunpack.c.l.b16 %v1653
      %v1890 = vunpack.c.l.b16 %v1654
      %v1891 = vunpack.c.l.b16 %v1655
      %v1892 = vunpack.c.l.b16 %v1656
      %v1893 = vunpack.c.l.b16 %v1657
      %v1894 = vunpack.c.l.b16 %v1658
      %v1895 = vpack.c.b16 %v1888, %v1887
      %v1896 = vpack.c.b16 %v1890, %v1889
      %v1897 = vpack.c.b16 %v1892, %v1891
      %v1898 = vpack.c.b16 %v1894, %v1893
      %1903 = vmatprep.subr.bf16.mxu0 0
      %1904 = vmatpush1.bf16.msra.mxu0 %v1895
      %1905 = vmatprep.subr.bf16.mxu0 0
      %1906 = vmatpush1.bf16.msra.mxu0 %v1896
      %1907 = vmatprep.subr.bf16.mxu0 0
      %1908 = vmatpush1.bf16.msra.mxu0 %v1897
      %1909 = vmatprep.subr.bf16.mxu0 0
      %1910 = vmatpush1.bf16.msra.mxu0 %v1898
      %1911 = vmatprep.subr.bf16.mxu0 0
      %1912 = vmatpush1.bf16.msra.mxu0 0
      %1913 = vmatprep.subr.bf16.mxu0 0
      %1914 = vmatpush1.bf16.msra.mxu0 0
      %1915 = vmatprep.subr.bf16.mxu0 0
      %1916 = vmatpush1.bf16.msra.mxu0 0
      %1917 = vmatprep.subr.bf16.mxu0 0
      %1918 = vmatpush1.bf16.msra.mxu0 0
      %1919 = vmatprep.subr.bf16.mxu0 0
      %1920 = vmatpush1.bf16.msra.mxu0 0
      %1921 = vmatprep.subr.bf16.mxu0 0
      %1922 = vmatpush1.bf16.msra.mxu0 0
      %1923 = vmatprep.subr.bf16.mxu0 0
      %1924 = vmatpush1.bf16.msra.mxu0 0
      %1925 = vmatprep.subr.bf16.mxu0 0
      %1926 = vmatpush1.bf16.msra.mxu0 0
      %1927 = vmatprep.subr.bf16.mxu0 0
      %1928 = vmatpush1.bf16.msra.mxu0 0
      %1929 = vmatprep.subr.bf16.mxu0 0
      %1930 = vmatpush1.bf16.msra.mxu0 0
      %1931 = vmatprep.subr.bf16.mxu0 0
      %1932 = vmatpush1.bf16.msra.mxu0 0
      %1933 = vmatprep.subr.bf16.mxu0 0
      %1934 = vmatpush1.bf16.msra.mxu0 0
      %1935 = vmatprep.mubr.bf16.mxu0 0
      %1936 = vmatmul.mubr.bf16.gmra.mrb[0].mxu0 %v1077
      %v1937 = vpop.f32.mrb[0].mxu0
      %v1938 = vadd.f32 %v1682, %v1937
      %v1939 = vpop.f32.mrb[0].mxu0
      %v1940 = vpop.f32.mrb[0].mxu0
      %v1941 = vpop.f32.mrb[0].mxu0
      %1942 = vdwg.mxu0
      %vm1943 = vcmask 130048
      %v1945 = vsel %vm1943, %v1114, 0
      %v1948 = vsel %vm1943, %v1430, 0
      %1950 = vmatprep.subr.mxu0 0.0
      %1951 = vmatpush1.xpose.msra.mxu0 %v1948
      %1952 = vmatprep.subr.mxu0 0.0
      %1953 = vmatpush1.xpose.msra.mxu0 0.0
      %1954 = vmatprep.subr.mxu0 0.0
      %1955 = vmatpush1.xpose.msra.mxu0 0.0
      %1956 = vmatprep.subr.mxu0 0.0
      %1957 = vmatpush1.xpose.msra.mxu0 0.0
      %1958 = vmatprep.subr.mxu0 0.0
      %1959 = vmatpush1.xpose.msra.mxu0 0.0
      %1960 = vmatprep.subr.mxu0 0.0
      %1961 = vmatpush1.xpose.msra.mxu0 0.0
      %1962 = vmatprep.subr.mxu0 0.0
      %1963 = vmatpush1.xpose.msra.mxu0 0.0
      %1964 = vmatprep.subr.mxu0 0.0
      %1965 = vmatpush1.xpose.msra.mxu0 0.0
      %1966 = vmatprep.subr.mxu0 0.0
      %1967 = vmatpush1.xpose.msra.mxu0 0.0
      %1968 = vmatprep.subr.mxu0 0.0
      %1969 = vmatpush1.xpose.msra.mxu0 0.0
      %1970 = vmatprep.subr.mxu0 0.0
      %1971 = vmatpush1.xpose.msra.mxu0 0.0
      %1972 = vmatprep.subr.mxu0 0.0
      %1973 = vmatpush1.xpose.msra.mxu0 0.0
      %1974 = vmatprep.subr.mxu0 0.0
      %1975 = vmatpush1.xpose.msra.mxu0 0.0
      %1976 = vmatprep.subr.mxu0 0.0
      %1977 = vmatpush1.xpose.msra.mxu0 0.0
      %1978 = vmatprep.subr.mxu0 0.0
      %1979 = vmatpush1.xpose.msra.mxu0 0.0
      %1980 = vmatprep.subr.mxu0 0.0
      %1981 = vmatpush1.xpose.msra.mxu0 0.0
      %1982 = vmatprep.subr.mxu0 0.0
      %1983 = vmatpush1.xpose.msra.mxu0 0.0
      %1984 = vmatprep.subr.mxu0 0.0
      %1985 = vmatpush1.xpose.msra.mxu0 0.0
      %1986 = vmatprep.subr.mxu0 0.0
      %1987 = vmatpush1.xpose.msra.mxu0 0.0
      %1988 = vmatprep.subr.mxu0 0.0
      %1989 = vmatpush1.xpose.msra.mxu0 0.0
      %1990 = vmatprep.subr.mxu0 0.0
      %1991 = vmatpush1.xpose.msra.mxu0 0.0
      %1992 = vmatprep.subr.mxu0 0.0
      %1993 = vmatpush1.xpose.msra.mxu0 0.0
      %1994 = vmatprep.subr.mxu0 0.0
      %1995 = vmatpush1.xpose.msra.mxu0 0.0
      %1996 = vmatprep.subr.mxu0 0.0
      %1997 = vmatpush1.xpose.msra.mxu0 0.0
      %1998 = vmatprep.subr.mxu0 0.0
      %1999 = vmatpush1.xpose.msra.mxu0 0.0
      %2000 = vmatprep.subr.mxu0 0.0
      %2001 = vmatpush1.xpose.msra.mxu0 0.0
      %2002 = vmatprep.subr.mxu0 0.0
      %2003 = vmatpush1.xpose.msra.mxu0 0.0
      %2004 = vmatprep.subr.mxu0 0.0
      %2005 = vmatpush1.xpose.msra.mxu0 0.0
      %2006 = vmatprep.subr.mxu0 0.0
      %2007 = vmatpush1.xpose.msra.mxu0 0.0
      %2008 = vmatprep.subr.mxu0 0.0
      %2009 = vmatpush1.xpose.msra.mxu0 0.0
      %2010 = vmatprep.subr.mxu0 0.0
      %2011 = vmatpush1.xpose.msra.mxu0 0.0
      %2012 = vmatprep.subr.mxu0 0.0
      %2013 = vmatpush1.xpose.msra.mxu0 0.0
      %2014 = vmatprep.mubr.f32.mxu0 0.0
      %2015 = vmatmul.mubr.f32.gmra.mrb[0].mxu0 %v1945
      %v2016 = vpop.f32.mrb[0].mxu0
      %v2017 = vadd.f32 0.0, %v2016
      %v2018 = vpop.f32.mrb[0].mxu0
      %2019 = vdwg.mxu0
      %v2021 = vsel %vm1943, %v1178, 0
      %v2024 = vsel %vm1943, %v1494, 0
      %2026 = vmatprep.subr.mxu0 0.0
      %2027 = vmatpush1.xpose.msra.mxu0 %v2024
      %2028 = vmatprep.subr.mxu0 0.0
      %2029 = vmatpush1.xpose.msra.mxu0 0.0
      %2030 = vmatprep.subr.mxu0 0.0
      %2031 = vmatpush1.xpose.msra.mxu0 0.0
      %2032 = vmatprep.subr.mxu0 0.0
      %2033 = vmatpush1.xpose.msra.mxu0 0.0
      %2034 = vmatprep.subr.mxu0 0.0
      %2035 = vmatpush1.xpose.msra.mxu0 0.0
      %2036 = vmatprep.subr.mxu0 0.0
      %2037 = vmatpush1.xpose.msra.mxu0 0.0
      %2038 = vmatprep.subr.mxu0 0.0
      %2039 = vmatpush1.xpose.msra.mxu0 0.0
      %2040 = vmatprep.subr.mxu0 0.0
      %2041 = vmatpush1.xpose.msra.mxu0 0.0
      %2042 = vmatprep.subr.mxu0 0.0
      %2043 = vmatpush1.xpose.msra.mxu0 0.0
      %2044 = vmatprep.subr.mxu0 0.0
      %2045 = vmatpush1.xpose.msra.mxu0 0.0
      %2046 = vmatprep.subr.mxu0 0.0
      %2047 = vmatpush1.xpose.msra.mxu0 0.0
      %2048 = vmatprep.subr.mxu0 0.0
      %2049 = vmatpush1.xpose.msra.mxu0 0.0
      %2050 = vmatprep.subr.mxu0 0.0
      %2051 = vmatpush1.xpose.msra.mxu0 0.0
      %2052 = vmatprep.subr.mxu0 0.0
      %2053 = vmatpush1.xpose.msra.mxu0 0.0
      %2054 = vmatprep.subr.mxu0 0.0
      %2055 = vmatpush1.xpose.msra.mxu0 0.0
      %2056 = vmatprep.subr.mxu0 0.0
      %2057 = vmatpush1.xpose.msra.mxu0 0.0
      %2058 = vmatprep.subr.mxu0 0.0
      %2059 = vmatpush1.xpose.msra.mxu0 0.0
      %2060 = vmatprep.subr.mxu0 0.0
      %2061 = vmatpush1.xpose.msra.mxu0 0.0
      %2062 = vmatprep.subr.mxu0 0.0
      %2063 = vmatpush1.xpose.msra.mxu0 0.0
      %2064 = vmatprep.subr.mxu0 0.0
      %2065 = vmatpush1.xpose.msra.mxu0 0.0
      %2066 = vmatprep.subr.mxu0 0.0
      %2067 = vmatpush1.xpose.msra.mxu0 0.0
      %2068 = vmatprep.subr.mxu0 0.0
      %2069 = vmatpush1.xpose.msra.mxu0 0.0
      %2070 = vmatprep.subr.mxu0 0.0
      %2071 = vmatpush1.xpose.msra.mxu0 0.0
      %2072 = vmatprep.subr.mxu0 0.0
      %2073 = vmatpush1.xpose.msra.mxu0 0.0
      %2074 = vmatprep.subr.mxu0 0.0
      %2075 = vmatpush1.xpose.msra.mxu0 0.0
      %2076 = vmatprep.subr.mxu0 0.0
      %2077 = vmatpush1.xpose.msra.mxu0 0.0
      %2078 = vmatprep.subr.mxu0 0.0
      %2079 = vmatpush1.xpose.msra.mxu0 0.0
      %2080 = vmatprep.subr.mxu0 0.0
      %2081 = vmatpush1.xpose.msra.mxu0 0.0
      %2082 = vmatprep.subr.mxu0 0.0
      %2083 = vmatpush1.xpose.msra.mxu0 0.0
      %2084 = vmatprep.subr.mxu0 0.0
      %2085 = vmatpush1.xpose.msra.mxu0 0.0
      %2086 = vmatprep.subr.mxu0 0.0
      %2087 = vmatpush1.xpose.msra.mxu0 0.0
      %2088 = vmatprep.subr.mxu0 0.0
      %2089 = vmatpush1.xpose.msra.mxu0 0.0
      %2090 = vmatprep.mubr.f32.mxu0 0.0
      %2091 = vmatmul.mubr.f32.gmra.mrb[0].mxu0 %v2021
      %v2092 = vpop.f32.mrb[0].mxu0
      %v2093 = vadd.f32 0.0, %v2092
      %v2094 = vpop.f32.mrb[0].mxu0
      %2095 = vdwg.mxu0
      %v2097 = vsel %vm1943, %v1242, 0
      %v2100 = vsel %vm1943, %v1558, 0
      %2102 = vmatprep.subr.mxu0 0.0
      %2103 = vmatpush1.xpose.msra.mxu0 %v2100
      %2104 = vmatprep.subr.mxu0 0.0
      %2105 = vmatpush1.xpose.msra.mxu0 0.0
      %2106 = vmatprep.subr.mxu0 0.0
      %2107 = vmatpush1.xpose.msra.mxu0 0.0
      %2108 = vmatprep.subr.mxu0 0.0
      %2109 = vmatpush1.xpose.msra.mxu0 0.0
      %2110 = vmatprep.subr.mxu0 0.0
      %2111 = vmatpush1.xpose.msra.mxu0 0.0
      %2112 = vmatprep.subr.mxu0 0.0
      %2113 = vmatpush1.xpose.msra.mxu0 0.0
      %2114 = vmatprep.subr.mxu0 0.0
      %2115 = vmatpush1.xpose.msra.mxu0 0.0
      %2116 = vmatprep.subr.mxu0 0.0
      %2117 = vmatpush1.xpose.msra.mxu0 0.0
      %2118 = vmatprep.subr.mxu0 0.0
      %2119 = vmatpush1.xpose.msra.mxu0 0.0
      %2120 = vmatprep.subr.mxu0 0.0
      %2121 = vmatpush1.xpose.msra.mxu0 0.0
      %2122 = vmatprep.subr.mxu0 0.0
      %2123 = vmatpush1.xpose.msra.mxu0 0.0
      %2124 = vmatprep.subr.mxu0 0.0
      %2125 = vmatpush1.xpose.msra.mxu0 0.0
      %2126 = vmatprep.subr.mxu0 0.0
      %2127 = vmatpush1.xpose.msra.mxu0 0.0
      %2128 = vmatprep.subr.mxu0 0.0
      %2129 = vmatpush1.xpose.msra.mxu0 0.0
      %2130 = vmatprep.subr.mxu0 0.0
      %2131 = vmatpush1.xpose.msra.mxu0 0.0
      %2132 = vmatprep.subr.mxu0 0.0
      %2133 = vmatpush1.xpose.msra.mxu0 0.0
      %2134 = vmatprep.subr.mxu0 0.0
      %2135 = vmatpush1.xpose.msra.mxu0 0.0
      %2136 = vmatprep.subr.mxu0 0.0
      %2137 = vmatpush1.xpose.msra.mxu0 0.0
      %2138 = vmatprep.subr.mxu0 0.0
      %2139 = vmatpush1.xpose.msra.mxu0 0.0
      %2140 = vmatprep.subr.mxu0 0.0
      %2141 = vmatpush1.xpose.msra.mxu0 0.0
      %2142 = vmatprep.subr.mxu0 0.0
      %2143 = vmatpush1.xpose.msra.mxu0 0.0
      %2144 = vmatprep.subr.mxu0 0.0
      %2145 = vmatpush1.xpose.msra.mxu0 0.0
      %2146 = vmatprep.subr.mxu0 0.0
      %2147 = vmatpush1.xpose.msra.mxu0 0.0
      %2148 = vmatprep.subr.mxu0 0.0
      %2149 = vmatpush1.xpose.msra.mxu0 0.0
      %2150 = vmatprep.subr.mxu0 0.0
      %2151 = vmatpush1.xpose.msra.mxu0 0.0
      %2152 = vmatprep.subr.mxu0 0.0
      %2153 = vmatpush1.xpose.msra.mxu0 0.0
      %2154 = vmatprep.subr.mxu0 0.0
      %2155 = vmatpush1.xpose.msra.mxu0 0.0
      %2156 = vmatprep.subr.mxu0 0.0
      %2157 = vmatpush1.xpose.msra.mxu0 0.0
      %2158 = vmatprep.subr.mxu0 0.0
      %2159 = vmatpush1.xpose.msra.mxu0 0.0
      %2160 = vmatprep.subr.mxu0 0.0
      %2161 = vmatpush1.xpose.msra.mxu0 0.0
      %2162 = vmatprep.subr.mxu0 0.0
      %2163 = vmatpush1.xpose.msra.mxu0 0.0
      %2164 = vmatprep.subr.mxu0 0.0
      %2165 = vmatpush1.xpose.msra.mxu0 0.0
      %2166 = vmatprep.mubr.f32.mxu0 0.0
      %2167 = vmatmul.mubr.f32.gmra.mrb[0].mxu0 %v2097
      %v2168 = vpop.f32.mrb[0].mxu0
      %v2169 = vadd.f32 0.0, %v2168
      %v2170 = vpop.f32.mrb[0].mxu0
      %2171 = vdwg.mxu0
      %v2173 = vsel %vm1943, %v1306, 0
      %v2176 = vsel %vm1943, %v1622, 0
      %2178 = vmatprep.subr.mxu0 0.0
      %2179 = vmatpush1.xpose.msra.mxu0 %v2176
      %2180 = vmatprep.subr.mxu0 0.0
      %2181 = vmatpush1.xpose.msra.mxu0 0.0
      %2182 = vmatprep.subr.mxu0 0.0
      %2183 = vmatpush1.xpose.msra.mxu0 0.0
      %2184 = vmatprep.subr.mxu0 0.0
      %2185 = vmatpush1.xpose.msra.mxu0 0.0
      %2186 = vmatprep.subr.mxu0 0.0
      %2187 = vmatpush1.xpose.msra.mxu0 0.0
      %2188 = vmatprep.subr.mxu0 0.0
      %2189 = vmatpush1.xpose.msra.mxu0 0.0
      %2190 = vmatprep.subr.mxu0 0.0
      %2191 = vmatpush1.xpose.msra.mxu0 0.0
      %2192 = vmatprep.subr.mxu0 0.0
      %2193 = vmatpush1.xpose.msra.mxu0 0.0
      %2194 = vmatprep.subr.mxu0 0.0
      %2195 = vmatpush1.xpose.msra.mxu0 0.0
      %2196 = vmatprep.subr.mxu0 0.0
      %2197 = vmatpush1.xpose.msra.mxu0 0.0
      %2198 = vmatprep.subr.mxu0 0.0
      %2199 = vmatpush1.xpose.msra.mxu0 0.0
      %2200 = vmatprep.subr.mxu0 0.0
      %2201 = vmatpush1.xpose.msra.mxu0 0.0
      %2202 = vmatprep.subr.mxu0 0.0
      %2203 = vmatpush1.xpose.msra.mxu0 0.0
      %2204 = vmatprep.subr.mxu0 0.0
      %2205 = vmatpush1.xpose.msra.mxu0 0.0
      %2206 = vmatprep.subr.mxu0 0.0
      %2207 = vmatpush1.xpose.msra.mxu0 0.0
      %2208 = vmatprep.subr.mxu0 0.0
      %2209 = vmatpush1.xpose.msra.mxu0 0.0
      %2210 = vmatprep.subr.mxu0 0.0
      %2211 = vmatpush1.xpose.msra.mxu0 0.0
      %2212 = vmatprep.subr.mxu0 0.0
      %2213 = vmatpush1.xpose.msra.mxu0 0.0
      %2214 = vmatprep.subr.mxu0 0.0
      %2215 = vmatpush1.xpose.msra.mxu0 0.0
      %2216 = vmatprep.subr.mxu0 0.0
      %2217 = vmatpush1.xpose.msra.mxu0 0.0
      %2218 = vmatprep.subr.mxu0 0.0
      %2219 = vmatpush1.xpose.msra.mxu0 0.0
      %2220 = vmatprep.subr.mxu0 0.0
      %2221 = vmatpush1.xpose.msra.mxu0 0.0
      %2222 = vmatprep.subr.mxu0 0.0
      %2223 = vmatpush1.xpose.msra.mxu0 0.0
      %2224 = vmatprep.subr.mxu0 0.0
      %2225 = vmatpush1.xpose.msra.mxu0 0.0
      %2226 = vmatprep.subr.mxu0 0.0
      %2227 = vmatpush1.xpose.msra.mxu0 0.0
      %2228 = vmatprep.subr.mxu0 0.0
      %2229 = vmatpush1.xpose.msra.mxu0 0.0
      %2230 = vmatprep.subr.mxu0 0.0
      %2231 = vmatpush1.xpose.msra.mxu0 0.0
      %2232 = vmatprep.subr.mxu0 0.0
      %2233 = vmatpush1.xpose.msra.mxu0 0.0
      %2234 = vmatprep.subr.mxu0 0.0
      %2235 = vmatpush1.xpose.msra.mxu0 0.0
      %2236 = vmatprep.subr.mxu0 0.0
      %2237 = vmatpush1.xpose.msra.mxu0 0.0
      %2238 = vmatprep.subr.mxu0 0.0
      %2239 = vmatpush1.xpose.msra.mxu0 0.0
      %2240 = vmatprep.subr.mxu0 0.0
      %2241 = vmatpush1.xpose.msra.mxu0 0.0
      %2242 = vmatprep.mubr.f32.mxu0 0.0
      %2243 = vmatmul.mubr.f32.gmra.mrb[0].mxu0 %v2173
      %v2244 = vpop.f32.mrb[0].mxu0
      %v2245 = vadd.f32 0.0, %v2244
      %v2246 = vpop.f32.mrb[0].mxu0
      %2247 = vdwg.mxu0
      %v2248 = vmul.f32 %v2017, 0.25
      %v2249 = vmul.f32 %v2093, 0.25
      %v2250 = vmul.f32 %v2169, 0.25
      %v2251 = vmul.f32 %v2245, 0.25
      %vm2252 = vcmask 64512
      %v2253 = vsel %vm2252, %v2248, -inf
      %2254 = vmax.xlane.f32.xlu0 %v2253
      %v2255 = vpop.xlane.xlu0 %2254
      %v2256 = vsel %vm2252, %v2249, -inf
      %2257 = vmax.xlane.f32.xlu0 %v2256
      %v2258 = vpop.xlane.xlu0 %2257
      %v2259 = vsel %vm2252, %v2250, -inf
      %2260 = vmax.xlane.f32.xlu0 %v2259
      %v2261 = vpop.xlane.xlu0 %2260
      %v2262 = vsel %vm2252, %v2251, -inf
      %2263 = vmax.xlane.f32.xlu0 %v2262
      %v2264 = vpop.xlane.xlu0 %2263
      %v2265 = vsub.f32 %v2248, %v2255
      %v2266 = vsub.f32 %v2249, %v2258
      %v2267 = vsub.f32 %v2250, %v2261
      %v2268 = vsub.f32 %v2251, %v2264
      %v2269 = vmul.f32 %v2265, 1.442695
      %v2270 = vpow.pop %v2269
      %v2271 = vmul.f32 %v2266, 1.442695
      %v2272 = vpow.pop %v2271
      %v2273 = vmul.f32 %v2267, 1.442695
      %v2274 = vpow.pop %v2273
      %v2275 = vmul.f32 %v2268, 1.442695
      %v2276 = vpow.pop %v2275
      %v2277 = vsel %vm2252, %v2270, 0.0
      %2278 = vadd.xlane.f32.xlu0 %v2277
      %v2279 = vpop.xlane.xlu0 %2278
      %v2280 = vsel %vm2252, %v2272, 0.0
      %2281 = vadd.xlane.f32.xlu0 %v2280
      %v2282 = vpop.xlane.xlu0 %2281
      %v2283 = vsel %vm2252, %v2274, 0.0
      %2284 = vadd.xlane.f32.xlu0 %v2283
      %v2285 = vpop.xlane.xlu0 %2284
      %v2286 = vsel %vm2252, %v2276, 0.0
      %2287 = vadd.xlane.f32.xlu0 %v2286
      %v2288 = vpop.xlane.xlu0 %2287
      %v2289 = vrcp.pop %v2279
      %v2290 = vrcp.pop %v2282
      %v2291 = vrcp.pop %v2285
      %v2292 = vrcp.pop %v2288
      %v2293 = vmul.f32 %v2270, %v2289
      %v2294 = vmul.f32 %v2272, %v2290
      %v2295 = vmul.f32 %v2274, %v2291
      %v2296 = vmul.f32 %v2276, %v2292
      %v2298 = vsel %vm2252, %v2293, 0
      %2300 = vmatprep.subr.mxu0 0.0
      %2301 = vmatpush1.msra.mxu0 %v1746
      %2302 = vmatprep.subr.mxu0 0.0
      %2303 = vmatpush1.msra.mxu0 0.0
      %2304 = vmatprep.subr.mxu0 0.0
      %2305 = vmatpush1.msra.mxu0 0.0
      %2306 = vmatprep.subr.mxu0 0.0
      %2307 = vmatpush1.msra.mxu0 0.0
      %2308 = vmatprep.subr.mxu0 0.0
      %2309 = vmatpush1.msra.mxu0 0.0
      %2310 = vmatprep.subr.mxu0 0.0
      %2311 = vmatpush1.msra.mxu0 0.0
      %2312 = vmatprep.subr.mxu0 0.0
      %2313 = vmatpush1.msra.mxu0 0.0
      %2314 = vmatprep.subr.mxu0 0.0
      %2315 = vmatpush1.msra.mxu0 0.0
      %2316 = vmatprep.subr.mxu0 0.0
      %2317 = vmatpush1.msra.mxu0 0.0
      %2318 = vmatprep.subr.mxu0 0.0
      %2319 = vmatpush1.msra.mxu0 0.0
      %2320 = vmatprep.subr.mxu0 0.0
      %2321 = vmatpush1.msra.mxu0 0.0
      %2322 = vmatprep.subr.mxu0 0.0
      %2323 = vmatpush1.msra.mxu0 0.0
      %2324 = vmatprep.subr.mxu0 0.0
      %2325 = vmatpush1.msra.mxu0 0.0
      %2326 = vmatprep.subr.mxu0 0.0
      %2327 = vmatpush1.msra.mxu0 0.0
      %2328 = vmatprep.subr.mxu0 0.0
      %2329 = vmatpush1.msra.mxu0 0.0
      %2330 = vmatprep.subr.mxu0 0.0
      %2331 = vmatpush1.msra.mxu0 0.0
      %2332 = vmatprep.subr.mxu0 0.0
      %2333 = vmatpush1.msra.mxu0 0.0
      %2334 = vmatprep.subr.mxu0 0.0
      %2335 = vmatpush1.msra.mxu0 0.0
      %2336 = vmatprep.subr.mxu0 0.0
      %2337 = vmatpush1.msra.mxu0 0.0
      %2338 = vmatprep.subr.mxu0 0.0
      %2339 = vmatpush1.msra.mxu0 0.0
      %2340 = vmatprep.subr.mxu0 0.0
      %2341 = vmatpush1.msra.mxu0 0.0
      %2342 = vmatprep.subr.mxu0 0.0
      %2343 = vmatpush1.msra.mxu0 0.0
      %2344 = vmatprep.subr.mxu0 0.0
      %2345 = vmatpush1.msra.mxu0 0.0
      %2346 = vmatprep.subr.mxu0 0.0
      %2347 = vmatpush1.msra.mxu0 0.0
      %2348 = vmatprep.subr.mxu0 0.0
      %2349 = vmatpush1.msra.mxu0 0.0
      %2350 = vmatprep.subr.mxu0 0.0
      %2351 = vmatpush1.msra.mxu0 0.0
      %2352 = vmatprep.subr.mxu0 0.0
      %2353 = vmatpush1.msra.mxu0 0.0
      %2354 = vmatprep.subr.mxu0 0.0
      %2355 = vmatpush1.msra.mxu0 0.0
      %2356 = vmatprep.subr.mxu0 0.0
      %2357 = vmatpush1.msra.mxu0 0.0
      %2358 = vmatprep.subr.mxu0 0.0
      %2359 = vmatpush1.msra.mxu0 0.0
      %2360 = vmatprep.subr.mxu0 0.0
      %2361 = vmatpush1.msra.mxu0 0.0
      %2362 = vmatprep.subr.mxu0 0.0
      %2363 = vmatpush1.msra.mxu0 0.0
      %2364 = vmatprep.mubr.f32.mxu0 0.0
      %2365 = vmatmul.mubr.f32.gmra.mrb[0].mxu0 %v2298
      %v2366 = vpop.f32.mrb[0].mxu0
      %v2367 = vadd.f32 0.0, %v2366
      %v2368 = vpop.f32.mrb[0].mxu0
      %2369 = vdwg.mxu0
      %v2371 = vsel %vm2252, %v2294, 0
      %2373 = vmatprep.subr.mxu0 0.0
      %2374 = vmatpush1.msra.mxu0 %v1810
      %2375 = vmatprep.subr.mxu0 0.0
      %2376 = vmatpush1.msra.mxu0 0.0
      %2377 = vmatprep.subr.mxu0 0.0
      %2378 = vmatpush1.msra.mxu0 0.0
      %2379 = vmatprep.subr.mxu0 0.0
      %2380 = vmatpush1.msra.mxu0 0.0
      %2381 = vmatprep.subr.mxu0 0.0
      %2382 = vmatpush1.msra.mxu0 0.0
      %2383 = vmatprep.subr.mxu0 0.0
      %2384 = vmatpush1.msra.mxu0 0.0
      %2385 = vmatprep.subr.mxu0 0.0
      %2386 = vmatpush1.msra.mxu0 0.0
      %2387 = vmatprep.subr.mxu0 0.0
      %2388 = vmatpush1.msra.mxu0 0.0
      %2389 = vmatprep.subr.mxu0 0.0
      %2390 = vmatpush1.msra.mxu0 0.0
      %2391 = vmatprep.subr.mxu0 0.0
      %2392 = vmatpush1.msra.mxu0 0.0
      %2393 = vmatprep.subr.mxu0 0.0
      %2394 = vmatpush1.msra.mxu0 0.0
      %2395 = vmatprep.subr.mxu0 0.0
      %2396 = vmatpush1.msra.mxu0 0.0
      %2397 = vmatprep.subr.mxu0 0.0
      %2398 = vmatpush1.msra.mxu0 0.0
      %2399 = vmatprep.subr.mxu0 0.0
      %2400 = vmatpush1.msra.mxu0 0.0
      %2401 = vmatprep.subr.mxu0 0.0
      %2402 = vmatpush1.msra.mxu0 0.0
      %2403 = vmatprep.subr.mxu0 0.0
      %2404 = vmatpush1.msra.mxu0 0.0
      %2405 = vmatprep.subr.mxu0 0.0
      %2406 = vmatpush1.msra.mxu0 0.0
      %2407 = vmatprep.subr.mxu0 0.0
      %2408 = vmatpush1.msra.mxu0 0.0
      %2409 = vmatprep.subr.mxu0 0.0
      %2410 = vmatpush1.msra.mxu0 0.0
      %2411 = vmatprep.subr.mxu0 0.0
      %2412 = vmatpush1.msra.mxu0 0.0
      %2413 = vmatprep.subr.mxu0 0.0
      %2414 = vmatpush1.msra.mxu0 0.0
      %2415 = vmatprep.subr.mxu0 0.0
      %2416 = vmatpush1.msra.mxu0 0.0
      %2417 = vmatprep.subr.mxu0 0.0
      %2418 = vmatpush1.msra.mxu0 0.0
      %2419 = vmatprep.subr.mxu0 0.0
      %2420 = vmatpush1.msra.mxu0 0.0
      %2421 = vmatprep.subr.mxu0 0.0
      %2422 = vmatpush1.msra.mxu0 0.0
      %2423 = vmatprep.subr.mxu0 0.0
      %2424 = vmatpush1.msra.mxu0 0.0
      %2425 = vmatprep.subr.mxu0 0.0
      %2426 = vmatpush1.msra.mxu0 0.0
      %2427 = vmatprep.subr.mxu0 0.0
      %2428 = vmatpush1.msra.mxu0 0.0
      %2429 = vmatprep.subr.mxu0 0.0
      %2430 = vmatpush1.msra.mxu0 0.0
      %2431 = vmatprep.subr.mxu0 0.0
      %2432 = vmatpush1.msra.mxu0 0.0
      %2433 = vmatprep.subr.mxu0 0.0
      %2434 = vmatpush1.msra.mxu0 0.0
      %2435 = vmatprep.subr.mxu0 0.0
      %2436 = vmatpush1.msra.mxu0 0.0
      %2437 = vmatprep.mubr.f32.mxu0 0.0
      %2438 = vmatmul.mubr.f32.gmra.mrb[0].mxu0 %v2371
      %v2439 = vpop.f32.mrb[0].mxu0
      %v2440 = vadd.f32 0.0, %v2439
      %v2441 = vpop.f32.mrb[0].mxu0
      %2442 = vdwg.mxu0
      %v2444 = vsel %vm2252, %v2295, 0
      %2446 = vmatprep.subr.mxu0 0.0
      %2447 = vmatpush1.msra.mxu0 %v1874
      %2448 = vmatprep.subr.mxu0 0.0
      %2449 = vmatpush1.msra.mxu0 0.0
      %2450 = vmatprep.subr.mxu0 0.0
      %2451 = vmatpush1.msra.mxu0 0.0
      %2452 = vmatprep.subr.mxu0 0.0
      %2453 = vmatpush1.msra.mxu0 0.0
      %2454 = vmatprep.subr.mxu0 0.0
      %2455 = vmatpush1.msra.mxu0 0.0
      %2456 = vmatprep.subr.mxu0 0.0
      %2457 = vmatpush1.msra.mxu0 0.0
      %2458 = vmatprep.subr.mxu0 0.0
      %2459 = vmatpush1.msra.mxu0 0.0
      %2460 = vmatprep.subr.mxu0 0.0
      %2461 = vmatpush1.msra.mxu0 0.0
      %2462 = vmatprep.subr.mxu0 0.0
      %2463 = vmatpush1.msra.mxu0 0.0
      %2464 = vmatprep.subr.mxu0 0.0
      %2465 = vmatpush1.msra.mxu0 0.0
      %2466 = vmatprep.subr.mxu0 0.0
      %2467 = vmatpush1.msra.mxu0 0.0
      %2468 = vmatprep.subr.mxu0 0.0
      %2469 = vmatpush1.msra.mxu0 0.0
      %2470 = vmatprep.subr.mxu0 0.0
      %2471 = vmatpush1.msra.mxu0 0.0
      %2472 = vmatprep.subr.mxu0 0.0
      %2473 = vmatpush1.msra.mxu0 0.0
      %2474 = vmatprep.subr.mxu0 0.0
      %2475 = vmatpush1.msra.mxu0 0.0
      %2476 = vmatprep.subr.mxu0 0.0
      %2477 = vmatpush1.msra.mxu0 0.0
      %2478 = vmatprep.subr.mxu0 0.0
      %2479 = vmatpush1.msra.mxu0 0.0
      %2480 = vmatprep.subr.mxu0 0.0
      %2481 = vmatpush1.msra.mxu0 0.0
      %2482 = vmatprep.subr.mxu0 0.0
      %2483 = vmatpush1.msra.mxu0 0.0
      %2484 = vmatprep.subr.mxu0 0.0
      %2485 = vmatpush1.msra.mxu0 0.0
      %2486 = vmatprep.subr.mxu0 0.0
      %2487 = vmatpush1.msra.mxu0 0.0
      %2488 = vmatprep.subr.mxu0 0.0
      %2489 = vmatpush1.msra.mxu0 0.0
      %2490 = vmatprep.subr.mxu0 0.0
      %2491 = vmatpush1.msra.mxu0 0.0
      %2492 = vmatprep.subr.mxu0 0.0
      %2493 = vmatpush1.msra.mxu0 0.0
      %2494 = vmatprep.subr.mxu0 0.0
      %2495 = vmatpush1.msra.mxu0 0.0
      %2496 = vmatprep.subr.mxu0 0.0
      %2497 = vmatpush1.msra.mxu0 0.0
      %2498 = vmatprep.subr.mxu0 0.0
      %2499 = vmatpush1.msra.mxu0 0.0
      %2500 = vmatprep.subr.mxu0 0.0
      %2501 = vmatpush1.msra.mxu0 0.0
      %2502 = vmatprep.subr.mxu0 0.0
      %2503 = vmatpush1.msra.mxu0 0.0
      %2504 = vmatprep.subr.mxu0 0.0
      %2505 = vmatpush1.msra.mxu0 0.0
      %2506 = vmatprep.subr.mxu0 0.0
      %2507 = vmatpush1.msra.mxu0 0.0
      %2508 = vmatprep.subr.mxu0 0.0
      %2509 = vmatpush1.msra.mxu0 0.0
      %2510 = vmatprep.mubr.f32.mxu0 0.0
      %2511 = vmatmul.mubr.f32.gmra.mrb[0].mxu0 %v2444
      %v2512 = vpop.f32.mrb[0].mxu0
      %v2513 = vadd.f32 0.0, %v2512
      %v2514 = vpop.f32.mrb[0].mxu0
      %2515 = vdwg.mxu0
      %v2517 = vsel %vm2252, %v2296, 0
      %2519 = vmatprep.subr.mxu0 0.0
      %2520 = vmatpush1.msra.mxu0 %v1938
      %2521 = vmatprep.subr.mxu0 0.0
      %2522 = vmatpush1.msra.mxu0 0.0
      %2523 = vmatprep.subr.mxu0 0.0
      %2524 = vmatpush1.msra.mxu0 0.0
      %2525 = vmatprep.subr.mxu0 0.0
      %2526 = vmatpush1.msra.mxu0 0.0
      %2527 = vmatprep.subr.mxu0 0.0
      %2528 = vmatpush1.msra.mxu0 0.0
      %2529 = vmatprep.subr.mxu0 0.0
      %2530 = vmatpush1.msra.mxu0 0.0
      %2531 = vmatprep.subr.mxu0 0.0
      %2532 = vmatpush1.msra.mxu0 0.0
      %2533 = vmatprep.subr.mxu0 0.0
      %2534 = vmatpush1.msra.mxu0 0.0
      %2535 = vmatprep.subr.mxu0 0.0
      %2536 = vmatpush1.msra.mxu0 0.0
      %2537 = vmatprep.subr.mxu0 0.0
      %2538 = vmatpush1.msra.mxu0 0.0
      %2539 = vmatprep.subr.mxu0 0.0
      %2540 = vmatpush1.msra.mxu0 0.0
      %2541 = vmatprep.subr.mxu0 0.0
      %2542 = vmatpush1.msra.mxu0 0.0
      %2543 = vmatprep.subr.mxu0 0.0
      %2544 = vmatpush1.msra.mxu0 0.0
      %2545 = vmatprep.subr.mxu0 0.0
      %2546 = vmatpush1.msra.mxu0 0.0
      %2547 = vmatprep.subr.mxu0 0.0
      %2548 = vmatpush1.msra.mxu0 0.0
      %2549 = vmatprep.subr.mxu0 0.0
      %2550 = vmatpush1.msra.mxu0 0.0
      %2551 = vmatprep.subr.mxu0 0.0
      %2552 = vmatpush1.msra.mxu0 0.0
      %2553 = vmatprep.subr.mxu0 0.0
      %2554 = vmatpush1.msra.mxu0 0.0
      %2555 = vmatprep.subr.mxu0 0.0
      %2556 = vmatpush1.msra.mxu0 0.0
      %2557 = vmatprep.subr.mxu0 0.0
      %2558 = vmatpush1.msra.mxu0 0.0
      %2559 = vmatprep.subr.mxu0 0.0
      %2560 = vmatpush1.msra.mxu0 0.0
      %2561 = vmatprep.subr.mxu0 0.0
      %2562 = vmatpush1.msra.mxu0 0.0
      %2563 = vmatprep.subr.mxu0 0.0
      %2564 = vmatpush1.msra.mxu0 0.0
      %2565 = vmatprep.subr.mxu0 0.0
      %2566 = vmatpush1.msra.mxu0 0.0
      %2567 = vmatprep.subr.mxu0 0.0
      %2568 = vmatpush1.msra.mxu0 0.0
      %2569 = vmatprep.subr.mxu0 0.0
      %2570 = vmatpush1.msra.mxu0 0.0
      %2571 = vmatprep.subr.mxu0 0.0
      %2572 = vmatpush1.msra.mxu0 0.0
      %2573 = vmatprep.subr.mxu0 0.0
      %2574 = vmatpush1.msra.mxu0 0.0
      %2575 = vmatprep.subr.mxu0 0.0
      %2576 = vmatpush1.msra.mxu0 0.0
      %2577 = vmatprep.subr.mxu0 0.0
      %2578 = vmatpush1.msra.mxu0 0.0
      %2579 = vmatprep.subr.mxu0 0.0
      %2580 = vmatpush1.msra.mxu0 0.0
      %2581 = vmatprep.subr.mxu0 0.0
      %2582 = vmatpush1.msra.mxu0 0.0
      %2583 = vmatprep.mubr.f32.mxu0 0.0
      %2584 = vmatmul.mubr.f32.gmra.mrb[0].mxu0 %v2517
      %v2585 = vpop.f32.mrb[0].mxu0
      %v2586 = vadd.f32 0.0, %v2585
      %v2587 = vpop.f32.mrb[0].mxu0
      %2588 = vdwg.mxu0
      %v2589 = vpack.c.bf16 %v2367, %v2367
      %v2590 = vpack.c.bf16 %v2440, %v2440
      %v2591 = vpack.c.bf16 %v2513, %v2513
      %v2592 = vpack.c.bf16 %v2586, %v2586
      %v2593 = vld [vmem:[%s861] sm:$0xf]
      %v2594 = vld [vmem:[%s861 + $0x4] sm:$0xf]
      %v2595 = vld [vmem:[%s861 + $0x8] sm:$0xf]
      %v2596 = vld [vmem:[%s861 + $0xc] sm:$0xf]
      %v2597 = vld [vmem:[%s861 + $0x10] sm:$0xf]
      %v2598 = vld [vmem:[%s861 + $0x14] sm:$0xf]
      %v2599 = vld [vmem:[%s861 + $0x18] sm:$0xf]
      %v2600 = vld [vmem:[%s861 + $0x1c] sm:$0xf]
      %v2603 = vunpack.c.l.b16 %v2593
      %v2604 = vunpack.c.l.b16 %v2594
      %v2605 = vpack.c.b16 %v2604, %v2603
      %v2608 = vsel %vm1943, %v2589, 0
      %2610 = vmatprep.subr.bf16.mxu0 0
      %2611 = vmatpush1.bf16.msra.mxu0 %v2605
      %2612 = vmatprep.subr.bf16.mxu0 0
      %2613 = vmatpush1.bf16.msra.mxu0 0
      %2614 = vmatprep.subr.bf16.mxu0 0
      %2615 = vmatpush1.bf16.msra.mxu0 0
      %2616 = vmatprep.subr.bf16.mxu0 0
      %2617 = vmatpush1.bf16.msra.mxu0 0
      %2618 = vmatprep.subr.bf16.mxu0 0
      %2619 = vmatpush1.bf16.msra.mxu0 0
      %2620 = vmatprep.subr.bf16.mxu0 0
      %2621 = vmatpush1.bf16.msra.mxu0 0
      %2622 = vmatprep.subr.bf16.mxu0 0
      %2623 = vmatpush1.bf16.msra.mxu0 0
      %2624 = vmatprep.subr.bf16.mxu0 0
      %2625 = vmatpush1.bf16.msra.mxu0 0
      %2626 = vmatprep.subr.bf16.mxu0 0
      %2627 = vmatpush1.bf16.msra.mxu0 0
      %2628 = vmatprep.subr.bf16.mxu0 0
      %2629 = vmatpush1.bf16.msra.mxu0 0
      %2630 = vmatprep.subr.bf16.mxu0 0
      %2631 = vmatpush1.bf16.msra.mxu0 0
      %2632 = vmatprep.subr.bf16.mxu0 0
      %2633 = vmatpush1.bf16.msra.mxu0 0
      %2634 = vmatprep.subr.bf16.mxu0 0
      %2635 = vmatpush1.bf16.msra.mxu0 0
      %2636 = vmatprep.subr.bf16.mxu0 0
      %2637 = vmatpush1.bf16.msra.mxu0 0
      %2638 = vmatprep.subr.bf16.mxu0 0
      %2639 = vmatpush1.bf16.msra.mxu0 0
      %2640 = vmatprep.subr.bf16.mxu0 0
      %2641 = vmatpush1.bf16.msra.mxu0 0
      %2642 = vmatprep.mubr.bf16.mxu0 0
      %2643 = vmatmul.mubr.bf16.gmra.mrb[0].mxu0 %v2608
      %v2644 = vpop.f32.mrb[0].mxu0
      %v2645 = vadd.f32 0.0, %v2644
      %v2646 = vpop.f32.mrb[0].mxu0
      %v2647 = vpop.f32.mrb[0].mxu0
      %v2648 = vpop.f32.mrb[0].mxu0
      %2649 = vdwg.mxu0
      %v2652 = vunpack.c.l.b16 %v2595
      %v2653 = vunpack.c.l.b16 %v2596
      %v2654 = vpack.c.b16 %v2653, %v2652
      %v2657 = vsel %vm1943, %v2590, 0
      %2659 = vmatprep.subr.bf16.mxu0 0
      %2660 = vmatpush1.bf16.msra.mxu0 %v2654
      %2661 = vmatprep.subr.bf16.mxu0 0
      %2662 = vmatpush1.bf16.msra.mxu0 0
      %2663 = vmatprep.subr.bf16.mxu0 0
      %2664 = vmatpush1.bf16.msra.mxu0 0
      %2665 = vmatprep.subr.bf16.mxu0 0
      %2666 = vmatpush1.bf16.msra.mxu0 0
      %2667 = vmatprep.subr.bf16.mxu0 0
      %2668 = vmatpush1.bf16.msra.mxu0 0
      %2669 = vmatprep.subr.bf16.mxu0 0
      %2670 = vmatpush1.bf16.msra.mxu0 0
      %2671 = vmatprep.subr.bf16.mxu0 0
      %2672 = vmatpush1.bf16.msra.mxu0 0
      %2673 = vmatprep.subr.bf16.mxu0 0
      %2674 = vmatpush1.bf16.msra.mxu0 0
      %2675 = vmatprep.subr.bf16.mxu0 0
      %2676 = vmatpush1.bf16.msra.mxu0 0
      %2677 = vmatprep.subr.bf16.mxu0 0
      %2678 = vmatpush1.bf16.msra.mxu0 0
      %2679 = vmatprep.subr.bf16.mxu0 0
      %2680 = vmatpush1.bf16.msra.mxu0 0
      %2681 = vmatprep.subr.bf16.mxu0 0
      %2682 = vmatpush1.bf16.msra.mxu0 0
      %2683 = vmatprep.subr.bf16.mxu0 0
      %2684 = vmatpush1.bf16.msra.mxu0 0
      %2685 = vmatprep.subr.bf16.mxu0 0
      %2686 = vmatpush1.bf16.msra.mxu0 0
      %2687 = vmatprep.subr.bf16.mxu0 0
      %2688 = vmatpush1.bf16.msra.mxu0 0
      %2689 = vmatprep.subr.bf16.mxu0 0
      %2690 = vmatpush1.bf16.msra.mxu0 0
      %2691 = vmatprep.mubr.bf16.mxu0 0
      %2692 = vmatmul.mubr.bf16.gmra.mrb[0].mxu0 %v2657
      %v2693 = vpop.f32.mrb[0].mxu0
      %v2694 = vadd.f32 0.0, %v2693
      %v2695 = vpop.f32.mrb[0].mxu0
      %v2696 = vpop.f32.mrb[0].mxu0
      %v2697 = vpop.f32.mrb[0].mxu0
      %2698 = vdwg.mxu0
      %v2701 = vunpack.c.l.b16 %v2597
      %v2702 = vunpack.c.l.b16 %v2598
      %v2703 = vpack.c.b16 %v2702, %v2701
      %v2706 = vsel %vm1943, %v2591, 0
      %2708 = vmatprep.subr.bf16.mxu0 0
      %2709 = vmatpush1.bf16.msra.mxu0 %v2703
      %2710 = vmatprep.subr.bf16.mxu0 0
      %2711 = vmatpush1.bf16.msra.mxu0 0
      %2712 = vmatprep.subr.bf16.mxu0 0
      %2713 = vmatpush1.bf16.msra.mxu0 0
      %2714 = vmatprep.subr.bf16.mxu0 0
      %2715 = vmatpush1.bf16.msra.mxu0 0
      %2716 = vmatprep.subr.bf16.mxu0 0
      %2717 = vmatpush1.bf16.msra.mxu0 0
      %2718 = vmatprep.subr.bf16.mxu0 0
      %2719 = vmatpush1.bf16.msra.mxu0 0
      %2720 = vmatprep.subr.bf16.mxu0 0
      %2721 = vmatpush1.bf16.msra.mxu0 0
      %2722 = vmatprep.subr.bf16.mxu0 0
      %2723 = vmatpush1.bf16.msra.mxu0 0
      %2724 = vmatprep.subr.bf16.mxu0 0
      %2725 = vmatpush1.bf16.msra.mxu0 0
      %2726 = vmatprep.subr.bf16.mxu0 0
      %2727 = vmatpush1.bf16.msra.mxu0 0
      %2728 = vmatprep.subr.bf16.mxu0 0
      %2729 = vmatpush1.bf16.msra.mxu0 0
      %2730 = vmatprep.subr.bf16.mxu0 0
      %2731 = vmatpush1.bf16.msra.mxu0 0
      %2732 = vmatprep.subr.bf16.mxu0 0
      %2733 = vmatpush1.bf16.msra.mxu0 0
      %2734 = vmatprep.subr.bf16.mxu0 0
      %2735 = vmatpush1.bf16.msra.mxu0 0
      %2736 = vmatprep.subr.bf16.mxu0 0
      %2737 = vmatpush1.bf16.msra.mxu0 0
      %2738 = vmatprep.subr.bf16.mxu0 0
      %2739 = vmatpush1.bf16.msra.mxu0 0
      %2740 = vmatprep.mubr.bf16.mxu0 0
      %2741 = vmatmul.mubr.bf16.gmra.mrb[0].mxu0 %v2706
      %v2742 = vpop.f32.mrb[0].mxu0
      %v2743 = vadd.f32 0.0, %v2742
      %v2744 = vpop.f32.mrb[0].mxu0
      %v2745 = vpop.f32.mrb[0].mxu0
      %v2746 = vpop.f32.mrb[0].mxu0
      %2747 = vdwg.mxu0
      %v2750 = vunpack.c.l.b16 %v2599
      %v2751 = vunpack.c.l.b16 %v2600
      %v2752 = vpack.c.b16 %v2751, %v2750
      %v2755 = vsel %vm1943, %v2592, 0
      %2757 = vmatprep.subr.bf16.mxu0 0
      %2758 = vmatpush1.bf16.msra.mxu0 %v2752
      %2759 = vmatprep.subr.bf16.mxu0 0
      %2760 = vmatpush1.bf16.msra.mxu0 0
      %2761 = vmatprep.subr.bf16.mxu0 0
      %2762 = vmatpush1.bf16.msra.mxu0 0
      %2763 = vmatprep.subr.bf16.mxu0 0
      %2764 = vmatpush1.bf16.msra.mxu0 0
      %2765 = vmatprep.subr.bf16.mxu0 0
      %2766 = vmatpush1.bf16.msra.mxu0 0
      %2767 = vmatprep.subr.bf16.mxu0 0
      %2768 = vmatpush1.bf16.msra.mxu0 0
      %2769 = vmatprep.subr.bf16.mxu0 0
      %2770 = vmatpush1.bf16.msra.mxu0 0
      %2771 = vmatprep.subr.bf16.mxu0 0
      %2772 = vmatpush1.bf16.msra.mxu0 0
      %2773 = vmatprep.subr.bf16.mxu0 0
      %2774 = vmatpush1.bf16.msra.mxu0 0
      %2775 = vmatprep.subr.bf16.mxu0 0
      %2776 = vmatpush1.bf16.msra.mxu0 0
      %2777 = vmatprep.subr.bf16.mxu0 0
      %2778 = vmatpush1.bf16.msra.mxu0 0
      %2779 = vmatprep.subr.bf16.mxu0 0
      %2780 = vmatpush1.bf16.msra.mxu0 0
      %2781 = vmatprep.subr.bf16.mxu0 0
      %2782 = vmatpush1.bf16.msra.mxu0 0
      %2783 = vmatprep.subr.bf16.mxu0 0
      %2784 = vmatpush1.bf16.msra.mxu0 0
      %2785 = vmatprep.subr.bf16.mxu0 0
      %2786 = vmatpush1.bf16.msra.mxu0 0
      %2787 = vmatprep.subr.bf16.mxu0 0
      %2788 = vmatpush1.bf16.msra.mxu0 0
      %2789 = vmatprep.mubr.bf16.mxu0 0
      %2790 = vmatmul.mubr.bf16.gmra.mrb[0].mxu0 %v2755
      %v2791 = vpop.f32.mrb[0].mxu0
      %v2792 = vadd.f32 0.0, %v2791
      %v2793 = vpop.f32.mrb[0].mxu0
      %v2794 = vpop.f32.mrb[0].mxu0
      %v2795 = vpop.f32.mrb[0].mxu0
      %2796 = vdwg.mxu0
      %v2797 = vsel %vm1075, %v2645, 0.0
      %v2798 = vsel %vm1075, %v2694, 0.0
      %v2799 = vadd.f32 %v2797, %v2798
      %v2800 = vsel %vm1075, %v2743, 0.0
      %v2801 = vadd.f32 %v2799, %v2800
      %v2802 = vsel %vm1075, %v2792, 0.0
      %v2803 = vadd.f32 %v2801, %v2802
      %v2804 = vld [vmem:[%s864] sm:$0x1]
      %v2806 = vlaneseq
      %v2807 = vshrl.u32 %v2806, 7
      %v2808 = vsub.s32 0, %v2807
      %v2809 = vrot.slane %v2804, %v2808
      %v2811 = vadd.f32 %v2803, %v2809
      %v2812 = vadd.f32 %v989, %v2811
      %v2813 = vld [vmem:[%s867] sm:$0x1]
      %v2814 = vld [vmem:[%s870] sm:$0x1]
      %v2815 = vsel %vm1075, %v2812, 0.0
      %2816 = vadd.xlane.f32.xlu0 %v2815
      %v2817 = vpop.xlane.xlu0 %2816
      %v2818 = vrcp.pop 64.0
      %v2819 = vmul.f32 %v2817, %v2818
      %v2820 = vsub.f32 %v2812, %v2819
      %v2821 = vmul.f32 %v2820, %v2820
      %v2822 = vsel %vm1075, %v2821, 0.0
      %2823 = vadd.xlane.f32.xlu0 %v2822
      %v2824 = vpop.xlane.xlu0 %2823
      %v2825 = vmul.f32 %v2824, %v2818
      %v2826 = vadd.f32 %v2825, 1e-05
      %v2827 = vrsqrt.pop %v2826
      %v2828 = vmul.f32 %v2820, %v2827
      %v2830 = vlaneseq
      %v2831 = vshrl.u32 %v2830, 7
      %v2832 = vsub.s32 0, %v2831
      %v2833 = vrot.slane %v2813, %v2832
      %v2835 = vmul.f32 %v2828, %v2833
      %v2837 = vlaneseq
      %v2838 = vshrl.u32 %v2837, 7
      %v2839 = vsub.s32 0, %v2838
      %v2840 = vrot.slane %v2814, %v2839
      %v2842 = vadd.f32 %v2835, %v2840
      %v2843 = vpack.c.bf16 %v2842, %v2842
      %v2844 = vld [vmem:[%s875] sm:$0xff]
      %v2845 = vld [vmem:[%s875 + $0x8] sm:$0xff]
      %v2846 = vld [vmem:[%s875 + $0x10] sm:$0xff]
      %v2847 = vld [vmem:[%s875 + $0x18] sm:$0xff]
      %v2848 = vld [vmem:[%s875 + $0x20] sm:$0xff]
      %v2849 = vld [vmem:[%s875 + $0x28] sm:$0xff]
      %v2850 = vld [vmem:[%s875 + $0x30] sm:$0xff]
      %v2851 = vld [vmem:[%s875 + $0x38] sm:$0xff]
      %v2852 = vld [vmem:[%s875 + $0x40] sm:$0xff]
      %v2853 = vld [vmem:[%s875 + $0x48] sm:$0xff]
      %v2854 = vld [vmem:[%s875 + $0x50] sm:$0xff]
      %v2855 = vld [vmem:[%s875 + $0x58] sm:$0xff]
      %v2856 = vld [vmem:[%s875 + $0x60] sm:$0xff]
      %v2857 = vld [vmem:[%s875 + $0x68] sm:$0xff]
      %v2858 = vld [vmem:[%s875 + $0x70] sm:$0xff]
      %v2859 = vld [vmem:[%s875 + $0x78] sm:$0xff]
      %v2860 = vld [vmem:[%s875 + $0x80] sm:$0xff]
      %v2861 = vld [vmem:[%s875 + $0x88] sm:$0xff]
      %v2862 = vld [vmem:[%s875 + $0x90] sm:$0xff]
      %v2863 = vld [vmem:[%s875 + $0x98] sm:$0xff]
      %v2864 = vld [vmem:[%s875 + $0xa0] sm:$0xff]
      %v2865 = vld [vmem:[%s875 + $0xa8] sm:$0xff]
      %v2866 = vld [vmem:[%s875 + $0xb0] sm:$0xff]
      %v2867 = vld [vmem:[%s875 + $0xb8] sm:$0xff]
      %v2868 = vld [vmem:[%s875 + $0xc0] sm:$0xff]
      %v2869 = vld [vmem:[%s875 + $0xc8] sm:$0xff]
      %v2870 = vld [vmem:[%s875 + $0xd0] sm:$0xff]
      %v2871 = vld [vmem:[%s875 + $0xd8] sm:$0xff]
      %v2872 = vld [vmem:[%s875 + $0xe0] sm:$0xff]
      %v2873 = vld [vmem:[%s875 + $0xe8] sm:$0xff]
      %v2874 = vld [vmem:[%s875 + $0xf0] sm:$0xff]
      %v2875 = vld [vmem:[%s875 + $0xf8] sm:$0xff]
      %v2876 = vld [vmem:[%s875 + $0x100] sm:$0xff]
      %v2877 = vld [vmem:[%s875 + $0x108] sm:$0xff]
      %v2878 = vld [vmem:[%s875 + $0x110] sm:$0xff]
      %v2879 = vld [vmem:[%s875 + $0x118] sm:$0xff]
      %v2880 = vld [vmem:[%s875 + $0x120] sm:$0xff]
      %v2881 = vld [vmem:[%s875 + $0x128] sm:$0xff]
      %v2882 = vld [vmem:[%s875 + $0x130] sm:$0xff]
      %v2883 = vld [vmem:[%s875 + $0x138] sm:$0xff]
      %v2884 = vld [vmem:[%s875 + $0x140] sm:$0xff]
      %v2885 = vld [vmem:[%s875 + $0x148] sm:$0xff]
      %v2886 = vld [vmem:[%s875 + $0x150] sm:$0xff]
      %v2887 = vld [vmem:[%s875 + $0x158] sm:$0xff]
      %v2888 = vld [vmem:[%s875 + $0x160] sm:$0xff]
      %v2889 = vld [vmem:[%s875 + $0x168] sm:$0xff]
      %v2890 = vld [vmem:[%s875 + $0x170] sm:$0xff]
      %v2891 = vld [vmem:[%s875 + $0x178] sm:$0xff]
      %v2892 = vld [vmem:[%s875 + $0x180] sm:$0xff]
      %v2893 = vld [vmem:[%s875 + $0x188] sm:$0xff]
      %v2894 = vld [vmem:[%s875 + $0x190] sm:$0xff]
      %v2895 = vld [vmem:[%s875 + $0x198] sm:$0xff]
      %v2896 = vld [vmem:[%s875 + $0x1a0] sm:$0xff]
      %v2897 = vld [vmem:[%s875 + $0x1a8] sm:$0xff]
      %v2898 = vld [vmem:[%s875 + $0x1b0] sm:$0xff]
      %v2899 = vld [vmem:[%s875 + $0x1b8] sm:$0xff]
      %v2900 = vld [vmem:[%s875 + $0x1c0] sm:$0xff]
      %v2901 = vld [vmem:[%s875 + $0x1c8] sm:$0xff]
      %v2902 = vld [vmem:[%s875 + $0x1d0] sm:$0xff]
      %v2903 = vld [vmem:[%s875 + $0x1d8] sm:$0xff]
      %v2904 = vld [vmem:[%s875 + $0x1e0] sm:$0xff]
      %v2905 = vld [vmem:[%s875 + $0x1e8] sm:$0xff]
      %v2906 = vld [vmem:[%s875 + $0x1f0] sm:$0xff]
      %v2907 = vld [vmem:[%s875 + $0x1f8] sm:$0xff]
      %v2908 = vld [vmem:[%s879] sm:$0xff]
      %v2909 = vld [vmem:[%s879 + $0x8] sm:$0xff]
      %v2912 = vlaneseq
      %v2913 = vshrl.u32 %v2912, 7
      %v2914 = vsub.s32 0, %v2913
      %v2915 = vrot.slane %v2908, %v2914
      %v2916 = vlaneseq
      %v2917 = vshrl.u32 %v2916, 7
      %v2918 = vsub.s32 1, %v2917
      %v2919 = vrot.slane %v2908, %v2918
      %v2920 = vlaneseq
      %v2921 = vshrl.u32 %v2920, 7
      %v2922 = vsub.s32 2, %v2921
      %v2923 = vrot.slane %v2908, %v2922
      %v2924 = vlaneseq
      %v2925 = vshrl.u32 %v2924, 7
      %v2926 = vsub.s32 3, %v2925
      %v2927 = vrot.slane %v2908, %v2926
      %v2928 = vlaneseq
      %v2929 = vshrl.u32 %v2928, 7
      %v2930 = vsub.s32 4, %v2929
      %v2931 = vrot.slane %v2908, %v2930
      %v2932 = vlaneseq
      %v2933 = vshrl.u32 %v2932, 7
      %v2934 = vsub.s32 5, %v2933
      %v2935 = vrot.slane %v2908, %v2934
      %v2936 = vlaneseq
      %v2937 = vshrl.u32 %v2936, 7
      %v2938 = vsub.s32 6, %v2937
      %v2939 = vrot.slane %v2908, %v2938
      %v2940 = vlaneseq
      %v2941 = vshrl.u32 %v2940, 7
      %v2942 = vsub.s32 7, %v2941
      %v2943 = vrot.slane %v2908, %v2942
      %v2944 = vlaneseq
      %v2945 = vshrl.u32 %v2944, 7
      %v2946 = vsub.s32 0, %v2945
      %v2947 = vrot.slane %v2909, %v2946
      %v2948 = vlaneseq
      %v2949 = vshrl.u32 %v2948, 7
      %v2950 = vsub.s32 1, %v2949
      %v2951 = vrot.slane %v2909, %v2950
      %v2952 = vlaneseq
      %v2953 = vshrl.u32 %v2952, 7
      %v2954 = vsub.s32 2, %v2953
      %v2955 = vrot.slane %v2909, %v2954
      %v2956 = vlaneseq
      %v2957 = vshrl.u32 %v2956, 7
      %v2958 = vsub.s32 3, %v2957
      %v2959 = vrot.slane %v2909, %v2958
      %v2960 = vlaneseq
      %v2961 = vshrl.u32 %v2960, 7
      %v2962 = vsub.s32 4, %v2961
      %v2963 = vrot.slane %v2909, %v2962
      %v2964 = vlaneseq
      %v2965 = vshrl.u32 %v2964, 7
      %v2966 = vsub.s32 5, %v2965
      %v2967 = vrot.slane %v2909, %v2966
      %v2968 = vlaneseq
      %v2969 = vshrl.u32 %v2968, 7
      %v2970 = vsub.s32 6, %v2969
      %v2971 = vrot.slane %v2909, %v2970
      %v2972 = vlaneseq
      %v2973 = vshrl.u32 %v2972, 7
      %v2974 = vsub.s32 7, %v2973
      %v2975 = vrot.slane %v2909, %v2974
      %v3056 = vunpack.c.l.b16 %v2844
      %v3057 = vunpack.c.h.b16 %v2844
      %v3058 = vunpack.c.l.b16 %v2845
      %v3059 = vunpack.c.h.b16 %v2845
      %v3060 = vunpack.c.l.b16 %v2846
      %v3061 = vunpack.c.h.b16 %v2846
      %v3062 = vunpack.c.l.b16 %v2847
      %v3063 = vunpack.c.h.b16 %v2847
      %v3064 = vunpack.c.l.b16 %v2848
      %v3065 = vunpack.c.h.b16 %v2848
      %v3066 = vunpack.c.l.b16 %v2849
      %v3067 = vunpack.c.h.b16 %v2849
      %v3068 = vunpack.c.l.b16 %v2850
      %v3069 = vunpack.c.h.b16 %v2850
      %v3070 = vunpack.c.l.b16 %v2851
      %v3071 = vunpack.c.h.b16 %v2851
      %v3072 = vunpack.c.l.b16 %v2852
      %v3073 = vunpack.c.h.b16 %v2852
      %v3074 = vunpack.c.l.b16 %v2853
      %v3075 = vunpack.c.h.b16 %v2853
      %v3076 = vunpack.c.l.b16 %v2854
      %v3077 = vunpack.c.h.b16 %v2854
      %v3078 = vunpack.c.l.b16 %v2855
      %v3079 = vunpack.c.h.b16 %v2855
      %v3080 = vunpack.c.l.b16 %v2856
      %v3081 = vunpack.c.h.b16 %v2856
      %v3082 = vunpack.c.l.b16 %v2857
      %v3083 = vunpack.c.h.b16 %v2857
      %v3084 = vunpack.c.l.b16 %v2858
      %v3085 = vunpack.c.h.b16 %v2858
      %v3086 = vunpack.c.l.b16 %v2859
      %v3087 = vunpack.c.h.b16 %v2859
      %v3088 = vunpack.c.l.b16 %v2860
      %v3089 = vunpack.c.h.b16 %v2860
      %v3090 = vunpack.c.l.b16 %v2861
      %v3091 = vunpack.c.h.b16 %v2861
      %v3092 = vunpack.c.l.b16 %v2862
      %v3093 = vunpack.c.h.b16 %v2862
      %v3094 = vunpack.c.l.b16 %v2863
      %v3095 = vunpack.c.h.b16 %v2863
      %v3096 = vunpack.c.l.b16 %v2864
      %v3097 = vunpack.c.h.b16 %v2864
      %v3098 = vunpack.c.l.b16 %v2865
      %v3099 = vunpack.c.h.b16 %v2865
      %v3100 = vunpack.c.l.b16 %v2866
      %v3101 = vunpack.c.h.b16 %v2866
      %v3102 = vunpack.c.l.b16 %v2867
      %v3103 = vunpack.c.h.b16 %v2867
      %v3104 = vunpack.c.l.b16 %v2868
      %v3105 = vunpack.c.h.b16 %v2868
      %v3106 = vunpack.c.l.b16 %v2869
      %v3107 = vunpack.c.h.b16 %v2869
      %v3108 = vunpack.c.l.b16 %v2870
      %v3109 = vunpack.c.h.b16 %v2870
      %v3110 = vunpack.c.l.b16 %v2871
      %v3111 = vunpack.c.h.b16 %v2871
      %v3112 = vunpack.c.l.b16 %v2872
      %v3113 = vunpack.c.h.b16 %v2872
      %v3114 = vunpack.c.l.b16 %v2873
      %v3115 = vunpack.c.h.b16 %v2873
      %v3116 = vunpack.c.l.b16 %v2874
      %v3117 = vunpack.c.h.b16 %v2874
      %v3118 = vunpack.c.l.b16 %v2875
      %v3119 = vunpack.c.h.b16 %v2875
      %v3120 = vunpack.c.l.b16 %v2876
      %v3121 = vunpack.c.h.b16 %v2876
      %v3122 = vunpack.c.l.b16 %v2877
      %v3123 = vunpack.c.h.b16 %v2877
      %v3124 = vunpack.c.l.b16 %v2878
      %v3125 = vunpack.c.h.b16 %v2878
      %v3126 = vunpack.c.l.b16 %v2879
      %v3127 = vunpack.c.h.b16 %v2879
      %v3128 = vunpack.c.l.b16 %v2880
      %v3129 = vunpack.c.h.b16 %v2880
      %v3130 = vunpack.c.l.b16 %v2881
      %v3131 = vunpack.c.h.b16 %v2881
      %v3132 = vunpack.c.l.b16 %v2882
      %v3133 = vunpack.c.h.b16 %v2882
      %v3134 = vunpack.c.l.b16 %v2883
      %v3135 = vunpack.c.h.b16 %v2883
      %v3136 = vunpack.c.l.b16 %v2884
      %v3137 = vunpack.c.h.b16 %v2884
      %v3138 = vunpack.c.l.b16 %v2885
      %v3139 = vunpack.c.h.b16 %v2885
      %v3140 = vunpack.c.l.b16 %v2886
      %v3141 = vunpack.c.h.b16 %v2886
      %v3142 = vunpack.c.l.b16 %v2887
      %v3143 = vunpack.c.h.b16 %v2887
      %v3144 = vunpack.c.l.b16 %v2888
      %v3145 = vunpack.c.h.b16 %v2888
      %v3146 = vunpack.c.l.b16 %v2889
      %v3147 = vunpack.c.h.b16 %v2889
      %v3148 = vunpack.c.l.b16 %v2890
      %v3149 = vunpack.c.h.b16 %v2890
      %v3150 = vunpack.c.l.b16 %v2891
      %v3151 = vunpack.c.h.b16 %v2891
      %v3152 = vunpack.c.l.b16 %v2892
      %v3153 = vunpack.c.h.b16 %v2892
      %v3154 = vunpack.c.l.b16 %v2893
      %v3155 = vunpack.c.h.b16 %v2893
      %v3156 = vunpack.c.l.b16 %v2894
      %v3157 = vunpack.c.h.b16 %v2894
      %v3158 = vunpack.c.l.b16 %v2895
      %v3159 = vunpack.c.h.b16 %v2895
      %v3160 = vunpack.c.l.b16 %v2896
      %v3161 = vunpack.c.h.b16 %v2896
      %v3162 = vunpack.c.l.b16 %v2897
      %v3163 = vunpack.c.h.b16 %v2897
      %v3164 = vunpack.c.l.b16 %v2898
      %v3165 = vunpack.c.h.b16 %v2898
      %v3166 = vunpack.c.l.b16 %v2899
      %v3167 = vunpack.c.h.b16 %v2899
      %v3168 = vunpack.c.l.b16 %v2900
      %v3169 = vunpack.c.h.b16 %v2900
      %v3170 = vunpack.c.l.b16 %v2901
      %v3171 = vunpack.c.h.b16 %v2901
      %v3172 = vunpack.c.l.b16 %v2902
      %v3173 = vunpack.c.h.b16 %v2902
      %v3174 = vunpack.c.l.b16 %v2903
      %v3175 = vunpack.c.h.b16 %v2903
      %v3176 = vunpack.c.l.b16 %v2904
      %v3177 = vunpack.c.h.b16 %v2904
      %v3178 = vunpack.c.l.b16 %v2905
      %v3179 = vunpack.c.h.b16 %v2905
      %v3180 = vunpack.c.l.b16 %v2906
      %v3181 = vunpack.c.h.b16 %v2906
      %v3182 = vunpack.c.l.b16 %v2907
      %v3183 = vunpack.c.h.b16 %v2907
      %v3184 = vpack.c.b16 %v3072, %v3056
      %v3185 = vpack.c.b16 %v3073, %v3057
      %v3186 = vpack.c.b16 %v3074, %v3058
      %v3187 = vpack.c.b16 %v3075, %v3059
      %v3188 = vpack.c.b16 %v3076, %v3060
      %v3189 = vpack.c.b16 %v3077, %v3061
      %v3190 = vpack.c.b16 %v3078, %v3062
      %v3191 = vpack.c.b16 %v3079, %v3063
      %v3192 = vpack.c.b16 %v3080, %v3064
      %v3193 = vpack.c.b16 %v3081, %v3065
      %v3194 = vpack.c.b16 %v3082, %v3066
      %v3195 = vpack.c.b16 %v3083, %v3067
      %v3196 = vpack.c.b16 %v3084, %v3068
      %v3197 = vpack.c.b16 %v3085, %v3069
      %v3198 = vpack.c.b16 %v3086, %v3070
      %v3199 = vpack.c.b16 %v3087, %v3071
      %v3200 = vpack.c.b16 %v3104, %v3088
      %v3201 = vpack.c.b16 %v3105, %v3089
      %v3202 = vpack.c.b16 %v3106, %v3090
      %v3203 = vpack.c.b16 %v3107, %v3091
      %v3204 = vpack.c.b16 %v3108, %v3092
      %v3205 = vpack.c.b16 %v3109, %v3093
      %v3206 = vpack.c.b16 %v3110, %v3094
      %v3207 = vpack.c.b16 %v3111, %v3095
      %v3208 = vpack.c.b16 %v3112, %v3096
      %v3209 = vpack.c.b16 %v3113, %v3097
      %v3210 = vpack.c.b16 %v3114, %v3098
      %v3211 = vpack.c.b16 %v3115, %v3099
      %v3212 = vpack.c.b16 %v3116, %v3100
      %v3213 = vpack.c.b16 %v3117, %v3101
      %v3214 = vpack.c.b16 %v3118, %v3102
      %v3215 = vpack.c.b16 %v3119, %v3103
      %v3216 = vpack.c.b16 %v3136, %v3120
      %v3217 = vpack.c.b16 %v3137, %v3121
      %v3218 = vpack.c.b16 %v3138, %v3122
      %v3219 = vpack.c.b16 %v3139, %v3123
      %v3220 = vpack.c.b16 %v3140, %v3124
      %v3221 = vpack.c.b16 %v3141, %v3125
      %v3222 = vpack.c.b16 %v3142, %v3126
      %v3223 = vpack.c.b16 %v3143, %v3127
      %v3224 = vpack.c.b16 %v3144, %v3128
      %v3225 = vpack.c.b16 %v3145, %v3129
      %v3226 = vpack.c.b16 %v3146, %v3130
      %v3227 = vpack.c.b16 %v3147, %v3131
      %v3228 = vpack.c.b16 %v3148, %v3132
      %v3229 = vpack.c.b16 %v3149, %v3133
      %v3230 = vpack.c.b16 %v3150, %v3134
      %v3231 = vpack.c.b16 %v3151, %v3135
      %v3232 = vpack.c.b16 %v3168, %v3152
      %v3233 = vpack.c.b16 %v3169, %v3153
      %v3234 = vpack.c.b16 %v3170, %v3154
      %v3235 = vpack.c.b16 %v3171, %v3155
      %v3236 = vpack.c.b16 %v3172, %v3156
      %v3237 = vpack.c.b16 %v3173, %v3157
      %v3238 = vpack.c.b16 %v3174, %v3158
      %v3239 = vpack.c.b16 %v3175, %v3159
      %v3240 = vpack.c.b16 %v3176, %v3160
      %v3241 = vpack.c.b16 %v3177, %v3161
      %v3242 = vpack.c.b16 %v3178, %v3162
      %v3243 = vpack.c.b16 %v3179, %v3163
      %v3244 = vpack.c.b16 %v3180, %v3164
      %v3245 = vpack.c.b16 %v3181, %v3165
      %v3246 = vpack.c.b16 %v3182, %v3166
      %v3247 = vpack.c.b16 %v3183, %v3167
      %v3313 = vsel %vm1075, %v2843, 0
      %3315 = vmatprep.subr.bf16.mxu0 %v3185
      %3316 = vmatpush1.bf16.msra.mxu0 %v3184
      %3317 = vmatprep.subr.bf16.mxu0 %v3201
      %3318 = vmatpush1.bf16.msra.mxu0 %v3200
      %3319 = vmatprep.subr.bf16.mxu0 %v3217
      %3320 = vmatpush1.bf16.msra.mxu0 %v3216
      %3321 = vmatprep.subr.bf16.mxu0 %v3233
      %3322 = vmatpush1.bf16.msra.mxu0 %v3232
      %3323 = vmatprep.subr.bf16.mxu0 0
      %3324 = vmatpush1.bf16.msra.mxu0 0
      %3325 = vmatprep.subr.bf16.mxu0 0
      %3326 = vmatpush1.bf16.msra.mxu0 0
      %3327 = vmatprep.subr.bf16.mxu0 0
      %3328 = vmatpush1.bf16.msra.mxu0 0
      %3329 = vmatprep.subr.bf16.mxu0 0
      %3330 = vmatpush1.bf16.msra.mxu0 0
      %3331 = vmatprep.subr.bf16.mxu0 0
      %3332 = vmatpush1.bf16.msra.mxu0 0
      %3333 = vmatprep.subr.bf16.mxu0 0
      %3334 = vmatpush1.bf16.msra.mxu0 0
      %3335 = vmatprep.subr.bf16.mxu0 0
      %3336 = vmatpush1.bf16.msra.mxu0 0
      %3337 = vmatprep.subr.bf16.mxu0 0
      %3338 = vmatpush1.bf16.msra.mxu0 0
      %3339 = vmatprep.subr.bf16.mxu0 0
      %3340 = vmatpush1.bf16.msra.mxu0 0
      %3341 = vmatprep.subr.bf16.mxu0 0
      %3342 = vmatpush1.bf16.msra.mxu0 0
      %3343 = vmatprep.subr.bf16.mxu0 0
      %3344 = vmatpush1.bf16.msra.mxu0 0
      %3345 = vmatprep.subr.bf16.mxu0 0
      %3346 = vmatpush1.bf16.msra.mxu0 0
      %3347 = vmatprep.mubr.bf16.mxu0 0
      %3348 = vmatmul.mubr.bf16.gmra.mrb[0].mxu0 %v3313
      %v3349 = vpop.f32.mrb[0].mxu0
      %v3350 = vadd.f32 %v2915, %v3349
      %v3351 = vpop.f32.mrb[0].mxu0
      %v3352 = vadd.f32 %v2919, %v3351
      %v3353 = vpop.f32.mrb[0].mxu0
      %v3354 = vpop.f32.mrb[0].mxu0
      %3355 = vdwg.mxu0
      %3356 = vmatprep.subr.bf16.mxu0 %v3187
      %3357 = vmatpush1.bf16.msra.mxu0 %v3186
      %3358 = vmatprep.subr.bf16.mxu0 %v3203
      %3359 = vmatpush1.bf16.msra.mxu0 %v3202
      %3360 = vmatprep.subr.bf16.mxu0 %v3219
      %3361 = vmatpush1.bf16.msra.mxu0 %v3218
      %3362 = vmatprep.subr.bf16.mxu0 %v3235
      %3363 = vmatpush1.bf16.msra.mxu0 %v3234
      %3364 = vmatprep.subr.bf16.mxu0 0
      %3365 = vmatpush1.bf16.msra.mxu0 0
      %3366 = vmatprep.subr.bf16.mxu0 0
      %3367 = vmatpush1.bf16.msra.mxu0 0
      %3368 = vmatprep.subr.bf16.mxu0 0
      %3369 = vmatpush1.bf16.msra.mxu0 0
      %3370 = vmatprep.subr.bf16.mxu0 0
      %3371 = vmatpush1.bf16.msra.mxu0 0
      %3372 = vmatprep.subr.bf16.mxu0 0
      %3373 = vmatpush1.bf16.msra.mxu0 0
      %3374 = vmatprep.subr.bf16.mxu0 0
      %3375 = vmatpush1.bf16.msra.mxu0 0
      %3376 = vmatprep.subr.bf16.mxu0 0
      %3377 = vmatpush1.bf16.msra.mxu0 0
      %3378 = vmatprep.subr.bf16.mxu0 0
      %3379 = vmatpush1.bf16.msra.mxu0 0
      %3380 = vmatprep.subr.bf16.mxu0 0
      %3381 = vmatpush1.bf16.msra.mxu0 0
      %3382 = vmatprep.subr.bf16.mxu0 0
      %3383 = vmatpush1.bf16.msra.mxu0 0
      %3384 = vmatprep.subr.bf16.mxu0 0
      %3385 = vmatpush1.bf16.msra.mxu0 0
      %3386 = vmatprep.subr.bf16.mxu0 0
      %3387 = vmatpush1.bf16.msra.mxu0 0
      %3388 = vmatprep.mubr.bf16.mxu0 0
      %3389 = vmatmul.mubr.bf16.gmra.mrb[0].mxu0 %v3313
      %v3390 = vpop.f32.mrb[0].mxu0
      %v3391 = vadd.f32 %v2923, %v3390
      %v3392 = vpop.f32.mrb[0].mxu0
      %v3393 = vadd.f32 %v2927, %v3392
      %v3394 = vpop.f32.mrb[0].mxu0
      %v3395 = vpop.f32.mrb[0].mxu0
      %3396 = vdwg.mxu0
      %3397 = vmatprep.subr.bf16.mxu0 %v3189
      %3398 = vmatpush1.bf16.msra.mxu0 %v3188
      %3399 = vmatprep.subr.bf16.mxu0 %v3205
      %3400 = vmatpush1.bf16.msra.mxu0 %v3204
      %3401 = vmatprep.subr.bf16.mxu0 %v3221
      %3402 = vmatpush1.bf16.msra.mxu0 %v3220
      %3403 = vmatprep.subr.bf16.mxu0 %v3237
      %3404 = vmatpush1.bf16.msra.mxu0 %v3236
      %3405 = vmatprep.subr.bf16.mxu0 0
      %3406 = vmatpush1.bf16.msra.mxu0 0
      %3407 = vmatprep.subr.bf16.mxu0 0
      %3408 = vmatpush1.bf16.msra.mxu0 0
      %3409 = vmatprep.subr.bf16.mxu0 0
      %3410 = vmatpush1.bf16.msra.mxu0 0
      %3411 = vmatprep.subr.bf16.mxu0 0
      %3412 = vmatpush1.bf16.msra.mxu0 0
      %3413 = vmatprep.subr.bf16.mxu0 0
      %3414 = vmatpush1.bf16.msra.mxu0 0
      %3415 = vmatprep.subr.bf16.mxu0 0
      %3416 = vmatpush1.bf16.msra.mxu0 0
      %3417 = vmatprep.subr.bf16.mxu0 0
      %3418 = vmatpush1.bf16.msra.mxu0 0
      %3419 = vmatprep.subr.bf16.mxu0 0
      %3420 = vmatpush1.bf16.msra.mxu0 0
      %3421 = vmatprep.subr.bf16.mxu0 0
      %3422 = vmatpush1.bf16.msra.mxu0 0
      %3423 = vmatprep.subr.bf16.mxu0 0
      %3424 = vmatpush1.bf16.msra.mxu0 0
      %3425 = vmatprep.subr.bf16.mxu0 0
      %3426 = vmatpush1.bf16.msra.mxu0 0
      %3427 = vmatprep.subr.bf16.mxu0 0
      %3428 = vmatpush1.bf16.msra.mxu0 0
      %3429 = vmatprep.mubr.bf16.mxu0 0
      %3430 = vmatmul.mubr.bf16.gmra.mrb[0].mxu0 %v3313
      %v3431 = vpop.f32.mrb[0].mxu0
      %v3432 = vadd.f32 %v2931, %v3431
      %v3433 = vpop.f32.mrb[0].mxu0
      %v3434 = vadd.f32 %v2935, %v3433
      %v3435 = vpop.f32.mrb[0].mxu0
      %v3436 = vpop.f32.mrb[0].mxu0
      %3437 = vdwg.mxu0
      %3438 = vmatprep.subr.bf16.mxu0 %v3191
      %3439 = vmatpush1.bf16.msra.mxu0 %v3190
      %3440 = vmatprep.subr.bf16.mxu0 %v3207
      %3441 = vmatpush1.bf16.msra.mxu0 %v3206
      %3442 = vmatprep.subr.bf16.mxu0 %v3223
      %3443 = vmatpush1.bf16.msra.mxu0 %v3222
      %3444 = vmatprep.subr.bf16.mxu0 %v3239
      %3445 = vmatpush1.bf16.msra.mxu0 %v3238
      %3446 = vmatprep.subr.bf16.mxu0 0
      %3447 = vmatpush1.bf16.msra.mxu0 0
      %3448 = vmatprep.subr.bf16.mxu0 0
      %3449 = vmatpush1.bf16.msra.mxu0 0
      %3450 = vmatprep.subr.bf16.mxu0 0
      %3451 = vmatpush1.bf16.msra.mxu0 0
      %3452 = vmatprep.subr.bf16.mxu0 0
      %3453 = vmatpush1.bf16.msra.mxu0 0
      %3454 = vmatprep.subr.bf16.mxu0 0
      %3455 = vmatpush1.bf16.msra.mxu0 0
      %3456 = vmatprep.subr.bf16.mxu0 0
      %3457 = vmatpush1.bf16.msra.mxu0 0
      %3458 = vmatprep.subr.bf16.mxu0 0
      %3459 = vmatpush1.bf16.msra.mxu0 0
      %3460 = vmatprep.subr.bf16.mxu0 0
      %3461 = vmatpush1.bf16.msra.mxu0 0
      %3462 = vmatprep.subr.bf16.mxu0 0
      %3463 = vmatpush1.bf16.msra.mxu0 0
      %3464 = vmatprep.subr.bf16.mxu0 0
      %3465 = vmatpush1.bf16.msra.mxu0 0
      %3466 = vmatprep.subr.bf16.mxu0 0
      %3467 = vmatpush1.bf16.msra.mxu0 0
      %3468 = vmatprep.subr.bf16.mxu0 0
      %3469 = vmatpush1.bf16.msra.mxu0 0
      %3470 = vmatprep.mubr.bf16.mxu0 0
      %3471 = vmatmul.mubr.bf16.gmra.mrb[0].mxu0 %v3313
      %v3472 = vpop.f32.mrb[0].mxu0
      %v3473 = vadd.f32 %v2939, %v3472
      %v3474 = vpop.f32.mrb[0].mxu0
      %v3475 = vadd.f32 %v2943, %v3474
      %v3476 = vpop.f32.mrb[0].mxu0
      %v3477 = vpop.f32.mrb[0].mxu0
      %3478 = vdwg.mxu0
      %3479 = vmatprep.subr.bf16.mxu0 %v3193
      %3480 = vmatpush1.bf16.msra.mxu0 %v3192
      %3481 = vmatprep.subr.bf16.mxu0 %v3209
      %3482 = vmatpush1.bf16.msra.mxu0 %v3208
      %3483 = vmatprep.subr.bf16.mxu0 %v3225
      %3484 = vmatpush1.bf16.msra.mxu0 %v3224
      %3485 = vmatprep.subr.bf16.mxu0 %v3241
      %3486 = vmatpush1.bf16.msra.mxu0 %v3240
      %3487 = vmatprep.subr.bf16.mxu0 0
      %3488 = vmatpush1.bf16.msra.mxu0 0
      %3489 = vmatprep.subr.bf16.mxu0 0
      %3490 = vmatpush1.bf16.msra.mxu0 0
      %3491 = vmatprep.subr.bf16.mxu0 0
      %3492 = vmatpush1.bf16.msra.mxu0 0
      %3493 = vmatprep.subr.bf16.mxu0 0
      %3494 = vmatpush1.bf16.msra.mxu0 0
      %3495 = vmatprep.subr.bf16.mxu0 0
      %3496 = vmatpush1.bf16.msra.mxu0 0
      %3497 = vmatprep.subr.bf16.mxu0 0
      %3498 = vmatpush1.bf16.msra.mxu0 0
      %3499 = vmatprep.subr.bf16.mxu0 0
      %3500 = vmatpush1.bf16.msra.mxu0 0
      %3501 = vmatprep.subr.bf16.mxu0 0
      %3502 = vmatpush1.bf16.msra.mxu0 0
      %3503 = vmatprep.subr.bf16.mxu0 0
      %3504 = vmatpush1.bf16.msra.mxu0 0
      %3505 = vmatprep.subr.bf16.mxu0 0
      %3506 = vmatpush1.bf16.msra.mxu0 0
      %3507 = vmatprep.subr.bf16.mxu0 0
      %3508 = vmatpush1.bf16.msra.mxu0 0
      %3509 = vmatprep.subr.bf16.mxu0 0
      %3510 = vmatpush1.bf16.msra.mxu0 0
      %3511 = vmatprep.mubr.bf16.mxu0 0
      %3512 = vmatmul.mubr.bf16.gmra.mrb[0].mxu0 %v3313
      %v3513 = vpop.f32.mrb[0].mxu0
      %v3514 = vadd.f32 %v2947, %v3513
      %v3515 = vpop.f32.mrb[0].mxu0
      %v3516 = vadd.f32 %v2951, %v3515
      %v3517 = vpop.f32.mrb[0].mxu0
      %v3518 = vpop.f32.mrb[0].mxu0
      %3519 = vdwg.mxu0
      %3520 = vmatprep.subr.bf16.mxu0 %v3195
      %3521 = vmatpush1.bf16.msra.mxu0 %v3194
      %3522 = vmatprep.subr.bf16.mxu0 %v3211
      %3523 = vmatpush1.bf16.msra.mxu0 %v3210
      %3524 = vmatprep.subr.bf16.mxu0 %v3227
      %3525 = vmatpush1.bf16.msra.mxu0 %v3226
      %3526 = vmatprep.subr.bf16.mxu0 %v3243
      %3527 = vmatpush1.bf16.msra.mxu0 %v3242
      %3528 = vmatprep.subr.bf16.mxu0 0
      %3529 = vmatpush1.bf16.msra.mxu0 0
      %3530 = vmatprep.subr.bf16.mxu0 0
      %3531 = vmatpush1.bf16.msra.mxu0 0
      %3532 = vmatprep.subr.bf16.mxu0 0
      %3533 = vmatpush1.bf16.msra.mxu0 0
      %3534 = vmatprep.subr.bf16.mxu0 0
      %3535 = vmatpush1.bf16.msra.mxu0 0
      %3536 = vmatprep.subr.bf16.mxu0 0
      %3537 = vmatpush1.bf16.msra.mxu0 0
      %3538 = vmatprep.subr.bf16.mxu0 0
      %3539 = vmatpush1.bf16.msra.mxu0 0
      %3540 = vmatprep.subr.bf16.mxu0 0
      %3541 = vmatpush1.bf16.msra.mxu0 0
      %3542 = vmatprep.subr.bf16.mxu0 0
      %3543 = vmatpush1.bf16.msra.mxu0 0
      %3544 = vmatprep.subr.bf16.mxu0 0
      %3545 = vmatpush1.bf16.msra.mxu0 0
      %3546 = vmatprep.subr.bf16.mxu0 0
      %3547 = vmatpush1.bf16.msra.mxu0 0
      %3548 = vmatprep.subr.bf16.mxu0 0
      %3549 = vmatpush1.bf16.msra.mxu0 0
      %3550 = vmatprep.subr.bf16.mxu0 0
      %3551 = vmatpush1.bf16.msra.mxu0 0
      %3552 = vmatprep.mubr.bf16.mxu0 0
      %3553 = vmatmul.mubr.bf16.gmra.mrb[0].mxu0 %v3313
      %v3554 = vpop.f32.mrb[0].mxu0
      %v3555 = vadd.f32 %v2955, %v3554
      %v3556 = vpop.f32.mrb[0].mxu0
      %v3557 = vadd.f32 %v2959, %v3556
      %v3558 = vpop.f32.mrb[0].mxu0
      %v3559 = vpop.f32.mrb[0].mxu0
      %3560 = vdwg.mxu0
      %3561 = vmatprep.subr.bf16.mxu0 %v3197
      %3562 = vmatpush1.bf16.msra.mxu0 %v3196
      %3563 = vmatprep.subr.bf16.mxu0 %v3213
      %3564 = vmatpush1.bf16.msra.mxu0 %v3212
      %3565 = vmatprep.subr.bf16.mxu0 %v3229
      %3566 = vmatpush1.bf16.msra.mxu0 %v3228
      %3567 = vmatprep.subr.bf16.mxu0 %v3245
      %3568 = vmatpush1.bf16.msra.mxu0 %v3244
      %3569 = vmatprep.subr.bf16.mxu0 0
      %3570 = vmatpush1.bf16.msra.mxu0 0
      %3571 = vmatprep.subr.bf16.mxu0 0
      %3572 = vmatpush1.bf16.msra.mxu0 0
      %3573 = vmatprep.subr.bf16.mxu0 0
      %3574 = vmatpush1.bf16.msra.mxu0 0
      %3575 = vmatprep.subr.bf16.mxu0 0
      %3576 = vmatpush1.bf16.msra.mxu0 0
      %3577 = vmatprep.subr.bf16.mxu0 0
      %3578 = vmatpush1.bf16.msra.mxu0 0
      %3579 = vmatprep.subr.bf16.mxu0 0
      %3580 = vmatpush1.bf16.msra.mxu0 0
      %3581 = vmatprep.subr.bf16.mxu0 0
      %3582 = vmatpush1.bf16.msra.mxu0 0
      %3583 = vmatprep.subr.bf16.mxu0 0
      %3584 = vmatpush1.bf16.msra.mxu0 0
      %3585 = vmatprep.subr.bf16.mxu0 0
      %3586 = vmatpush1.bf16.msra.mxu0 0
      %3587 = vmatprep.subr.bf16.mxu0 0
      %3588 = vmatpush1.bf16.msra.mxu0 0
      %3589 = vmatprep.subr.bf16.mxu0 0
      %3590 = vmatpush1.bf16.msra.mxu0 0
      %3591 = vmatprep.subr.bf16.mxu0 0
      %3592 = vmatpush1.bf16.msra.mxu0 0
      %3593 = vmatprep.mubr.bf16.mxu0 0
      %3594 = vmatmul.mubr.bf16.gmra.mrb[0].mxu0 %v3313
      %v3595 = vpop.f32.mrb[0].mxu0
      %v3596 = vadd.f32 %v2963, %v3595
      %v3597 = vpop.f32.mrb[0].mxu0
      %v3598 = vadd.f32 %v2967, %v3597
      %v3599 = vpop.f32.mrb[0].mxu0
      %v3600 = vpop.f32.mrb[0].mxu0
      %3601 = vdwg.mxu0
      %3602 = vmatprep.subr.bf16.mxu0 %v3199
      %3603 = vmatpush1.bf16.msra.mxu0 %v3198
      %3604 = vmatprep.subr.bf16.mxu0 %v3215
      %3605 = vmatpush1.bf16.msra.mxu0 %v3214
      %3606 = vmatprep.subr.bf16.mxu0 %v3231
      %3607 = vmatpush1.bf16.msra.mxu0 %v3230
      %3608 = vmatprep.subr.bf16.mxu0 %v3247
      %3609 = vmatpush1.bf16.msra.mxu0 %v3246
      %3610 = vmatprep.subr.bf16.mxu0 0
      %3611 = vmatpush1.bf16.msra.mxu0 0
      %3612 = vmatprep.subr.bf16.mxu0 0
      %3613 = vmatpush1.bf16.msra.mxu0 0
      %3614 = vmatprep.subr.bf16.mxu0 0
      %3615 = vmatpush1.bf16.msra.mxu0 0
      %3616 = vmatprep.subr.bf16.mxu0 0
      %3617 = vmatpush1.bf16.msra.mxu0 0
      %3618 = vmatprep.subr.bf16.mxu0 0
      %3619 = vmatpush1.bf16.msra.mxu0 0
      %3620 = vmatprep.subr.bf16.mxu0 0
      %3621 = vmatpush1.bf16.msra.mxu0 0
      %3622 = vmatprep.subr.bf16.mxu0 0
      %3623 = vmatpush1.bf16.msra.mxu0 0
      %3624 = vmatprep.subr.bf16.mxu0 0
      %3625 = vmatpush1.bf16.msra.mxu0 0
      %3626 = vmatprep.subr.bf16.mxu0 0
      %3627 = vmatpush1.bf16.msra.mxu0 0
      %3628 = vmatprep.subr.bf16.mxu0 0
      %3629 = vmatpush1.bf16.msra.mxu0 0
      %3630 = vmatprep.subr.bf16.mxu0 0
      %3631 = vmatpush1.bf16.msra.mxu0 0
      %3632 = vmatprep.subr.bf16.mxu0 0
      %3633 = vmatpush1.bf16.msra.mxu0 0
      %3634 = vmatprep.mubr.bf16.mxu0 0
      %3635 = vmatmul.mubr.bf16.gmra.mrb[0].mxu0 %v3313
      %v3636 = vpop.f32.mrb[0].mxu0
      %v3637 = vadd.f32 %v2971, %v3636
      %v3638 = vpop.f32.mrb[0].mxu0
      %v3639 = vadd.f32 %v2975, %v3638
      %v3640 = vpop.f32.mrb[0].mxu0
      %v3641 = vpop.f32.mrb[0].mxu0
      %3642 = vdwg.mxu0
      %v3643 = vmax.f32 %v3350, 0.0
      %v3644 = vmax.f32 %v3352, 0.0
      %v3645 = vmax.f32 %v3391, 0.0
      %v3646 = vmax.f32 %v3393, 0.0
      %v3647 = vmax.f32 %v3432, 0.0
      %v3648 = vmax.f32 %v3434, 0.0
      %v3649 = vmax.f32 %v3473, 0.0
      %v3650 = vmax.f32 %v3475, 0.0
      %v3651 = vmax.f32 %v3514, 0.0
      %v3652 = vmax.f32 %v3516, 0.0
      %v3653 = vmax.f32 %v3555, 0.0
      %v3654 = vmax.f32 %v3557, 0.0
      %v3655 = vmax.f32 %v3596, 0.0
      %v3656 = vmax.f32 %v3598, 0.0
      %v3657 = vmax.f32 %v3637, 0.0
      %v3658 = vmax.f32 %v3639, 0.0
      %v3659 = vpack.c.bf16 %v3643, %v3643
      %v3660 = vpack.c.bf16 %v3644, %v3644
      %v3661 = vpack.c.bf16 %v3645, %v3645
      %v3662 = vpack.c.bf16 %v3646, %v3646
      %v3663 = vpack.c.bf16 %v3647, %v3647
      %v3664 = vpack.c.bf16 %v3648, %v3648
      %v3665 = vpack.c.bf16 %v3649, %v3649
      %v3666 = vpack.c.bf16 %v3650, %v3650
      %v3667 = vpack.c.bf16 %v3651, %v3651
      %v3668 = vpack.c.bf16 %v3652, %v3652
      %v3669 = vpack.c.bf16 %v3653, %v3653
      %v3670 = vpack.c.bf16 %v3654, %v3654
      %v3671 = vpack.c.bf16 %v3655, %v3655
      %v3672 = vpack.c.bf16 %v3656, %v3656
      %v3673 = vpack.c.bf16 %v3657, %v3657
      %v3674 = vpack.c.bf16 %v3658, %v3658
      %v3675 = vld [vmem:[%s884] sm:$0xf]
      %v3676 = vld [vmem:[%s884 + $0x4] sm:$0xf]
      %v3677 = vld [vmem:[%s884 + $0x8] sm:$0xf]
      %v3678 = vld [vmem:[%s884 + $0xc] sm:$0xf]
      %v3679 = vld [vmem:[%s884 + $0x10] sm:$0xf]
      %v3680 = vld [vmem:[%s884 + $0x14] sm:$0xf]
      %v3681 = vld [vmem:[%s884 + $0x18] sm:$0xf]
      %v3682 = vld [vmem:[%s884 + $0x1c] sm:$0xf]
      %v3683 = vld [vmem:[%s884 + $0x20] sm:$0xf]
      %v3684 = vld [vmem:[%s884 + $0x24] sm:$0xf]
      %v3685 = vld [vmem:[%s884 + $0x28] sm:$0xf]
      %v3686 = vld [vmem:[%s884 + $0x2c] sm:$0xf]
      %v3687 = vld [vmem:[%s884 + $0x30] sm:$0xf]
      %v3688 = vld [vmem:[%s884 + $0x34] sm:$0xf]
      %v3689 = vld [vmem:[%s884 + $0x38] sm:$0xf]
      %v3690 = vld [vmem:[%s884 + $0x3c] sm:$0xf]
      %v3691 = vld [vmem:[%s884 + $0x40] sm:$0xf]
      %v3692 = vld [vmem:[%s884 + $0x44] sm:$0xf]
      %v3693 = vld [vmem:[%s884 + $0x48] sm:$0xf]
      %v3694 = vld [vmem:[%s884 + $0x4c] sm:$0xf]
      %v3695 = vld [vmem:[%s884 + $0x50] sm:$0xf]
      %v3696 = vld [vmem:[%s884 + $0x54] sm:$0xf]
      %v3697 = vld [vmem:[%s884 + $0x58] sm:$0xf]
      %v3698 = vld [vmem:[%s884 + $0x5c] sm:$0xf]
      %v3699 = vld [vmem:[%s884 + $0x60] sm:$0xf]
      %v3700 = vld [vmem:[%s884 + $0x64] sm:$0xf]
      %v3701 = vld [vmem:[%s884 + $0x68] sm:$0xf]
      %v3702 = vld [vmem:[%s884 + $0x6c] sm:$0xf]
      %v3703 = vld [vmem:[%s884 + $0x70] sm:$0xf]
      %v3704 = vld [vmem:[%s884 + $0x74] sm:$0xf]
      %v3705 = vld [vmem:[%s884 + $0x78] sm:$0xf]
      %v3706 = vld [vmem:[%s884 + $0x7c] sm:$0xf]
      %v3707 = vld [vmem:[%s884 + $0x80] sm:$0xf]
      %v3708 = vld [vmem:[%s884 + $0x84] sm:$0xf]
      %v3709 = vld [vmem:[%s884 + $0x88] sm:$0xf]
      %v3710 = vld [vmem:[%s884 + $0x8c] sm:$0xf]
      %v3711 = vld [vmem:[%s884 + $0x90] sm:$0xf]
      %v3712 = vld [vmem:[%s884 + $0x94] sm:$0xf]
      %v3713 = vld [vmem:[%s884 + $0x98] sm:$0xf]
      %v3714 = vld [vmem:[%s884 + $0x9c] sm:$0xf]
      %v3715 = vld [vmem:[%s884 + $0xa0] sm:$0xf]
      %v3716 = vld [vmem:[%s884 + $0xa4] sm:$0xf]
      %v3717 = vld [vmem:[%s884 + $0xa8] sm:$0xf]
      %v3718 = vld [vmem:[%s884 + $0xac] sm:$0xf]
      %v3719 = vld [vmem:[%s884 + $0xb0] sm:$0xf]
      %v3720 = vld [vmem:[%s884 + $0xb4] sm:$0xf]
      %v3721 = vld [vmem:[%s884 + $0xb8] sm:$0xf]
      %v3722 = vld [vmem:[%s884 + $0xbc] sm:$0xf]
      %v3723 = vld [vmem:[%s884 + $0xc0] sm:$0xf]
      %v3724 = vld [vmem:[%s884 + $0xc4] sm:$0xf]
      %v3725 = vld [vmem:[%s884 + $0xc8] sm:$0xf]
      %v3726 = vld [vmem:[%s884 + $0xcc] sm:$0xf]
      %v3727 = vld [vmem:[%s884 + $0xd0] sm:$0xf]
      %v3728 = vld [vmem:[%s884 + $0xd4] sm:$0xf]
      %v3729 = vld [vmem:[%s884 + $0xd8] sm:$0xf]
      %v3730 = vld [vmem:[%s884 + $0xdc] sm:$0xf]
      %v3731 = vld [vmem:[%s884 + $0xe0] sm:$0xf]
      %v3732 = vld [vmem:[%s884 + $0xe4] sm:$0xf]
      %v3733 = vld [vmem:[%s884 + $0xe8] sm:$0xf]
      %v3734 = vld [vmem:[%s884 + $0xec] sm:$0xf]
      %v3735 = vld [vmem:[%s884 + $0xf0] sm:$0xf]
      %v3736 = vld [vmem:[%s884 + $0xf4] sm:$0xf]
      %v3737 = vld [vmem:[%s884 + $0xf8] sm:$0xf]
      %v3738 = vld [vmem:[%s884 + $0xfc] sm:$0xf]
      %v3739 = vld [vmem:[%s884 + $0x100] sm:$0xf]
      %v3740 = vld [vmem:[%s884 + $0x104] sm:$0xf]
      %v3741 = vld [vmem:[%s884 + $0x108] sm:$0xf]
      %v3742 = vld [vmem:[%s884 + $0x10c] sm:$0xf]
      %v3743 = vld [vmem:[%s884 + $0x110] sm:$0xf]
      %v3744 = vld [vmem:[%s884 + $0x114] sm:$0xf]
      %v3745 = vld [vmem:[%s884 + $0x118] sm:$0xf]
      %v3746 = vld [vmem:[%s884 + $0x11c] sm:$0xf]
      %v3747 = vld [vmem:[%s884 + $0x120] sm:$0xf]
      %v3748 = vld [vmem:[%s884 + $0x124] sm:$0xf]
      %v3749 = vld [vmem:[%s884 + $0x128] sm:$0xf]
      %v3750 = vld [vmem:[%s884 + $0x12c] sm:$0xf]
      %v3751 = vld [vmem:[%s884 + $0x130] sm:$0xf]
      %v3752 = vld [vmem:[%s884 + $0x134] sm:$0xf]
      %v3753 = vld [vmem:[%s884 + $0x138] sm:$0xf]
      %v3754 = vld [vmem:[%s884 + $0x13c] sm:$0xf]
      %v3755 = vld [vmem:[%s884 + $0x140] sm:$0xf]
      %v3756 = vld [vmem:[%s884 + $0x144] sm:$0xf]
      %v3757 = vld [vmem:[%s884 + $0x148] sm:$0xf]
      %v3758 = vld [vmem:[%s884 + $0x14c] sm:$0xf]
      %v3759 = vld [vmem:[%s884 + $0x150] sm:$0xf]
      %v3760 = vld [vmem:[%s884 + $0x154] sm:$0xf]
      %v3761 = vld [vmem:[%s884 + $0x158] sm:$0xf]
      %v3762 = vld [vmem:[%s884 + $0x15c] sm:$0xf]
      %v3763 = vld [vmem:[%s884 + $0x160] sm:$0xf]
      %v3764 = vld [vmem:[%s884 + $0x164] sm:$0xf]
      %v3765 = vld [vmem:[%s884 + $0x168] sm:$0xf]
      %v3766 = vld [vmem:[%s884 + $0x16c] sm:$0xf]
      %v3767 = vld [vmem:[%s884 + $0x170] sm:$0xf]
      %v3768 = vld [vmem:[%s884 + $0x174] sm:$0xf]
      %v3769 = vld [vmem:[%s884 + $0x178] sm:$0xf]
      %v3770 = vld [vmem:[%s884 + $0x17c] sm:$0xf]
      %v3771 = vld [vmem:[%s884 + $0x180] sm:$0xf]
      %v3772 = vld [vmem:[%s884 + $0x184] sm:$0xf]
      %v3773 = vld [vmem:[%s884 + $0x188] sm:$0xf]
      %v3774 = vld [vmem:[%s884 + $0x18c] sm:$0xf]
      %v3775 = vld [vmem:[%s884 + $0x190] sm:$0xf]
      %v3776 = vld [vmem:[%s884 + $0x194] sm:$0xf]
      %v3777 = vld [vmem:[%s884 + $0x198] sm:$0xf]
      %v3778 = vld [vmem:[%s884 + $0x19c] sm:$0xf]
      %v3779 = vld [vmem:[%s884 + $0x1a0] sm:$0xf]
      %v3780 = vld [vmem:[%s884 + $0x1a4] sm:$0xf]
      %v3781 = vld [vmem:[%s884 + $0x1a8] sm:$0xf]
      %v3782 = vld [vmem:[%s884 + $0x1ac] sm:$0xf]
      %v3783 = vld [vmem:[%s884 + $0x1b0] sm:$0xf]
      %v3784 = vld [vmem:[%s884 + $0x1b4] sm:$0xf]
      %v3785 = vld [vmem:[%s884 + $0x1b8] sm:$0xf]
      %v3786 = vld [vmem:[%s884 + $0x1bc] sm:$0xf]
      %v3787 = vld [vmem:[%s884 + $0x1c0] sm:$0xf]
      %v3788 = vld [vmem:[%s884 + $0x1c4] sm:$0xf]
      %v3789 = vld [vmem:[%s884 + $0x1c8] sm:$0xf]
      %v3790 = vld [vmem:[%s884 + $0x1cc] sm:$0xf]
      %v3791 = vld [vmem:[%s884 + $0x1d0] sm:$0xf]
      %v3792 = vld [vmem:[%s884 + $0x1d4] sm:$0xf]
      %v3793 = vld [vmem:[%s884 + $0x1d8] sm:$0xf]
      %v3794 = vld [vmem:[%s884 + $0x1dc] sm:$0xf]
      %v3795 = vld [vmem:[%s884 + $0x1e0] sm:$0xf]
      %v3796 = vld [vmem:[%s884 + $0x1e4] sm:$0xf]
      %v3797 = vld [vmem:[%s884 + $0x1e8] sm:$0xf]
      %v3798 = vld [vmem:[%s884 + $0x1ec] sm:$0xf]
      %v3799 = vld [vmem:[%s884 + $0x1f0] sm:$0xf]
      %v3800 = vld [vmem:[%s884 + $0x1f4] sm:$0xf]
      %v3801 = vld [vmem:[%s884 + $0x1f8] sm:$0xf]
      %v3802 = vld [vmem:[%s884 + $0x1fc] sm:$0xf]
      %v3803 = vld [vmem:[%s884 + $0x200] sm:$0xf]
      %v3804 = vld [vmem:[%s884 + $0x204] sm:$0xf]
      %v3805 = vld [vmem:[%s884 + $0x208] sm:$0xf]
      %v3806 = vld [vmem:[%s884 + $0x20c] sm:$0xf]
      %v3807 = vld [vmem:[%s884 + $0x210] sm:$0xf]
      %v3808 = vld [vmem:[%s884 + $0x214] sm:$0xf]
      %v3809 = vld [vmem:[%s884 + $0x218] sm:$0xf]
      %v3810 = vld [vmem:[%s884 + $0x21c] sm:$0xf]
      %v3811 = vld [vmem:[%s884 + $0x220] sm:$0xf]
      %v3812 = vld [vmem:[%s884 + $0x224] sm:$0xf]
      %v3813 = vld [vmem:[%s884 + $0x228] sm:$0xf]
      %v3814 = vld [vmem:[%s884 + $0x22c] sm:$0xf]
      %v3815 = vld [vmem:[%s884 + $0x230] sm:$0xf]
      %v3816 = vld [vmem:[%s884 + $0x234] sm:$0xf]
      %v3817 = vld [vmem:[%s884 + $0x238] sm:$0xf]
      %v3818 = vld [vmem:[%s884 + $0x23c] sm:$0xf]
      %v3819 = vld [vmem:[%s884 + $0x240] sm:$0xf]
      %v3820 = vld [vmem:[%s884 + $0x244] sm:$0xf]
      %v3821 = vld [vmem:[%s884 + $0x248] sm:$0xf]
      %v3822 = vld [vmem:[%s884 + $0x24c] sm:$0xf]
      %v3823 = vld [vmem:[%s884 + $0x250] sm:$0xf]
      %v3824 = vld [vmem:[%s884 + $0x254] sm:$0xf]
      %v3825 = vld [vmem:[%s884 + $0x258] sm:$0xf]
      %v3826 = vld [vmem:[%s884 + $0x25c] sm:$0xf]
      %v3827 = vld [vmem:[%s884 + $0x260] sm:$0xf]
      %v3828 = vld [vmem:[%s884 + $0x264] sm:$0xf]
      %v3829 = vld [vmem:[%s884 + $0x268] sm:$0xf]
      %v3830 = vld [vmem:[%s884 + $0x26c] sm:$0xf]
      %v3831 = vld [vmem:[%s884 + $0x270] sm:$0xf]
      %v3832 = vld [vmem:[%s884 + $0x274] sm:$0xf]
      %v3833 = vld [vmem:[%s884 + $0x278] sm:$0xf]
      %v3834 = vld [vmem:[%s884 + $0x27c] sm:$0xf]
      %v3835 = vld [vmem:[%s884 + $0x280] sm:$0xf]
      %v3836 = vld [vmem:[%s884 + $0x284] sm:$0xf]
      %v3837 = vld [vmem:[%s884 + $0x288] sm:$0xf]
      %v3838 = vld [vmem:[%s884 + $0x28c] sm:$0xf]
      %v3839 = vld [vmem:[%s884 + $0x290] sm:$0xf]
      %v3840 = vld [vmem:[%s884 + $0x294] sm:$0xf]
      %v3841 = vld [vmem:[%s884 + $0x298] sm:$0xf]
      %v3842 = vld [vmem:[%s884 + $0x29c] sm:$0xf]
      %v3843 = vld [vmem:[%s884 + $0x2a0] sm:$0xf]
      %v3844 = vld [vmem:[%s884 + $0x2a4] sm:$0xf]
      %v3845 = vld [vmem:[%s884 + $0x2a8] sm:$0xf]
      %v3846 = vld [vmem:[%s884 + $0x2ac] sm:$0xf]
      %v3847 = vld [vmem:[%s884 + $0x2b0] sm:$0xf]
      %v3848 = vld [vmem:[%s884 + $0x2b4] sm:$0xf]
      %v3849 = vld [vmem:[%s884 + $0x2b8] sm:$0xf]
      %v3850 = vld [vmem:[%s884 + $0x2bc] sm:$0xf]
      %v3851 = vld [vmem:[%s884 + $0x2c0] sm:$0xf]
      %v3852 = vld [vmem:[%s884 + $0x2c4] sm:$0xf]
      %v3853 = vld [vmem:[%s884 + $0x2c8] sm:$0xf]
      %v3854 = vld [vmem:[%s884 + $0x2cc] sm:$0xf]
      %v3855 = vld [vmem:[%s884 + $0x2d0] sm:$0xf]
      %v3856 = vld [vmem:[%s884 + $0x2d4] sm:$0xf]
      %v3857 = vld [vmem:[%s884 + $0x2d8] sm:$0xf]
      %v3858 = vld [vmem:[%s884 + $0x2dc] sm:$0xf]
      %v3859 = vld [vmem:[%s884 + $0x2e0] sm:$0xf]
      %v3860 = vld [vmem:[%s884 + $0x2e4] sm:$0xf]
      %v3861 = vld [vmem:[%s884 + $0x2e8] sm:$0xf]
      %v3862 = vld [vmem:[%s884 + $0x2ec] sm:$0xf]
      %v3863 = vld [vmem:[%s884 + $0x2f0] sm:$0xf]
      %v3864 = vld [vmem:[%s884 + $0x2f4] sm:$0xf]
      %v3865 = vld [vmem:[%s884 + $0x2f8] sm:$0xf]
      %v3866 = vld [vmem:[%s884 + $0x2fc] sm:$0xf]
      %v3867 = vld [vmem:[%s884 + $0x300] sm:$0xf]
      %v3868 = vld [vmem:[%s884 + $0x304] sm:$0xf]
      %v3869 = vld [vmem:[%s884 + $0x308] sm:$0xf]
      %v3870 = vld [vmem:[%s884 + $0x30c] sm:$0xf]
      %v3871 = vld [vmem:[%s884 + $0x310] sm:$0xf]
      %v3872 = vld [vmem:[%s884 + $0x314] sm:$0xf]
      %v3873 = vld [vmem:[%s884 + $0x318] sm:$0xf]
      %v3874 = vld [vmem:[%s884 + $0x31c] sm:$0xf]
      %v3875 = vld [vmem:[%s884 + $0x320] sm:$0xf]
      %v3876 = vld [vmem:[%s884 + $0x324] sm:$0xf]
      %v3877 = vld [vmem:[%s884 + $0x328] sm:$0xf]
      %v3878 = vld [vmem:[%s884 + $0x32c] sm:$0xf]
      %v3879 = vld [vmem:[%s884 + $0x330] sm:$0xf]
      %v3880 = vld [vmem:[%s884 + $0x334] sm:$0xf]
      %v3881 = vld [vmem:[%s884 + $0x338] sm:$0xf]
      %v3882 = vld [vmem:[%s884 + $0x33c] sm:$0xf]
      %v3883 = vld [vmem:[%s884 + $0x340] sm:$0xf]
      %v3884 = vld [vmem:[%s884 + $0x344] sm:$0xf]
      %v3885 = vld [vmem:[%s884 + $0x348] sm:$0xf]
      %v3886 = vld [vmem:[%s884 + $0x34c] sm:$0xf]
      %v3887 = vld [vmem:[%s884 + $0x350] sm:$0xf]
      %v3888 = vld [vmem:[%s884 + $0x354] sm:$0xf]
      %v3889 = vld [vmem:[%s884 + $0x358] sm:$0xf]
      %v3890 = vld [vmem:[%s884 + $0x35c] sm:$0xf]
      %v3891 = vld [vmem:[%s884 + $0x360] sm:$0xf]
      %v3892 = vld [vmem:[%s884 + $0x364] sm:$0xf]
      %v3893 = vld [vmem:[%s884 + $0x368] sm:$0xf]
      %v3894 = vld [vmem:[%s884 + $0x36c] sm:$0xf]
      %v3895 = vld [vmem:[%s884 + $0x370] sm:$0xf]
      %v3896 = vld [vmem:[%s884 + $0x374] sm:$0xf]
      %v3897 = vld [vmem:[%s884 + $0x378] sm:$0xf]
      %v3898 = vld [vmem:[%s884 + $0x37c] sm:$0xf]
      %v3899 = vld [vmem:[%s884 + $0x380] sm:$0xf]
      %v3900 = vld [vmem:[%s884 + $0x384] sm:$0xf]
      %v3901 = vld [vmem:[%s884 + $0x388] sm:$0xf]
      %v3902 = vld [vmem:[%s884 + $0x38c] sm:$0xf]
      %v3903 = vld [vmem:[%s884 + $0x390] sm:$0xf]
      %v3904 = vld [vmem:[%s884 + $0x394] sm:$0xf]
      %v3905 = vld [vmem:[%s884 + $0x398] sm:$0xf]
      %v3906 = vld [vmem:[%s884 + $0x39c] sm:$0xf]
      %v3907 = vld [vmem:[%s884 + $0x3a0] sm:$0xf]
      %v3908 = vld [vmem:[%s884 + $0x3a4] sm:$0xf]
      %v3909 = vld [vmem:[%s884 + $0x3a8] sm:$0xf]
      %v3910 = vld [vmem:[%s884 + $0x3ac] sm:$0xf]
      %v3911 = vld [vmem:[%s884 + $0x3b0] sm:$0xf]
      %v3912 = vld [vmem:[%s884 + $0x3b4] sm:$0xf]
      %v3913 = vld [vmem:[%s884 + $0x3b8] sm:$0xf]
      %v3914 = vld [vmem:[%s884 + $0x3bc] sm:$0xf]
      %v3915 = vld [vmem:[%s884 + $0x3c0] sm:$0xf]
      %v3916 = vld [vmem:[%s884 + $0x3c4] sm:$0xf]
      %v3917 = vld [vmem:[%s884 + $0x3c8] sm:$0xf]
      %v3918 = vld [vmem:[%s884 + $0x3cc] sm:$0xf]
      %v3919 = vld [vmem:[%s884 + $0x3d0] sm:$0xf]
      %v3920 = vld [vmem:[%s884 + $0x3d4] sm:$0xf]
      %v3921 = vld [vmem:[%s884 + $0x3d8] sm:$0xf]
      %v3922 = vld [vmem:[%s884 + $0x3dc] sm:$0xf]
      %v3923 = vld [vmem:[%s884 + $0x3e0] sm:$0xf]
      %v3924 = vld [vmem:[%s884 + $0x3e4] sm:$0xf]
      %v3925 = vld [vmem:[%s884 + $0x3e8] sm:$0xf]
      %v3926 = vld [vmem:[%s884 + $0x3ec] sm:$0xf]
      %v3927 = vld [vmem:[%s884 + $0x3f0] sm:$0xf]
      %v3928 = vld [vmem:[%s884 + $0x3f4] sm:$0xf]
      %v3929 = vld [vmem:[%s884 + $0x3f8] sm:$0xf]
      %v3930 = vld [vmem:[%s884 + $0x3fc] sm:$0xf]
      %v3931 = vld [vmem:[%s887] sm:$0x1]
      %v3933 = vlaneseq
      %v3934 = vshrl.u32 %v3933, 7
      %v3935 = vsub.s32 0, %v3934
      %v3936 = vrot.slane %v3931, %v3935
      %v4194 = vunpack.c.l.b16 %v3675
      %v4195 = vunpack.c.l.b16 %v3676
      %v4196 = vunpack.c.l.b16 %v3677
      %v4197 = vunpack.c.l.b16 %v3678
      %v4198 = vunpack.c.l.b16 %v3679
      %v4199 = vunpack.c.l.b16 %v3680
      %v4200 = vunpack.c.l.b16 %v3681
      %v4201 = vunpack.c.l.b16 %v3682
      %v4202 = vunpack.c.l.b16 %v3683
      %v4203 = vunpack.c.l.b16 %v3684
      %v4204 = vunpack.c.l.b16 %v3685
      %v4205 = vunpack.c.l.b16 %v3686
      %v4206 = vunpack.c.l.b16 %v3687
      %v4207 = vunpack.c.l.b16 %v3688
      %v4208 = vunpack.c.l.b16 %v3689
      %v4209 = vunpack.c.l.b16 %v3690
      %v4210 = vunpack.c.l.b16 %v3691
      %v4211 = vunpack.c.l.b16 %v3692
      %v4212 = vunpack.c.l.b16 %v3693
      %v4213 = vunpack.c.l.b16 %v3694
      %v4214 = vunpack.c.l.b16 %v3695
      %v4215 = vunpack.c.l.b16 %v3696
      %v4216 = vunpack.c.l.b16 %v3697
      %v4217 = vunpack.c.l.b16 %v3698
      %v4218 = vunpack.c.l.b16 %v3699
      %v4219 = vunpack.c.l.b16 %v3700
      %v4220 = vunpack.c.l.b16 %v3701
      %v4221 = vunpack.c.l.b16 %v3702
      %v4222 = vunpack.c.l.b16 %v3703
      %v4223 = vunpack.c.l.b16 %v3704
      %v4224 = vunpack.c.l.b16 %v3705
      %v4225 = vunpack.c.l.b16 %v3706
      %v4226 = vunpack.c.l.b16 %v3707
      %v4227 = vunpack.c.l.b16 %v3708
      %v4228 = vunpack.c.l.b16 %v3709
      %v4229 = vunpack.c.l.b16 %v3710
      %v4230 = vunpack.c.l.b16 %v3711
      %v4231 = vunpack.c.l.b16 %v3712
      %v4232 = vunpack.c.l.b16 %v3713
      %v4233 = vunpack.c.l.b16 %v3714
      %v4234 = vunpack.c.l.b16 %v3715
      %v4235 = vunpack.c.l.b16 %v3716
      %v4236 = vunpack.c.l.b16 %v3717
      %v4237 = vunpack.c.l.b16 %v3718
      %v4238 = vunpack.c.l.b16 %v3719
      %v4239 = vunpack.c.l.b16 %v3720
      %v4240 = vunpack.c.l.b16 %v3721
      %v4241 = vunpack.c.l.b16 %v3722
      %v4242 = vunpack.c.l.b16 %v3723
      %v4243 = vunpack.c.l.b16 %v3724
      %v4244 = vunpack.c.l.b16 %v3725
      %v4245 = vunpack.c.l.b16 %v3726
      %v4246 = vunpack.c.l.b16 %v3727
      %v4247 = vunpack.c.l.b16 %v3728
      %v4248 = vunpack.c.l.b16 %v3729
      %v4249 = vunpack.c.l.b16 %v3730
      %v4250 = vunpack.c.l.b16 %v3731
      %v4251 = vunpack.c.l.b16 %v3732
      %v4252 = vunpack.c.l.b16 %v3733
      %v4253 = vunpack.c.l.b16 %v3734
      %v4254 = vunpack.c.l.b16 %v3735
      %v4255 = vunpack.c.l.b16 %v3736
      %v4256 = vunpack.c.l.b16 %v3737
      %v4257 = vunpack.c.l.b16 %v3738
      %v4258 = vunpack.c.l.b16 %v3739
      %v4259 = vunpack.c.l.b16 %v3740
      %v4260 = vunpack.c.l.b16 %v3741
      %v4261 = vunpack.c.l.b16 %v3742
      %v4262 = vunpack.c.l.b16 %v3743
      %v4263 = vunpack.c.l.b16 %v3744
      %v4264 = vunpack.c.l.b16 %v3745
      %v4265 = vunpack.c.l.b16 %v3746
      %v4266 = vunpack.c.l.b16 %v3747
      %v4267 = vunpack.c.l.b16 %v3748
      %v4268 = vunpack.c.l.b16 %v3749
      %v4269 = vunpack.c.l.b16 %v3750
      %v4270 = vunpack.c.l.b16 %v3751
      %v4271 = vunpack.c.l.b16 %v3752
      %v4272 = vunpack.c.l.b16 %v3753
      %v4273 = vunpack.c.l.b16 %v3754
      %v4274 = vunpack.c.l.b16 %v3755
      %v4275 = vunpack.c.l.b16 %v3756
      %v4276 = vunpack.c.l.b16 %v3757
      %v4277 = vunpack.c.l.b16 %v3758
      %v4278 = vunpack.c.l.b16 %v3759
      %v4279 = vunpack.c.l.b16 %v3760
      %v4280 = vunpack.c.l.b16 %v3761
      %v4281 = vunpack.c.l.b16 %v3762
      %v4282 = vunpack.c.l.b16 %v3763
      %v4283 = vunpack.c.l.b16 %v3764
      %v4284 = vunpack.c.l.b16 %v3765
      %v4285 = vunpack.c.l.b16 %v3766
      %v4286 = vunpack.c.l.b16 %v3767
      %v4287 = vunpack.c.l.b16 %v3768
      %v4288 = vunpack.c.l.b16 %v3769
      %v4289 = vunpack.c.l.b16 %v3770
      %v4290 = vunpack.c.l.b16 %v3771
      %v4291 = vunpack.c.l.b16 %v3772
      %v4292 = vunpack.c.l.b16 %v3773
      %v4293 = vunpack.c.l.b16 %v3774
      %v4294 = vunpack.c.l.b16 %v3775
      %v4295 = vunpack.c.l.b16 %v3776
      %v4296 = vunpack.c.l.b16 %v3777
      %v4297 = vunpack.c.l.b16 %v3778
      %v4298 = vunpack.c.l.b16 %v3779
      %v4299 = vunpack.c.l.b16 %v3780
      %v4300 = vunpack.c.l.b16 %v3781
      %v4301 = vunpack.c.l.b16 %v3782
      %v4302 = vunpack.c.l.b16 %v3783
      %v4303 = vunpack.c.l.b16 %v3784
      %v4304 = vunpack.c.l.b16 %v3785
      %v4305 = vunpack.c.l.b16 %v3786
      %v4306 = vunpack.c.l.b16 %v3787
      %v4307 = vunpack.c.l.b16 %v3788
      %v4308 = vunpack.c.l.b16 %v3789
      %v4309 = vunpack.c.l.b16 %v3790
      %v4310 = vunpack.c.l.b16 %v3791
      %v4311 = vunpack.c.l.b16 %v3792
      %v4312 = vunpack.c.l.b16 %v3793
      %v4313 = vunpack.c.l.b16 %v3794
      %v4314 = vunpack.c.l.b16 %v3795
      %v4315 = vunpack.c.l.b16 %v3796
      %v4316 = vunpack.c.l.b16 %v3797
      %v4317 = vunpack.c.l.b16 %v3798
      %v4318 = vunpack.c.l.b16 %v3799
      %v4319 = vunpack.c.l.b16 %v3800
      %v4320 = vunpack.c.l.b16 %v3801
      %v4321 = vunpack.c.l.b16 %v3802
      %v4322 = vunpack.c.l.b16 %v3803
      %v4323 = vunpack.c.l.b16 %v3804
      %v4324 = vunpack.c.l.b16 %v3805
      %v4325 = vunpack.c.l.b16 %v3806
      %v4326 = vunpack.c.l.b16 %v3807
      %v4327 = vunpack.c.l.b16 %v3808
      %v4328 = vunpack.c.l.b16 %v3809
      %v4329 = vunpack.c.l.b16 %v3810
      %v4330 = vunpack.c.l.b16 %v3811
      %v4331 = vunpack.c.l.b16 %v3812
      %v4332 = vunpack.c.l.b16 %v3813
      %v4333 = vunpack.c.l.b16 %v3814
      %v4334 = vunpack.c.l.b16 %v3815
      %v4335 = vunpack.c.l.b16 %v3816
      %v4336 = vunpack.c.l.b16 %v3817
      %v4337 = vunpack.c.l.b16 %v3818
      %v4338 = vunpack.c.l.b16 %v3819
      %v4339 = vunpack.c.l.b16 %v3820
      %v4340 = vunpack.c.l.b16 %v3821
      %v4341 = vunpack.c.l.b16 %v3822
      %v4342 = vunpack.c.l.b16 %v3823
      %v4343 = vunpack.c.l.b16 %v3824
      %v4344 = vunpack.c.l.b16 %v3825
      %v4345 = vunpack.c.l.b16 %v3826
      %v4346 = vunpack.c.l.b16 %v3827
      %v4347 = vunpack.c.l.b16 %v3828
      %v4348 = vunpack.c.l.b16 %v3829
      %v4349 = vunpack.c.l.b16 %v3830
      %v4350 = vunpack.c.l.b16 %v3831
      %v4351 = vunpack.c.l.b16 %v3832
      %v4352 = vunpack.c.l.b16 %v3833
      %v4353 = vunpack.c.l.b16 %v3834
      %v4354 = vunpack.c.l.b16 %v3835
      %v4355 = vunpack.c.l.b16 %v3836
      %v4356 = vunpack.c.l.b16 %v3837
      %v4357 = vunpack.c.l.b16 %v3838
      %v4358 = vunpack.c.l.b16 %v3839
      %v4359 = vunpack.c.l.b16 %v3840
      %v4360 = vunpack.c.l.b16 %v3841
      %v4361 = vunpack.c.l.b16 %v3842
      %v4362 = vunpack.c.l.b16 %v3843
      %v4363 = vunpack.c.l.b16 %v3844
      %v4364 = vunpack.c.l.b16 %v3845
      %v4365 = vunpack.c.l.b16 %v3846
      %v4366 = vunpack.c.l.b16 %v3847
      %v4367 = vunpack.c.l.b16 %v3848
      %v4368 = vunpack.c.l.b16 %v3849
      %v4369 = vunpack.c.l.b16 %v3850
      %v4370 = vunpack.c.l.b16 %v3851
      %v4371 = vunpack.c.l.b16 %v3852
      %v4372 = vunpack.c.l.b16 %v3853
      %v4373 = vunpack.c.l.b16 %v3854
      %v4374 = vunpack.c.l.b16 %v3855
      %v4375 = vunpack.c.l.b16 %v3856
      %v4376 = vunpack.c.l.b16 %v3857
      %v4377 = vunpack.c.l.b16 %v3858
      %v4378 = vunpack.c.l.b16 %v3859
      %v4379 = vunpack.c.l.b16 %v3860
      %v4380 = vunpack.c.l.b16 %v3861
      %v4381 = vunpack.c.l.b16 %v3862
      %v4382 = vunpack.c.l.b16 %v3863
      %v4383 = vunpack.c.l.b16 %v3864
      %v4384 = vunpack.c.l.b16 %v3865
      %v4385 = vunpack.c.l.b16 %v3866
      %v4386 = vunpack.c.l.b16 %v3867
      %v4387 = vunpack.c.l.b16 %v3868
      %v4388 = vunpack.c.l.b16 %v3869
      %v4389 = vunpack.c.l.b16 %v3870
      %v4390 = vunpack.c.l.b16 %v3871
      %v4391 = vunpack.c.l.b16 %v3872
      %v4392 = vunpack.c.l.b16 %v3873
      %v4393 = vunpack.c.l.b16 %v3874
      %v4394 = vunpack.c.l.b16 %v3875
      %v4395 = vunpack.c.l.b16 %v3876
      %v4396 = vunpack.c.l.b16 %v3877
      %v4397 = vunpack.c.l.b16 %v3878
      %v4398 = vunpack.c.l.b16 %v3879
      %v4399 = vunpack.c.l.b16 %v3880
      %v4400 = vunpack.c.l.b16 %v3881
      %v4401 = vunpack.c.l.b16 %v3882
      %v4402 = vunpack.c.l.b16 %v3883
      %v4403 = vunpack.c.l.b16 %v3884
      %v4404 = vunpack.c.l.b16 %v3885
      %v4405 = vunpack.c.l.b16 %v3886
      %v4406 = vunpack.c.l.b16 %v3887
      %v4407 = vunpack.c.l.b16 %v3888
      %v4408 = vunpack.c.l.b16 %v3889
      %v4409 = vunpack.c.l.b16 %v3890
      %v4410 = vunpack.c.l.b16 %v3891
      %v4411 = vunpack.c.l.b16 %v3892
      %v4412 = vunpack.c.l.b16 %v3893
      %v4413 = vunpack.c.l.b16 %v3894
      %v4414 = vunpack.c.l.b16 %v3895
      %v4415 = vunpack.c.l.b16 %v3896
      %v4416 = vunpack.c.l.b16 %v3897
      %v4417 = vunpack.c.l.b16 %v3898
      %v4418 = vunpack.c.l.b16 %v3899
      %v4419 = vunpack.c.l.b16 %v3900
      %v4420 = vunpack.c.l.b16 %v3901
      %v4421 = vunpack.c.l.b16 %v3902
      %v4422 = vunpack.c.l.b16 %v3903
      %v4423 = vunpack.c.l.b16 %v3904
      %v4424 = vunpack.c.l.b16 %v3905
      %v4425 = vunpack.c.l.b16 %v3906
      %v4426 = vunpack.c.l.b16 %v3907
      %v4427 = vunpack.c.l.b16 %v3908
      %v4428 = vunpack.c.l.b16 %v3909
      %v4429 = vunpack.c.l.b16 %v3910
      %v4430 = vunpack.c.l.b16 %v3911
      %v4431 = vunpack.c.l.b16 %v3912
      %v4432 = vunpack.c.l.b16 %v3913
      %v4433 = vunpack.c.l.b16 %v3914
      %v4434 = vunpack.c.l.b16 %v3915
      %v4435 = vunpack.c.l.b16 %v3916
      %v4436 = vunpack.c.l.b16 %v3917
      %v4437 = vunpack.c.l.b16 %v3918
      %v4438 = vunpack.c.l.b16 %v3919
      %v4439 = vunpack.c.l.b16 %v3920
      %v4440 = vunpack.c.l.b16 %v3921
      %v4441 = vunpack.c.l.b16 %v3922
      %v4442 = vunpack.c.l.b16 %v3923
      %v4443 = vunpack.c.l.b16 %v3924
      %v4444 = vunpack.c.l.b16 %v3925
      %v4445 = vunpack.c.l.b16 %v3926
      %v4446 = vunpack.c.l.b16 %v3927
      %v4447 = vunpack.c.l.b16 %v3928
      %v4448 = vunpack.c.l.b16 %v3929
      %v4449 = vunpack.c.l.b16 %v3930
      %v4450 = vpack.c.b16 %v4195, %v4194
      %v4451 = vpack.c.b16 %v4197, %v4196
      %v4452 = vpack.c.b16 %v4199, %v4198
      %v4453 = vpack.c.b16 %v4201, %v4200
      %v4454 = vpack.c.b16 %v4203, %v4202
      %v4455 = vpack.c.b16 %v4205, %v4204
      %v4456 = vpack.c.b16 %v4207, %v4206
      %v4457 = vpack.c.b16 %v4209, %v4208
      %v4458 = vpack.c.b16 %v4211, %v4210
      %v4459 = vpack.c.b16 %v4213, %v4212
      %v4460 = vpack.c.b16 %v4215, %v4214
      %v4461 = vpack.c.b16 %v4217, %v4216
      %v4462 = vpack.c.b16 %v4219, %v4218
      %v4463 = vpack.c.b16 %v4221, %v4220
      %v4464 = vpack.c.b16 %v4223, %v4222
      %v4465 = vpack.c.b16 %v4225, %v4224
      %v4466 = vpack.c.b16 %v4227, %v4226
      %v4467 = vpack.c.b16 %v4229, %v4228
      %v4468 = vpack.c.b16 %v4231, %v4230
      %v4469 = vpack.c.b16 %v4233, %v4232
      %v4470 = vpack.c.b16 %v4235, %v4234
      %v4471 = vpack.c.b16 %v4237, %v4236
      %v4472 = vpack.c.b16 %v4239, %v4238
      %v4473 = vpack.c.b16 %v4241, %v4240
      %v4474 = vpack.c.b16 %v4243, %v4242
      %v4475 = vpack.c.b16 %v4245, %v4244
      %v4476 = vpack.c.b16 %v4247, %v4246
      %v4477 = vpack.c.b16 %v4249, %v4248
      %v4478 = vpack.c.b16 %v4251, %v4250
      %v4479 = vpack.c.b16 %v4253, %v4252
      %v4480 = vpack.c.b16 %v4255, %v4254
      %v4481 = vpack.c.b16 %v4257, %v4256
      %v4482 = vpack.c.b16 %v4259, %v4258
      %v4483 = vpack.c.b16 %v4261, %v4260
      %v4484 = vpack.c.b16 %v4263, %v4262
      %v4485 = vpack.c.b16 %v4265, %v4264
      %v4486 = vpack.c.b16 %v4267, %v4266
      %v4487 = vpack.c.b16 %v4269, %v4268
      %v4488 = vpack.c.b16 %v4271, %v4270
      %v4489 = vpack.c.b16 %v4273, %v4272
      %v4490 = vpack.c.b16 %v4275, %v4274
      %v4491 = vpack.c.b16 %v4277, %v4276
      %v4492 = vpack.c.b16 %v4279, %v4278
      %v4493 = vpack.c.b16 %v4281, %v4280
      %v4494 = vpack.c.b16 %v4283, %v4282
      %v4495 = vpack.c.b16 %v4285, %v4284
      %v4496 = vpack.c.b16 %v4287, %v4286
      %v4497 = vpack.c.b16 %v4289, %v4288
      %v4498 = vpack.c.b16 %v4291, %v4290
      %v4499 = vpack.c.b16 %v4293, %v4292
      %v4500 = vpack.c.b16 %v4295, %v4294
      %v4501 = vpack.c.b16 %v4297, %v4296
      %v4502 = vpack.c.b16 %v4299, %v4298
      %v4503 = vpack.c.b16 %v4301, %v4300
      %v4504 = vpack.c.b16 %v4303, %v4302
      %v4505 = vpack.c.b16 %v4305, %v4304
      %v4506 = vpack.c.b16 %v4307, %v4306
      %v4507 = vpack.c.b16 %v4309, %v4308
      %v4508 = vpack.c.b16 %v4311, %v4310
      %v4509 = vpack.c.b16 %v4313, %v4312
      %v4510 = vpack.c.b16 %v4315, %v4314
      %v4511 = vpack.c.b16 %v4317, %v4316
      %v4512 = vpack.c.b16 %v4319, %v4318
      %v4513 = vpack.c.b16 %v4321, %v4320
      %v4514 = vpack.c.b16 %v4323, %v4322
      %v4515 = vpack.c.b16 %v4325, %v4324
      %v4516 = vpack.c.b16 %v4327, %v4326
      %v4517 = vpack.c.b16 %v4329, %v4328
      %v4518 = vpack.c.b16 %v4331, %v4330
      %v4519 = vpack.c.b16 %v4333, %v4332
      %v4520 = vpack.c.b16 %v4335, %v4334
      %v4521 = vpack.c.b16 %v4337, %v4336
      %v4522 = vpack.c.b16 %v4339, %v4338
      %v4523 = vpack.c.b16 %v4341, %v4340
      %v4524 = vpack.c.b16 %v4343, %v4342
      %v4525 = vpack.c.b16 %v4345, %v4344
      %v4526 = vpack.c.b16 %v4347, %v4346
      %v4527 = vpack.c.b16 %v4349, %v4348
      %v4528 = vpack.c.b16 %v4351, %v4350
      %v4529 = vpack.c.b16 %v4353, %v4352
      %v4530 = vpack.c.b16 %v4355, %v4354
      %v4531 = vpack.c.b16 %v4357, %v4356
      %v4532 = vpack.c.b16 %v4359, %v4358
      %v4533 = vpack.c.b16 %v4361, %v4360
      %v4534 = vpack.c.b16 %v4363, %v4362
      %v4535 = vpack.c.b16 %v4365, %v4364
      %v4536 = vpack.c.b16 %v4367, %v4366
      %v4537 = vpack.c.b16 %v4369, %v4368
      %v4538 = vpack.c.b16 %v4371, %v4370
      %v4539 = vpack.c.b16 %v4373, %v4372
      %v4540 = vpack.c.b16 %v4375, %v4374
      %v4541 = vpack.c.b16 %v4377, %v4376
      %v4542 = vpack.c.b16 %v4379, %v4378
      %v4543 = vpack.c.b16 %v4381, %v4380
      %v4544 = vpack.c.b16 %v4383, %v4382
      %v4545 = vpack.c.b16 %v4385, %v4384
      %v4546 = vpack.c.b16 %v4387, %v4386
      %v4547 = vpack.c.b16 %v4389, %v4388
      %v4548 = vpack.c.b16 %v4391, %v4390
      %v4549 = vpack.c.b16 %v4393, %v4392
      %v4550 = vpack.c.b16 %v4395, %v4394
      %v4551 = vpack.c.b16 %v4397, %v4396
      %v4552 = vpack.c.b16 %v4399, %v4398
      %v4553 = vpack.c.b16 %v4401, %v4400
      %v4554 = vpack.c.b16 %v4403, %v4402
      %v4555 = vpack.c.b16 %v4405, %v4404
      %v4556 = vpack.c.b16 %v4407, %v4406
      %v4557 = vpack.c.b16 %v4409, %v4408
      %v4558 = vpack.c.b16 %v4411, %v4410
      %v4559 = vpack.c.b16 %v4413, %v4412
      %v4560 = vpack.c.b16 %v4415, %v4414
      %v4561 = vpack.c.b16 %v4417, %v4416
      %v4562 = vpack.c.b16 %v4419, %v4418
      %v4563 = vpack.c.b16 %v4421, %v4420
      %v4564 = vpack.c.b16 %v4423, %v4422
      %v4565 = vpack.c.b16 %v4425, %v4424
      %v4566 = vpack.c.b16 %v4427, %v4426
      %v4567 = vpack.c.b16 %v4429, %v4428
      %v4568 = vpack.c.b16 %v4431, %v4430
      %v4569 = vpack.c.b16 %v4433, %v4432
      %v4570 = vpack.c.b16 %v4435, %v4434
      %v4571 = vpack.c.b16 %v4437, %v4436
      %v4572 = vpack.c.b16 %v4439, %v4438
      %v4573 = vpack.c.b16 %v4441, %v4440
      %v4574 = vpack.c.b16 %v4443, %v4442
      %v4575 = vpack.c.b16 %v4445, %v4444
      %v4576 = vpack.c.b16 %v4447, %v4446
      %v4577 = vpack.c.b16 %v4449, %v4448
      %4706 = vmatprep.subr.bf16.mxu0 0
      %4707 = vmatpush1.bf16.msra.mxu0 %v4450
      %4708 = vmatprep.subr.bf16.mxu0 0
      %4709 = vmatpush1.bf16.msra.mxu0 %v4451
      %4710 = vmatprep.subr.bf16.mxu0 0
      %4711 = vmatpush1.bf16.msra.mxu0 %v4452
      %4712 = vmatprep.subr.bf16.mxu0 0
      %4713 = vmatpush1.bf16.msra.mxu0 %v4453
      %4714 = vmatprep.subr.bf16.mxu0 0
      %4715 = vmatpush1.bf16.msra.mxu0 %v4454
      %4716 = vmatprep.subr.bf16.mxu0 0
      %4717 = vmatpush1.bf16.msra.mxu0 %v4455
      %4718 = vmatprep.subr.bf16.mxu0 0
      %4719 = vmatpush1.bf16.msra.mxu0 %v4456
      %4720 = vmatprep.subr.bf16.mxu0 0
      %4721 = vmatpush1.bf16.msra.mxu0 %v4457
      %4722 = vmatprep.subr.bf16.mxu0 0
      %4723 = vmatpush1.bf16.msra.mxu0 %v4458
      %4724 = vmatprep.subr.bf16.mxu0 0
      %4725 = vmatpush1.bf16.msra.mxu0 %v4459
      %4726 = vmatprep.subr.bf16.mxu0 0
      %4727 = vmatpush1.bf16.msra.mxu0 %v4460
      %4728 = vmatprep.subr.bf16.mxu0 0
      %4729 = vmatpush1.bf16.msra.mxu0 %v4461
      %4730 = vmatprep.subr.bf16.mxu0 0
      %4731 = vmatpush1.bf16.msra.mxu0 %v4462
      %4732 = vmatprep.subr.bf16.mxu0 0
      %4733 = vmatpush1.bf16.msra.mxu0 %v4463
      %4734 = vmatprep.subr.bf16.mxu0 0
      %4735 = vmatpush1.bf16.msra.mxu0 %v4464
      %4736 = vmatprep.subr.bf16.mxu0 0
      %4737 = vmatpush1.bf16.msra.mxu0 %v4465
      %4738 = vmatprep.mubr.bf16.mxu0 %v3660
      %4739 = vmatmul.mubr.bf16.gmra.mrb[0].mxu0 %v3659
      %v4740 = vpop.f32.mrb[0].mxu0
      %v4741 = vadd.f32 %v3936, %v4740
      %v4742 = vpop.f32.mrb[0].mxu0
      %v4743 = vpop.f32.mrb[0].mxu0
      %v4744 = vpop.f32.mrb[0].mxu0
      %4745 = vdwg.mxu0
      %4746 = vmatprep.subr.bf16.mxu0 0
      %4747 = vmatpush1.bf16.msra.mxu0 %v4466
      %4748 = vmatprep.subr.bf16.mxu0 0
      %4749 = vmatpush1.bf16.msra.mxu0 %v4467
      %4750 = vmatprep.subr.bf16.mxu0 0
      %4751 = vmatpush1.bf16.msra.mxu0 %v4468
      %4752 = vmatprep.subr.bf16.mxu0 0
      %4753 = vmatpush1.bf16.msra.mxu0 %v4469
      %4754 = vmatprep.subr.bf16.mxu0 0
      %4755 = vmatpush1.bf16.msra.mxu0 %v4470
      %4756 = vmatprep.subr.bf16.mxu0 0
      %4757 = vmatpush1.bf16.msra.mxu0 %v4471
      %4758 = vmatprep.subr.bf16.mxu0 0
      %4759 = vmatpush1.bf16.msra.mxu0 %v4472
      %4760 = vmatprep.subr.bf16.mxu0 0
      %4761 = vmatpush1.bf16.msra.mxu0 %v4473
      %4762 = vmatprep.subr.bf16.mxu0 0
      %4763 = vmatpush1.bf16.msra.mxu0 %v4474
      %4764 = vmatprep.subr.bf16.mxu0 0
      %4765 = vmatpush1.bf16.msra.mxu0 %v4475
      %4766 = vmatprep.subr.bf16.mxu0 0
      %4767 = vmatpush1.bf16.msra.mxu0 %v4476
      %4768 = vmatprep.subr.bf16.mxu0 0
      %4769 = vmatpush1.bf16.msra.mxu0 %v4477
      %4770 = vmatprep.subr.bf16.mxu0 0
      %4771 = vmatpush1.bf16.msra.mxu0 %v4478
      %4772 = vmatprep.subr.bf16.mxu0 0
      %4773 = vmatpush1.bf16.msra.mxu0 %v4479
      %4774 = vmatprep.subr.bf16.mxu0 0
      %4775 = vmatpush1.bf16.msra.mxu0 %v4480
      %4776 = vmatprep.subr.bf16.mxu0 0
      %4777 = vmatpush1.bf16.msra.mxu0 %v4481
      %4778 = vmatprep.mubr.bf16.mxu0 %v3662
      %4779 = vmatmul.mubr.bf16.gmra.mrb[0].mxu0 %v3661
      %v4780 = vpop.f32.mrb[0].mxu0
      %v4781 = vadd.f32 %v4741, %v4780
      %v4782 = vpop.f32.mrb[0].mxu0
      %v4783 = vpop.f32.mrb[0].mxu0
      %v4784 = vpop.f32.mrb[0].mxu0
      %4785 = vdwg.mxu0
      %4786 = vmatprep.subr.bf16.mxu0 0
      %4787 = vmatpush1.bf16.msra.mxu0 %v4482
      %4788 = vmatprep.subr.bf16.mxu0 0
      %4789 = vmatpush1.bf16.msra.mxu0 %v4483
      %4790 = vmatprep.subr.bf16.mxu0 0
      %4791 = vmatpush1.bf16.msra.mxu0 %v4484
      %4792 = vmatprep.subr.bf16.mxu0 0
      %4793 = vmatpush1.bf16.msra.mxu0 %v4485
      %4794 = vmatprep.subr.bf16.mxu0 0
      %4795 = vmatpush1.bf16.msra.mxu0 %v4486
      %4796 = vmatprep.subr.bf16.mxu0 0
      %4797 = vmatpush1.bf16.msra.mxu0 %v4487
      %4798 = vmatprep.subr.bf16.mxu0 0
      %4799 = vmatpush1.bf16.msra.mxu0 %v4488
      %4800 = vmatprep.subr.bf16.mxu0 0
      %4801 = vmatpush1.bf16.msra.mxu0 %v4489
      %4802 = vmatprep.subr.bf16.mxu0 0
      %4803 = vmatpush1.bf16.msra.mxu0 %v4490
      %4804 = vmatprep.subr.bf16.mxu0 0
      %4805 = vmatpush1.bf16.msra.mxu0 %v4491
      %4806 = vmatprep.subr.bf16.mxu0 0
      %4807 = vmatpush1.bf16.msra.mxu0 %v4492
      %4808 = vmatprep.subr.bf16.mxu0 0
      %4809 = vmatpush1.bf16.msra.mxu0 %v4493
      %4810 = vmatprep.subr.bf16.mxu0 0
      %4811 = vmatpush1.bf16.msra.mxu0 %v4494
      %4812 = vmatprep.subr.bf16.mxu0 0
      %4813 = vmatpush1.bf16.msra.mxu0 %v4495
      %4814 = vmatprep.subr.bf16.mxu0 0
      %4815 = vmatpush1.bf16.msra.mxu0 %v4496
      %4816 = vmatprep.subr.bf16.mxu0 0
      %4817 = vmatpush1.bf16.msra.mxu0 %v4497
      %4818 = vmatprep.mubr.bf16.mxu0 %v3664
      %4819 = vmatmul.mubr.bf16.gmra.mrb[0].mxu0 %v3663
      %v4820 = vpop.f32.mrb[0].mxu0
      %v4821 = vadd.f32 %v4781, %v4820
      %v4822 = vpop.f32.mrb[0].mxu0
      %v4823 = vpop.f32.mrb[0].mxu0
      %v4824 = vpop.f32.mrb[0].mxu0
      %4825 = vdwg.mxu0
      %4826 = vmatprep.subr.bf16.mxu0 0
      %4827 = vmatpush1.bf16.msra.mxu0 %v4498
      %4828 = vmatprep.subr.bf16.mxu0 0
      %4829 = vmatpush1.bf16.msra.mxu0 %v4499
      %4830 = vmatprep.subr.bf16.mxu0 0
      %4831 = vmatpush1.bf16.msra.mxu0 %v4500
      %4832 = vmatprep.subr.bf16.mxu0 0
      %4833 = vmatpush1.bf16.msra.mxu0 %v4501
      %4834 = vmatprep.subr.bf16.mxu0 0
      %4835 = vmatpush1.bf16.msra.mxu0 %v4502
      %4836 = vmatprep.subr.bf16.mxu0 0
      %4837 = vmatpush1.bf16.msra.mxu0 %v4503
      %4838 = vmatprep.subr.bf16.mxu0 0
      %4839 = vmatpush1.bf16.msra.mxu0 %v4504
      %4840 = vmatprep.subr.bf16.mxu0 0
      %4841 = vmatpush1.bf16.msra.mxu0 %v4505
      %4842 = vmatprep.subr.bf16.mxu0 0
      %4843 = vmatpush1.bf16.msra.mxu0 %v4506
      %4844 = vmatprep.subr.bf16.mxu0 0
      %4845 = vmatpush1.bf16.msra.mxu0 %v4507
      %4846 = vmatprep.subr.bf16.mxu0 0
      %4847 = vmatpush1.bf16.msra.mxu0 %v4508
      %4848 = vmatprep.subr.bf16.mxu0 0
      %4849 = vmatpush1.bf16.msra.mxu0 %v4509
      %4850 = vmatprep.subr.bf16.mxu0 0
      %4851 = vmatpush1.bf16.msra.mxu0 %v4510
      %4852 = vmatprep.subr.bf16.mxu0 0
      %4853 = vmatpush1.bf16.msra.mxu0 %v4511
      %4854 = vmatprep.subr.bf16.mxu0 0
      %4855 = vmatpush1.bf16.msra.mxu0 %v4512
      %4856 = vmatprep.subr.bf16.mxu0 0
      %4857 = vmatpush1.bf16.msra.mxu0 %v4513
      %4858 = vmatprep.mubr.bf16.mxu0 %v3666
      %4859 = vmatmul.mubr.bf16.gmra.mrb[0].mxu0 %v3665
      %v4860 = vpop.f32.mrb[0].mxu0
      %v4861 = vadd.f32 %v4821, %v4860
      %v4862 = vpop.f32.mrb[0].mxu0
      %v4863 = vpop.f32.mrb[0].mxu0
      %v4864 = vpop.f32.mrb[0].mxu0
      %4865 = vdwg.mxu0
      %4866 = vmatprep.subr.bf16.mxu0 0
      %4867 = vmatpush1.bf16.msra.mxu0 %v4514
      %4868 = vmatprep.subr.bf16.mxu0 0
      %4869 = vmatpush1.bf16.msra.mxu0 %v4515
      %4870 = vmatprep.subr.bf16.mxu0 0
      %4871 = vmatpush1.bf16.msra.mxu0 %v4516
      %4872 = vmatprep.subr.bf16.mxu0 0
      %4873 = vmatpush1.bf16.msra.mxu0 %v4517
      %4874 = vmatprep.subr.bf16.mxu0 0
      %4875 = vmatpush1.bf16.msra.mxu0 %v4518
      %4876 = vmatprep.subr.bf16.mxu0 0
      %4877 = vmatpush1.bf16.msra.mxu0 %v4519
      %4878 = vmatprep.subr.bf16.mxu0 0
      %4879 = vmatpush1.bf16.msra.mxu0 %v4520
      %4880 = vmatprep.subr.bf16.mxu0 0
      %4881 = vmatpush1.bf16.msra.mxu0 %v4521
      %4882 = vmatprep.subr.bf16.mxu0 0
      %4883 = vmatpush1.bf16.msra.mxu0 %v4522
      %4884 = vmatprep.subr.bf16.mxu0 0
      %4885 = vmatpush1.bf16.msra.mxu0 %v4523
      %4886 = vmatprep.subr.bf16.mxu0 0
      %4887 = vmatpush1.bf16.msra.mxu0 %v4524
      %4888 = vmatprep.subr.bf16.mxu0 0
      %4889 = vmatpush1.bf16.msra.mxu0 %v4525
      %4890 = vmatprep.subr.bf16.mxu0 0
      %4891 = vmatpush1.bf16.msra.mxu0 %v4526
      %4892 = vmatprep.subr.bf16.mxu0 0
      %4893 = vmatpush1.bf16.msra.mxu0 %v4527
      %4894 = vmatprep.subr.bf16.mxu0 0
      %4895 = vmatpush1.bf16.msra.mxu0 %v4528
      %4896 = vmatprep.subr.bf16.mxu0 0
      %4897 = vmatpush1.bf16.msra.mxu0 %v4529
      %4898 = vmatprep.mubr.bf16.mxu0 %v3668
      %4899 = vmatmul.mubr.bf16.gmra.mrb[0].mxu0 %v3667
      %v4900 = vpop.f32.mrb[0].mxu0
      %v4901 = vadd.f32 %v4861, %v4900
      %v4902 = vpop.f32.mrb[0].mxu0
      %v4903 = vpop.f32.mrb[0].mxu0
      %v4904 = vpop.f32.mrb[0].mxu0
      %4905 = vdwg.mxu0
      %4906 = vmatprep.subr.bf16.mxu0 0
      %4907 = vmatpush1.bf16.msra.mxu0 %v4530
      %4908 = vmatprep.subr.bf16.mxu0 0
      %4909 = vmatpush1.bf16.msra.mxu0 %v4531
      %4910 = vmatprep.subr.bf16.mxu0 0
      %4911 = vmatpush1.bf16.msra.mxu0 %v4532
      %4912 = vmatprep.subr.bf16.mxu0 0
      %4913 = vmatpush1.bf16.msra.mxu0 %v4533
      %4914 = vmatprep.subr.bf16.mxu0 0
      %4915 = vmatpush1.bf16.msra.mxu0 %v4534
      %4916 = vmatprep.subr.bf16.mxu0 0
      %4917 = vmatpush1.bf16.msra.mxu0 %v4535
      %4918 = vmatprep.subr.bf16.mxu0 0
      %4919 = vmatpush1.bf16.msra.mxu0 %v4536
      %4920 = vmatprep.subr.bf16.mxu0 0
      %4921 = vmatpush1.bf16.msra.mxu0 %v4537
      %4922 = vmatprep.subr.bf16.mxu0 0
      %4923 = vmatpush1.bf16.msra.mxu0 %v4538
      %4924 = vmatprep.subr.bf16.mxu0 0
      %4925 = vmatpush1.bf16.msra.mxu0 %v4539
      %4926 = vmatprep.subr.bf16.mxu0 0
      %4927 = vmatpush1.bf16.msra.mxu0 %v4540
      %4928 = vmatprep.subr.bf16.mxu0 0
      %4929 = vmatpush1.bf16.msra.mxu0 %v4541
      %4930 = vmatprep.subr.bf16.mxu0 0
      %4931 = vmatpush1.bf16.msra.mxu0 %v4542
      %4932 = vmatprep.subr.bf16.mxu0 0
      %4933 = vmatpush1.bf16.msra.mxu0 %v4543
      %4934 = vmatprep.subr.bf16.mxu0 0
      %4935 = vmatpush1.bf16.msra.mxu0 %v4544
      %4936 = vmatprep.subr.bf16.mxu0 0
      %4937 = vmatpush1.bf16.msra.mxu0 %v4545
      %4938 = vmatprep.mubr.bf16.mxu0 %v3670
      %4939 = vmatmul.mubr.bf16.gmra.mrb[0].mxu0 %v3669
      %v4940 = vpop.f32.mrb[0].mxu0
      %v4941 = vadd.f32 %v4901, %v4940
      %v4942 = vpop.f32.mrb[0].mxu0
      %v4943 = vpop.f32.mrb[0].mxu0
      %v4944 = vpop.f32.mrb[0].mxu0
      %4945 = vdwg.mxu0
      %4946 = vmatprep.subr.bf16.mxu0 0
      %4947 = vmatpush1.bf16.msra.mxu0 %v4546
      %4948 = vmatprep.subr.bf16.mxu0 0
      %4949 = vmatpush1.bf16.msra.mxu0 %v4547
      %4950 = vmatprep.subr.bf16.mxu0 0
      %4951 = vmatpush1.bf16.msra.mxu0 %v4548
      %4952 = vmatprep.subr.bf16.mxu0 0
      %4953 = vmatpush1.bf16.msra.mxu0 %v4549
      %4954 = vmatprep.subr.bf16.mxu0 0
      %4955 = vmatpush1.bf16.msra.mxu0 %v4550
      %4956 = vmatprep.subr.bf16.mxu0 0
      %4957 = vmatpush1.bf16.msra.mxu0 %v4551
      %4958 = vmatprep.subr.bf16.mxu0 0
      %4959 = vmatpush1.bf16.msra.mxu0 %v4552
      %4960 = vmatprep.subr.bf16.mxu0 0
      %4961 = vmatpush1.bf16.msra.mxu0 %v4553
      %4962 = vmatprep.subr.bf16.mxu0 0
      %4963 = vmatpush1.bf16.msra.mxu0 %v4554
      %4964 = vmatprep.subr.bf16.mxu0 0
      %4965 = vmatpush1.bf16.msra.mxu0 %v4555
      %4966 = vmatprep.subr.bf16.mxu0 0
      %4967 = vmatpush1.bf16.msra.mxu0 %v4556
      %4968 = vmatprep.subr.bf16.mxu0 0
      %4969 = vmatpush1.bf16.msra.mxu0 %v4557
      %4970 = vmatprep.subr.bf16.mxu0 0
      %4971 = vmatpush1.bf16.msra.mxu0 %v4558
      %4972 = vmatprep.subr.bf16.mxu0 0
      %4973 = vmatpush1.bf16.msra.mxu0 %v4559
      %4974 = vmatprep.subr.bf16.mxu0 0
      %4975 = vmatpush1.bf16.msra.mxu0 %v4560
      %4976 = vmatprep.subr.bf16.mxu0 0
      %4977 = vmatpush1.bf16.msra.mxu0 %v4561
      %4978 = vmatprep.mubr.bf16.mxu0 %v3672
      %4979 = vmatmul.mubr.bf16.gmra.mrb[0].mxu0 %v3671
      %v4980 = vpop.f32.mrb[0].mxu0
      %v4981 = vadd.f32 %v4941, %v4980
      %v4982 = vpop.f32.mrb[0].mxu0
      %v4983 = vpop.f32.mrb[0].mxu0
      %v4984 = vpop.f32.mrb[0].mxu0
      %4985 = vdwg.mxu0
      %4986 = vmatprep.subr.bf16.mxu0 0
      %4987 = vmatpush1.bf16.msra.mxu0 %v4562
      %4988 = vmatprep.subr.bf16.mxu0 0
      %4989 = vmatpush1.bf16.msra.mxu0 %v4563
      %4990 = vmatprep.subr.bf16.mxu0 0
      %4991 = vmatpush1.bf16.msra.mxu0 %v4564
      %4992 = vmatprep.subr.bf16.mxu0 0
      %4993 = vmatpush1.bf16.msra.mxu0 %v4565
      %4994 = vmatprep.subr.bf16.mxu0 0
      %4995 = vmatpush1.bf16.msra.mxu0 %v4566
      %4996 = vmatprep.subr.bf16.mxu0 0
      %4997 = vmatpush1.bf16.msra.mxu0 %v4567
      %4998 = vmatprep.subr.bf16.mxu0 0
      %4999 = vmatpush1.bf16.msra.mxu0 %v4568
      %5000 = vmatprep.subr.bf16.mxu0 0
      %5001 = vmatpush1.bf16.msra.mxu0 %v4569
      %5002 = vmatprep.subr.bf16.mxu0 0
      %5003 = vmatpush1.bf16.msra.mxu0 %v4570
      %5004 = vmatprep.subr.bf16.mxu0 0
      %5005 = vmatpush1.bf16.msra.mxu0 %v4571
      %5006 = vmatprep.subr.bf16.mxu0 0
      %5007 = vmatpush1.bf16.msra.mxu0 %v4572
      %5008 = vmatprep.subr.bf16.mxu0 0
      %5009 = vmatpush1.bf16.msra.mxu0 %v4573
      %5010 = vmatprep.subr.bf16.mxu0 0
      %5011 = vmatpush1.bf16.msra.mxu0 %v4574
      %5012 = vmatprep.subr.bf16.mxu0 0
      %5013 = vmatpush1.bf16.msra.mxu0 %v4575
      %5014 = vmatprep.subr.bf16.mxu0 0
      %5015 = vmatpush1.bf16.msra.mxu0 %v4576
      %5016 = vmatprep.subr.bf16.mxu0 0
      %5017 = vmatpush1.bf16.msra.mxu0 %v4577
      %5018 = vmatprep.mubr.bf16.mxu0 %v3674
      %5019 = vmatmul.mubr.bf16.gmra.mrb[0].mxu0 %v3673
      %v5020 = vpop.f32.mrb[0].mxu0
      %v5021 = vadd.f32 %v4981, %v5020
      %v5022 = vpop.f32.mrb[0].mxu0
      %v5023 = vpop.f32.mrb[0].mxu0
      %v5024 = vpop.f32.mrb[0].mxu0
      %5025 = vdwg.mxu0
      %v5026 = vadd.f32 %v2842, %v5021
      %v5027 = vld [vmem:[%s890] sm:$0x1]
      %v5028 = vld [vmem:[%s893] sm:$0x1]
      %v5029 = vsel %vm1075, %v5026, 0.0
      %5030 = vadd.xlane.f32.xlu0 %v5029
      %v5031 = vpop.xlane.xlu0 %5030
      %v5032 = vmul.f32 %v5031, %v2818
      %v5033 = vsub.f32 %v5026, %v5032
      %v5034 = vmul.f32 %v5033, %v5033
      %v5035 = vsel %vm1075, %v5034, 0.0
      %5036 = vadd.xlane.f32.xlu0 %v5035
      %v5037 = vpop.xlane.xlu0 %5036
      %v5038 = vmul.f32 %v5037, %v2818
      %v5039 = vadd.f32 %v5038, 1e-05
      %v5040 = vrsqrt.pop %v5039
      %v5041 = vmul.f32 %v5033, %v5040
      %v5043 = vlaneseq
      %v5044 = vshrl.u32 %v5043, 7
      %v5045 = vsub.s32 0, %v5044
      %v5046 = vrot.slane %v5027, %v5045
      %v5048 = vmul.f32 %v5041, %v5046
      %v5050 = vlaneseq
      %v5051 = vshrl.u32 %v5050, 7
      %v5052 = vsub.s32 0, %v5051
      %v5053 = vrot.slane %v5028, %v5052
      %v5055 = vadd.f32 %v5048, %v5053
      %5056 = vst.msk [vmem:[#allocation2] sm:$0xff] %vm1075, %v5055
      %p5057 = scmp.eq.s32.totalorder %s32, 1
      // Predicated region
      $region109: #{tpu_custom_call.1} parent=103 // pred_check
        %p5058 = pneg %p5057
      $region110: #{tpu_custom_call.1} parent=103 // pred_check_branch
        %5060 = sbr.rel (%p5058) target = $region112
      $region111: #{tpu_custom_call.1} parent=103 // pred_region
        %v5061 = vld [vmem:[%s3] sm:$0xff]
        %v5062 = vld [vmem:[%s3 + $0x8] sm:$0xff]
        %v5063 = vld [vmem:[%s3 + $0x10] sm:$0xff]
        %v5064 = vld [vmem:[%s3 + $0x18] sm:$0xff]
        %v5065 = vld [vmem:[%s3 + $0x20] sm:$0xff]
        %v5066 = vld [vmem:[%s3 + $0x28] sm:$0xff]
        %v5067 = vld [vmem:[%s3 + $0x30] sm:$0xff]
        %v5068 = vld [vmem:[%s3 + $0x38] sm:$0xff]
        %v5069 = vld [vmem:[%s4] sm:$0x1]
        %v5071 = vlaneseq
        %v5072 = vshrl.u32 %v5071, 7
        %v5073 = vsub.s32 0, %v5072
        %v5074 = vrot.slane %v5069, %v5073
        %v5077 = vsel %vm1075, %v5055, 0
        %5079 = vmatprep.subr.mxu0 0.0
        %5080 = vmatpush1.msra.mxu0 %v5061
        %5081 = vmatprep.subr.mxu0 0.0
        %5082 = vmatpush1.msra.mxu0 %v5062
        %5083 = vmatprep.subr.mxu0 0.0
        %5084 = vmatpush1.msra.mxu0 %v5063
        %5085 = vmatprep.subr.mxu0 0.0
        %5086 = vmatpush1.msra.mxu0 %v5064
        %5087 = vmatprep.subr.mxu0 0.0
        %5088 = vmatpush1.msra.mxu0 %v5065
        %5089 = vmatprep.subr.mxu0 0.0
        %5090 = vmatpush1.msra.mxu0 %v5066
        %5091 = vmatprep.subr.mxu0 0.0
        %5092 = vmatpush1.msra.mxu0 %v5067
        %5093 = vmatprep.subr.mxu0 0.0
        %5094 = vmatpush1.msra.mxu0 %v5068
        %5095 = vmatprep.subr.mxu0 0.0
        %5096 = vmatpush1.msra.mxu0 0.0
        %5097 = vmatprep.subr.mxu0 0.0
        %5098 = vmatpush1.msra.mxu0 0.0
        %5099 = vmatprep.subr.mxu0 0.0
        %5100 = vmatpush1.msra.mxu0 0.0
        %5101 = vmatprep.subr.mxu0 0.0
        %5102 = vmatpush1.msra.mxu0 0.0
        %5103 = vmatprep.subr.mxu0 0.0
        %5104 = vmatpush1.msra.mxu0 0.0
        %5105 = vmatprep.subr.mxu0 0.0
        %5106 = vmatpush1.msra.mxu0 0.0
        %5107 = vmatprep.subr.mxu0 0.0
        %5108 = vmatpush1.msra.mxu0 0.0
        %5109 = vmatprep.subr.mxu0 0.0
        %5110 = vmatpush1.msra.mxu0 0.0
        %5111 = vmatprep.subr.mxu0 0.0
        %5112 = vmatpush1.msra.mxu0 0.0
        %5113 = vmatprep.subr.mxu0 0.0
        %5114 = vmatpush1.msra.mxu0 0.0
        %5115 = vmatprep.subr.mxu0 0.0
        %5116 = vmatpush1.msra.mxu0 0.0
        %5117 = vmatprep.subr.mxu0 0.0
        %5118 = vmatpush1.msra.mxu0 0.0
        %5119 = vmatprep.subr.mxu0 0.0
        %5120 = vmatpush1.msra.mxu0 0.0
        %5121 = vmatprep.subr.mxu0 0.0
        %5122 = vmatpush1.msra.mxu0 0.0
        %5123 = vmatprep.subr.mxu0 0.0
        %5124 = vmatpush1.msra.mxu0 0.0
        %5125 = vmatprep.subr.mxu0 0.0
        %5126 = vmatpush1.msra.mxu0 0.0
        %5127 = vmatprep.subr.mxu0 0.0
        %5128 = vmatpush1.msra.mxu0 0.0
        %5129 = vmatprep.subr.mxu0 0.0
        %5130 = vmatpush1.msra.mxu0 0.0
        %5131 = vmatprep.subr.mxu0 0.0
        %5132 = vmatpush1.msra.mxu0 0.0
        %5133 = vmatprep.subr.mxu0 0.0
        %5134 = vmatpush1.msra.mxu0 0.0
        %5135 = vmatprep.subr.mxu0 0.0
        %5136 = vmatpush1.msra.mxu0 0.0
        %5137 = vmatprep.subr.mxu0 0.0
        %5138 = vmatpush1.msra.mxu0 0.0
        %5139 = vmatprep.subr.mxu0 0.0
        %5140 = vmatpush1.msra.mxu0 0.0
        %5141 = vmatprep.subr.mxu0 0.0
        %5142 = vmatpush1.msra.mxu0 0.0
        %5143 = vmatprep.mubr.f32.mxu0 0.0
        %5144 = vmatmul.mubr.f32.gmra.mrb[0].mxu0 %v5077
        %v5145 = vpop.f32.mrb[0].mxu0
        %v5146 = vadd.f32 %v5074, %v5145
        %v5147 = vpop.f32.mrb[0].mxu0
        %5148 = vdwg.mxu0
        %vm5149 = vcmask 23552
        %5150 = vst.msk [vmem:[%s21] sm:$0xff] %vm5149, %v5146
      $region112: #{tpu_custom_call.1} parent=103 // pred_fallthru
        _
      // Predicated region
      $region113: #{tpu_custom_call.1} parent=103 // pred_check
        %p5151 = pneg %p566
      $region114: #{tpu_custom_call.1} parent=103 // pred_check_branch
        %5153 = sbr.rel (%p5151) target = $region116
      $region115: #{tpu_custom_call.1} parent=103 // pred_region
        _
      $region116: #{tpu_custom_call.1} parent=103 // pred_fallthru
        _
      // Predicated region
      $region117: #{tpu_custom_call.1} parent=103 // pred_check
        %p5154 = pneg %p566
      $region118: #{tpu_custom_call.1} parent=103 // pred_check_branch
        %5156 = sbr.rel (%p5154) target = $region120
      $region119: #{tpu_custom_call.1} parent=103 // pred_region
        _
      $region120: #{tpu_custom_call.1} parent=103 // pred_fallthru
        _
    $region104: #{tpu_custom_call.1} parent=5 // pred_fallthru
      _
    %p5157 = scmp.le.s32.totalorder 2, %s27
    // Predicated region
    $region121: #{tpu_custom_call.1} parent=5 // pred_check
      %p5158 = pneg %p5157
    $region122: #{tpu_custom_call.1} parent=5 // pred_check_branch
      %5160 = sbr.rel (%p5158) target = $region124
    $region123: #{tpu_custom_call.1} parent=5 // pred_region
      %s5161 = ssub.s32 %s27, 2
    $region124: #{tpu_custom_call.1} parent=5 // pred_fallthru
      _
  $region6: #{tpu_custom_call.1} parent=0 // loop_footer
    %s31 = sadd.s32 1, %s27
  $region7: #{tpu_custom_call.1} parent=0 // loop_footer_branch
    %26 = sbr.rel target = $region3
  $region8: #{tpu_custom_call.1} parent=0 // loop_exit
    _

</llo_original>
